<compile_context>
chip_gen: v6e
topology: v6e:2x2x1
jax: 0.10.0
libtpu: 0.0.40
codegen_flags: <defaults>
</compile_context>

<pallas_src>
import functools

import jax
import jax.numpy as jnp
from jax.experimental import pallas as pl
from jax.experimental.pallas import tpu as pltpu

_LN_EPS = 1e-5
_VMEM_LIMIT = 56 * 1024 * 1024   # explicit scoped-VMEM cap (safe on v5e/v6e/v7x)


# ----------------------------------------------------------------------------
# helpers
# ----------------------------------------------------------------------------
def _round_up(x, m):
    return (x + m - 1) // m * m


def _best_row_tile(total_rows, base, cap=512):
    """Largest multiple of `base` that divides total_rows and is <= cap."""
    n = total_rows // base
    best = 1
    for k in range(1, n + 1):
        if n % k == 0 and base * k <= cap:
            best = k
    return base * best


def _layernorm(x, g, b, eps):
    mu = jnp.mean(x, axis=-1, keepdims=True)
    var = jnp.mean((x - mu) ** 2, axis=-1, keepdims=True)
    return (x - mu) * jax.lax.rsqrt(var + eps) * g + b


# ----------------------------------------------------------------------------
# Pallas kernels
# ----------------------------------------------------------------------------
def _embed_kernel(x_ref, wm_ref, bm_ref, wp_ref, bp_ref, o_ref):
    """MNet (block-diag per-pixel linear) + ReLU fused with patch-embed GEMM."""
    x = x_ref[...].astype(jnp.bfloat16)
    y = jnp.dot(x, wm_ref[...], preferred_element_type=jnp.float32) + bm_ref[...]
    y = jnp.maximum(y, 0.0)
    t = jnp.dot(y.astype(jnp.bfloat16), wp_ref[...],
                preferred_element_type=jnp.float32) + bp_ref[...]
    o_ref[...] = t.astype(o_ref.dtype)


def _layer_kernel(tok_ref, g1_ref, b1_ref, wqkv_ref, bqkv_ref, wo_ref, bo_ref,
                  g2_ref, b2_ref, w1_ref, b1m_ref, w2_ref, b2m_ref,
                  o_ref, qkv_sc, *, num_heads, seq_len):
    """One full transformer layer for one (batch, q-tile) grid step.

    tok_ref : (Sp, Hd) bf16   -- whole (padded) sequence of batch element b
    o_ref   : (tq, Hd) bf16   -- this q-tile's output
    qkv_sc  : (Sp, 3*Hd) bf16 -- per-batch QKV, computed once at qi == 0
    """
    qi = pl.program_id(1)
    Sp, Hd = tok_ref.shape
    tq = o_ref.shape[0]
    dh = Hd // num_heads

    # LN1 + QKV GEMM for the whole sequence, once per batch element.
    @pl.when(qi == 0)
    def _():
        xf = tok_ref[...].astype(jnp.float32)
        h = _layernorm(xf, g1_ref[...], b1_ref[...], _LN_EPS)
        qkv = jnp.dot(h.astype(jnp.bfloat16), wqkv_ref[...],
                      preferred_element_type=jnp.float32) + bqkv_ref[...]
        qkv_sc[...] = qkv.astype(jnp.bfloat16)   # 1/sqrt(dh) already folded into Q

    row0 = pl.multiple_of(qi * tq, tq)
    x = tok_ref[pl.ds(row0, tq), :].astype(jnp.float32)     # residual (tq, Hd)
    q_rows = qkv_sc[pl.ds(row0, tq), :]                     # (tq, 3Hd) bf16
    kv = qkv_sc[...]                                        # (Sp, 3Hd) bf16
    k_all = kv[:, Hd:2 * Hd]
    v_all = kv[:, 2 * Hd:3 * Hd]

    # Mask padded keys (only materialized when the sequence is actually padded).
    if seq_len < Sp:
        kid = jax.lax.broadcasted_iota(jnp.int32, (1, Sp), 1)
        neg = jnp.where(kid < seq_len, 0.0, -1e30).astype(jnp.float32)
    else:
        neg = None

    heads = []
    for h_i in range(num_heads):
        q = q_rows[:, h_i * dh:(h_i + 1) * dh]
        k = k_all[:, h_i * dh:(h_i + 1) * dh]
        v = v_all[:, h_i * dh:(h_i + 1) * dh]
        s = jax.lax.dot_general(q, k, (((1,), (1,)), ((), ())),
                                preferred_element_type=jnp.float32)   # (tq, Sp)
        if neg is not None:
            s = s + neg
        m = jnp.max(s, axis=-1, keepdims=True)
        p = jnp.exp(s - m)
        p = p * pl.reciprocal(jnp.sum(p, axis=-1, keepdims=True), approx=True)
        heads.append(jnp.dot(p.astype(jnp.bfloat16), v,
                             preferred_element_type=jnp.float32))     # (tq, dh)

    # One full-K out-projection GEMM (heads laid out lane-contiguously).
    attn = jnp.concatenate(heads, axis=-1).astype(jnp.bfloat16)       # (tq, Hd)
    y = x + jnp.dot(attn, wo_ref[...],
                    preferred_element_type=jnp.float32) + bo_ref[...]

    # Fused MLP on the still-resident tile.
    h2 = _layernorm(y, g2_ref[...], b2_ref[...], _LN_EPS)
    z = jnp.dot(h2.astype(jnp.bfloat16), w1_ref[...],
                preferred_element_type=jnp.float32) + b1m_ref[...]
    z = jax.nn.gelu(z)   # TODO(synk): PyTorch nn.GELU default is exact erf
    z = jnp.dot(z.astype(jnp.bfloat16), w2_ref[...],
                preferred_element_type=jnp.float32) + b2m_ref[...]
    o_ref[...] = (y + z).astype(o_ref.dtype)


def _head_kernel(x_ref, g_ref, b_ref, w_ref, bh_ref, o_ref):
    """Fused final LN -> un-patch head GEMM -> sigmoid."""
    x = x_ref[...].astype(jnp.float32)
    h = _layernorm(x, g_ref[...], b_ref[...], _LN_EPS)
    y = jnp.dot(h.astype(jnp.bfloat16), w_ref[...],
                preferred_element_type=jnp.float32) + bh_ref[...]
    o_ref[...] = jax.nn.sigmoid(y).astype(o_ref.dtype)


# ----------------------------------------------------------------------------
# Pallas wrappers
# ----------------------------------------------------------------------------
def fused_patch_embed(xp, pp, *, row_tile):
    M, K1 = xp.shape
    K2, Hd = pp["pe_w"].shape
    return pl.pallas_call(
        _embed_kernel,
        out_shape=jax.ShapeDtypeStruct((M, Hd), jnp.bfloat16),
        grid=(M // row_tile,),
        in_specs=[
            pl.BlockSpec((row_tile, K1), lambda i: (i, 0)),
            pl.BlockSpec((K1, K2), lambda i: (0, 0)),
            pl.BlockSpec((1, K2), lambda i: (0, 0)),
            pl.BlockSpec((K2, Hd), lambda i: (0, 0)),
            pl.BlockSpec((1, Hd), lambda i: (0, 0)),
        ],
        out_specs=pl.BlockSpec((row_tile, Hd), lambda i: (i, 0)),
        compiler_params=pltpu.CompilerParams(
            dimension_semantics=("parallel",),
            vmem_limit_bytes=_VMEM_LIMIT),
        cost_estimate=pl.CostEstimate(
            flops=2 * M * K1 * K2 + 2 * M * K2 * Hd,
            transcendentals=0,
            bytes_accessed=4 * M * K1 + 2 * M * Hd + 2 * (K1 * K2 + K2 * Hd)),
    )(xp, pp["wm_blk"], pp["bm_blk"], pp["pe_w"], pp["pe_b"])


def transformer_layer(tok, lp, *, num_heads, seq_len, tq):
    B, Sp, Hd = tok.shape
    Hff = lp["w1"].shape[1]
    n_qt = Sp // tq
    flops = B * (2 * Sp * Hd * 3 * Hd + 4 * Sp * Sp * Hd
                 + 2 * Sp * Hd * Hd + 4 * Sp * Hd * Hff)
    return pl.pallas_call(
        functools.partial(_layer_kernel, num_heads=num_heads, seq_len=seq_len),
        out_shape=jax.ShapeDtypeStruct((B, Sp, Hd), jnp.bfloat16),
        grid=(B, n_qt),
        in_specs=[
            pl.BlockSpec((None, Sp, Hd), lambda b, q: (b, 0, 0)),   # resident over q
            pl.BlockSpec((1, Hd), lambda b, q: (0, 0)),
            pl.BlockSpec((1, Hd), lambda b, q: (0, 0)),
            pl.BlockSpec((Hd, 3 * Hd), lambda b, q: (0, 0)),
            pl.BlockSpec((1, 3 * Hd), lambda b, q: (0, 0)),
            pl.BlockSpec((Hd, Hd), lambda b, q: (0, 0)),
            pl.BlockSpec((1, Hd), lambda b, q: (0, 0)),
            pl.BlockSpec((1, Hd), lambda b, q: (0, 0)),
            pl.BlockSpec((1, Hd), lambda b, q: (0, 0)),
            pl.BlockSpec((Hd, Hff), lambda b, q: (0, 0)),
            pl.BlockSpec((1, Hff), lambda b, q: (0, 0)),
            pl.BlockSpec((Hff, Hd), lambda b, q: (0, 0)),
            pl.BlockSpec((1, Hd), lambda b, q: (0, 0)),
        ],
        out_specs=pl.BlockSpec((None, tq, Hd), lambda b, q: (b, q, 0)),
        scratch_shapes=[pltpu.VMEM((Sp, 3 * Hd), jnp.bfloat16)],
        compiler_params=pltpu.CompilerParams(
            dimension_semantics=("parallel", "arbitrary"),
            vmem_limit_bytes=_VMEM_LIMIT),
        cost_estimate=pl.CostEstimate(
            flops=flops,
            transcendentals=B * (num_heads * Sp * Sp + Sp * Hff),
            bytes_accessed=4 * B * Sp * Hd
                           + 2 * (4 * Hd * Hd + 2 * Hd * Hff)),
    )(tok, lp["ln1_g"], lp["ln1_b"], lp["wqkv"], lp["bqkv"],
      lp["wo"], lp["bo"], lp["ln2_g"], lp["ln2_b"],
      lp["w1"], lp["b1"], lp["w2"], lp["b2"])


def head_block(x, pp, *, row_tile):
    M, Hd = x.shape
    Nout = pp["head_w"].shape[1]
    return pl.pallas_call(
        _head_kernel,
        out_shape=jax.ShapeDtypeStruct((M, Nout), jnp.float32),
        grid=(M // row_tile,),
        in_specs=[
            pl.BlockSpec((row_tile, Hd), lambda i: (i, 0)),
            pl.BlockSpec((1, Hd), lambda i: (0, 0)),
            pl.BlockSpec((1, Hd), lambda i: (0, 0)),
            pl.BlockSpec((Hd, Nout), lambda i: (0, 0)),
            pl.BlockSpec((1, Nout), lambda i: (0, 0)),
        ],
        out_specs=pl.BlockSpec((row_tile, Nout), lambda i: (i, 0)),
        compiler_params=pltpu.CompilerParams(
            dimension_semantics=("parallel",),
            vmem_limit_bytes=_VMEM_LIMIT),
        cost_estimate=pl.CostEstimate(
            flops=2 * M * Hd * Nout,
            transcendentals=M * Nout,
            bytes_accessed=2 * M * Hd + 4 * M * Nout + 2 * Hd * Nout),
    )(x, pp["lnf_g"], pp["lnf_b"], pp["head_w"], pp["head_b"])


# ----------------------------------------------------------------------------
# Parameters
# ----------------------------------------------------------------------------
def init_params(key, *, in_chirps, out_channels_mnet, n_class, patch_size,
                hidden_size, num_layers):
    Cm = out_channels_mnet
    P = patch_size
    H = hidden_size
    keys = iter(jax.random.split(key, 8 + 8 * num_layers))

    def dense(k, shape, scale=0.02):
        return scale * jax.random.normal(k, shape, dtype=jnp.float32)

    params = {
        "mnet_w": dense(next(keys), (2 * in_chirps, Cm)),
        "mnet_b": jnp.zeros((Cm,), jnp.float32),
        "pe_w": dense(next(keys), (P * P * Cm, H)),
        "pe_b": jnp.zeros((H,), jnp.float32),
        "head_w": dense(next(keys), (H, P * P * n_class)),
        "head_b": jnp.zeros((P * P * n_class,), jnp.float32),
        "lnf_g": jnp.ones((H,), jnp.float32),
        "lnf_b": jnp.zeros((H,), jnp.float32),
        "layers": [],
    }
    for _ in range(num_layers):
        layer = {
            "ln1_g": jnp.ones((H,), jnp.float32),
            "ln1_b": jnp.zeros((H,), jnp.float32),
            "wqkv": dense(next(keys), (H, 3 * H)),
            "bqkv": jnp.zeros((3 * H,), jnp.float32),
            "wo": dense(next(keys), (H, H)),
            "bo": jnp.zeros((H,), jnp.float32),
            "ln2_g": jnp.ones((H,), jnp.float32),
            "ln2_b": jnp.zeros((H,), jnp.float32),
            "w1": dense(next(keys), (H, 4 * H)),
            "b1": jnp.zeros((4 * H,), jnp.float32),
            "w2": dense(next(keys), (4 * H, H)),
            "b2": jnp.zeros((H,), jnp.float32),
        }
        params["layers"].append(layer)
    return params


def pack_params(params, *, patch_size, num_heads):
    """One-time inference packing: block-diag MNet weight, bf16 weight casts,
    1/sqrt(dh) folded into the Q projection, biases reshaped to (1, N)."""
    P = patch_size
    Hd = params["pe_w"].shape[1]
    dh = Hd // num_heads
    scale = 1.0 / float(dh) ** 0.5

    packed = {
        # relu(per-pixel X @ mnet_w) reshaped to (P*P*Cm) == relu(X_patch @ kron(I, mnet_w))
        "wm_blk": jnp.kron(jnp.eye(P * P, dtype=jnp.float32),
                           params["mnet_w"]).astype(jnp.bfloat16),
        "bm_blk": jnp.tile(params["mnet_b"], P * P).reshape(1, -1),
        "pe_w": params["pe_w"].astype(jnp.bfloat16),
        "pe_b": params["pe_b"].reshape(1, -1),
        "head_w": params["head_w"].astype(jnp.bfloat16),
        "head_b": params["head_b"].reshape(1, -1),
        "lnf_g": params["lnf_g"].reshape(1, -1),
        "lnf_b": params["lnf_b"].reshape(1, -1),
        "layers": [],
    }
    for lp in params["layers"]:
        wqkv = lp["wqkv"].at[:, :Hd].multiply(scale)      # fold attention scale into Q
        bqkv = lp["bqkv"].at[:Hd].multiply(scale)
        packed["layers"].append({
            "ln1_g": lp["ln1_g"].reshape(1, -1),
            "ln1_b": lp["ln1_b"].reshape(1, -1),
            "wqkv": wqkv.astype(jnp.bfloat16),
            "bqkv": bqkv.reshape(1, -1),
            "wo": lp["wo"].astype(jnp.bfloat16),
            "bo": lp["bo"].reshape(1, -1),
            "ln2_g": lp["ln2_g"].reshape(1, -1),
            "ln2_b": lp["ln2_b"].reshape(1, -1),
            "w1": lp["w1"].astype(jnp.bfloat16),
            "b1": lp["b1"].reshape(1, -1),
            "w2": lp["w2"].astype(jnp.bfloat16),
            "b2": lp["b2"].reshape(1, -1),
        })
    return packed


# ----------------------------------------------------------------------------
# Forward pass (glue in plain JAX, hot paths fused into Pallas)
# ----------------------------------------------------------------------------
def maxvit2_forward(x, packed, *, n_class, patch_size, hidden_size, num_heads,
                    stacked_num=1, tq=256):
    B, two, T, Cc, Himg, Wimg = x.shape
    P = patch_size
    Hd = hidden_size
    hp, wp = Himg // P, Wimg // P
    S = T * hp * wp                                      # tokens per batch elem
    tq = min(tq, _round_up(S, 8))                        # q-row tile
    Sp = _round_up(S, tq)                                # padded sequence length

    # ---- patch extraction: rows=(b,t,hp,wp), feat=(py,px,real/imag,chirp) ----
    xp = jnp.transpose(x, (0, 2, 4, 5, 1, 3))            # (B,T,H,W,2,Cc)
    xp = xp.reshape(B, T, hp, P, wp, P, two * Cc)
    xp = xp.transpose(0, 1, 2, 4, 3, 5, 6).reshape(B, S, P * P * two * Cc)
    if Sp != S:
        xp = jnp.pad(xp, ((0, 0), (0, Sp - S), (0, 0)))  # pad ONCE
    xp = xp.reshape(B * Sp, P * P * two * Cc)

    row_tile = _best_row_tile(B * Sp, tq)

    # ---- MNet + ReLU fused into the patch-embedding GEMM ----
    tok = fused_patch_embed(xp, packed, row_tile=row_tile)     # (B*Sp, Hd) bf16
    tok = tok.reshape(B, Sp, Hd)
    # TODO(synk): reference RadarStackedHourglass may add a positional
    # embedding here; the stand-in has none.

    # ---- transformer encoder: ONE fused pallas_call per layer ----
    for lp in packed["layers"]:
        tok = transformer_layer(tok, lp, num_heads=num_heads, seq_len=S, tq=tq)

    # ---- output head: LN + un-patch GEMM + sigmoid ----
    out = head_block(tok.reshape(B * Sp, Hd), packed, row_tile=row_tile)
    out = out.reshape(B, Sp, P * P * n_class)[:, :S]           # strip ONCE
    out = (out.reshape(B, T, hp, wp, P, P, n_class)
              .transpose(0, 6, 1, 2, 4, 3, 5)
              .reshape(B, n_class, T, Himg, Wimg))

    # RadarStackedHourglass returns one confidence map per stack.
    return [out for _ in range(stacked_num)]


# ----------------------------------------------------------------------------
# Demo
# ----------------------------------------------------------------------------
if __name__ == "__main__":
    # Small config consistent with the module signature:
    #   mnet_cfg = (in_chirps, out_channels_mnet), n_class, win_size,
    #   patch_size, hidden_size, num_layers, stacked_num.
    B = 2
    in_chirps = 4
    out_channels_mnet = 8
    n_class = 3
    win_size = 4           # temporal frames
    Himg = Wimg = 16
    patch_size = 8
    hidden_size = 32
    num_layers = 2
    num_heads = 4
    stacked_num = 1

    key = jax.random.PRNGKey(0)
    kx, kp = jax.random.split(key)

    # PyTorch-style input: (B, 2 (real/imag), win_size, in_chirps, H, W)
    x = jax.random.normal(kx, (B, 2, win_size, in_chirps, Himg, Wimg),
                          dtype=jnp.float32)

    raw_params = init_params(
        kp,
        in_chirps=in_chirps,
        out_channels_mnet=out_channels_mnet,
        n_class=n_class,
        patch_size=patch_size,
        hidden_size=hidden_size,
        num_layers=num_layers,
    )
    # One-time packing (kron, bf16 casts, scale folding) outside the jitted fwd.
    packed = pack_params(raw_params, patch_size=patch_size, num_heads=num_heads)
    packed = jax.block_until_ready(packed)

    fwd = jax.jit(functools.partial(
        maxvit2_forward,
        n_class=n_class,
        patch_size=patch_size,
        hidden_size=hidden_size,
        num_heads=num_heads,
        stacked_num=stacked_num,
    ))

    outs = fwd(x, packed)
    for o in outs:
        jax.block_until_ready(o)

    expected = (B, n_class, win_size, Himg, Wimg)
    assert len(outs) == stacked_num and outs[0].shape == expected, \
        (len(outs), outs[0].shape, expected)
    assert bool(jnp.all(jnp.isfinite(outs[0])))
    print("KERNEL_OK")
</pallas_src>

<mosaic_0001>
module attributes {stable_mosaic.version = 11 : i64} {
  func.func @_embed_kernel(%arg0: i32, %arg1: memref<32x512xf32, #tpu.memory_space<vmem>>, %arg2: memref<512x512xbf16, #tpu.memory_space<vmem>>, %arg3: memref<1x512xf32, #tpu.memory_space<vmem>>, %arg4: memref<512x32xbf16, #tpu.memory_space<vmem>>, %arg5: memref<1x32xf32, #tpu.memory_space<vmem>>, %arg6: memref<32x32xbf16, #tpu.memory_space<vmem>>) attributes {dimension_semantics = [#tpu.dimension_semantics<parallel>], iteration_bounds = array<i64: 1>, scalar_prefetch = 0 : i64, scratch_operands = 0 : i64, tpu.core_type = #tpu.core_type<tc>, window_params = [{transform_indices = @transform_0, window_bounds = array<i64: 32, 512>}, {pipeline_mode = #tpu.pipeline_mode<synchronous>, transform_indices = @transform_1, window_bounds = array<i64: 512, 512>}, {pipeline_mode = #tpu.pipeline_mode<synchronous>, transform_indices = @transform_2, window_bounds = array<i64: 1, 512>}, {pipeline_mode = #tpu.pipeline_mode<synchronous>, transform_indices = @transform_3, window_bounds = array<i64: 512, 32>}, {pipeline_mode = #tpu.pipeline_mode<synchronous>, transform_indices = @transform_4, window_bounds = array<i64: 1, 32>}, {transform_indices = @transform_5, window_bounds = array<i64: 32, 32>}]} {
    %c0 = arith.constant 0 : index
    %c0_0 = arith.constant 0 : index
    %0 = vector.load %arg1[%c0, %c0_0] : memref<32x512xf32, #tpu.memory_space<vmem>>, vector<32x512xf32>
    %1 = arith.truncf %0 : vector<32x512xf32> to vector<32x512xbf16>
    %c0_1 = arith.constant 0 : index
    %c0_2 = arith.constant 0 : index
    %2 = vector.load %arg2[%c0_1, %c0_2] : memref<512x512xbf16, #tpu.memory_space<vmem>>, vector<512x512xbf16>
    %cst = arith.constant dense<0.000000e+00> : vector<32x512xf32>
    %3 = tpu.matmul %1, %2, %cst {dimension_numbers = #tpu.dot_dimension_numbers<[1], [0], [0], [1], [0, 0, 1, 1], [], []>} : vector<32x512xbf16>, vector<512x512xbf16>, vector<32x512xf32> -> vector<32x512xf32>
    %c0_3 = arith.constant 0 : index
    %c0_4 = arith.constant 0 : index
    %4 = vector.load %arg3[%c0_3, %c0_4] : memref<1x512xf32, #tpu.memory_space<vmem>>, vector<1x512xf32>
    %5 = vector.broadcast %4 : vector<1x512xf32> to vector<32x512xf32>
    %6 = arith.addf %3, %5 : vector<32x512xf32>
    %cst_5 = arith.constant 0.000000e+00 : f32
    %7 = vector.broadcast %cst_5 : f32 to vector<32x512xf32>
    %8 = arith.maximumf %6, %7 : vector<32x512xf32>
    %9 = arith.truncf %8 : vector<32x512xf32> to vector<32x512xbf16>
    %c0_6 = arith.constant 0 : index
    %c0_7 = arith.constant 0 : index
    %10 = vector.load %arg4[%c0_6, %c0_7] : memref<512x32xbf16, #tpu.memory_space<vmem>>, vector<512x32xbf16>
    %cst_8 = arith.constant dense<0.000000e+00> : vector<32x32xf32>
    %11 = tpu.matmul %9, %10, %cst_8 {dimension_numbers = #tpu.dot_dimension_numbers<[1], [0], [0], [1], [0, 0, 1, 1], [], []>} : vector<32x512xbf16>, vector<512x32xbf16>, vector<32x32xf32> -> vector<32x32xf32>
    %c0_9 = arith.constant 0 : index
    %c0_10 = arith.constant 0 : index
    %12 = vector.load %arg5[%c0_9, %c0_10] : memref<1x32xf32, #tpu.memory_space<vmem>>, vector<1x32xf32>
    %13 = vector.broadcast %12 : vector<1x32xf32> to vector<32x32xf32>
    %14 = arith.addf %11, %13 : vector<32x32xf32>
    %15 = arith.truncf %14 : vector<32x32xf32> to vector<32x32xbf16>
    %c0_11 = arith.constant 0 : index
    %c0_12 = arith.constant 0 : index
    %16 = vector.load %arg6[%c0_11, %c0_12] : memref<32x32xbf16, #tpu.memory_space<vmem>>, vector<32x32xbf16>
    tpu.vector_store %arg6[%c0_11, %c0_12], %15 {strides = array<i32>} : memref<32x32xbf16, #tpu.memory_space<vmem>>, vector<32x32xbf16>,
    return
  }
  func.func @transform_0(%arg0: i32) -> (i32, i32) {
    %c0_i32 = arith.constant 0 : i32
    %c0_i32_0 = arith.constant 0 : i32
    return %arg0, %c0_i32 : i32, i32
  }
  func.func @transform_1(%arg0: i32) -> (i32, i32) {
    %c0_i32 = arith.constant 0 : i32
    %c0_i32_0 = arith.constant 0 : i32
    %c0_i32_1 = arith.constant 0 : i32
    return %c0_i32, %c0_i32_0 : i32, i32
  }
  func.func @transform_2(%arg0: i32) -> (i32, i32) {
    %c0_i32 = arith.constant 0 : i32
    %c0_i32_0 = arith.constant 0 : i32
    %c0_i32_1 = arith.constant 0 : i32
    return %c0_i32, %c0_i32_0 : i32, i32
  }
  func.func @transform_3(%arg0: i32) -> (i32, i32) {
    %c0_i32 = arith.constant 0 : i32
    %c0_i32_0 = arith.constant 0 : i32
    %c0_i32_1 = arith.constant 0 : i32
    return %c0_i32, %c0_i32_0 : i32, i32
  }
  func.func @transform_4(%arg0: i32) -> (i32, i32) {
    %c0_i32 = arith.constant 0 : i32
    %c0_i32_0 = arith.constant 0 : i32
    %c0_i32_1 = arith.constant 0 : i32
    return %c0_i32, %c0_i32_0 : i32, i32
  }
  func.func @transform_5(%arg0: i32) -> (i32, i32) {
    %c0_i32 = arith.constant 0 : i32
    %c0_i32_0 = arith.constant 0 : i32
    return %arg0, %c0_i32 : i32, i32
  }
}

module attributes {stable_mosaic.version = 11 : i64} {
  func.func @_layer_kernel(%arg0: i32, %arg1: i32, %arg2: memref<1x16x32xbf16, #tpu.memory_space<vmem>>, %arg3: memref<1x32xf32, #tpu.memory_space<vmem>>, %arg4: memref<1x32xf32, #tpu.memory_space<vmem>>, %arg5: memref<32x96xbf16, #tpu.memory_space<vmem>>, %arg6: memref<1x96xf32, #tpu.memory_space<vmem>>, %arg7: memref<32x32xbf16, #tpu.memory_space<vmem>>, %arg8: memref<1x32xf32, #tpu.memory_space<vmem>>, %arg9: memref<1x32xf32, #tpu.memory_space<vmem>>, %arg10: memref<1x32xf32, #tpu.memory_space<vmem>>, %arg11: memref<32x128xbf16, #tpu.memory_space<vmem>>, %arg12: memref<1x128xf32, #tpu.memory_space<vmem>>, %arg13: memref<128x32xbf16, #tpu.memory_space<vmem>>, %arg14: memref<1x32xf32, #tpu.memory_space<vmem>>, %arg15: memref<1x16x32xbf16, #tpu.memory_space<vmem>>, %arg16: memref<16x96xbf16, #tpu.memory_space<vmem>>) attributes {dimension_semantics = [#tpu.dimension_semantics<parallel>, #tpu.dimension_semantics<arbitrary>], iteration_bounds = array<i64: 2, 1>, scalar_prefetch = 0 : i64, scratch_operands = 1 : i64, tpu.core_type = #tpu.core_type<tc>, window_params = [{transform_indices = @transform_0, window_bounds = array<i64: 1, 16, 32>}, {pipeline_mode = #tpu.pipeline_mode<synchronous>, transform_indices = @transform_1, window_bounds = array<i64: 1, 32>}, {pipeline_mode = #tpu.pipeline_mode<synchronous>, transform_indices = @transform_2, window_bounds = array<i64: 1, 32>}, {pipeline_mode = #tpu.pipeline_mode<synchronous>, transform_indices = @transform_3, window_bounds = array<i64: 32, 96>}, {pipeline_mode = #tpu.pipeline_mode<synchronous>, transform_indices = @transform_4, window_bounds = array<i64: 1, 96>}, {pipeline_mode = #tpu.pipeline_mode<synchronous>, transform_indices = @transform_5, window_bounds = array<i64: 32, 32>}, {pipeline_mode = #tpu.pipeline_mode<synchronous>, transform_indices = @transform_6, window_bounds = array<i64: 1, 32>}, {pipeline_mode = #tpu.pipeline_mode<synchronous>, transform_indices = @transform_7, window_bounds = array<i64: 1, 32>}, {pipeline_mode = #tpu.pipeline_mode<synchronous>, transform_indices = @transform_8, window_bounds = array<i64: 1, 32>}, {pipeline_mode = #tpu.pipeline_mode<synchronous>, transform_indices = @transform_9, window_bounds = array<i64: 32, 128>}, {pipeline_mode = #tpu.pipeline_mode<synchronous>, transform_indices = @transform_10, window_bounds = array<i64: 1, 128>}, {pipeline_mode = #tpu.pipeline_mode<synchronous>, transform_indices = @transform_11, window_bounds = array<i64: 128, 32>}, {pipeline_mode = #tpu.pipeline_mode<synchronous>, transform_indices = @transform_12, window_bounds = array<i64: 1, 32>}, {transform_indices = @transform_13, window_bounds = array<i64: 1, 16, 32>}]} {
    %c0_i32 = arith.constant 0 : i32
    %0 = arith.cmpi eq, %arg1, %c0_i32 : i32
    %1 = arith.extui %0 : i1 to i32
    %c0_i32_0 = arith.constant 0 : i32
    %2 = arith.cmpi ne, %1, %c0_i32_0 : i32
    scf.if %2 {
      %c0_51 = arith.constant 0 : index
      %c0_52 = arith.constant 0 : index
      %c0_53 = arith.constant 0 : index
      %140 = vector.load %arg2[%c0_51, %c0_52, %c0_53] : memref<1x16x32xbf16, #tpu.memory_space<vmem>>, vector<1x16x32xbf16>
      %141 = vector.shape_cast %140 : vector<1x16x32xbf16> to vector<16x32xbf16>
      %142 = arith.extf %141 : vector<16x32xbf16> to vector<16x32xf32>
      %c0_54 = arith.constant 0 : index
      %c0_55 = arith.constant 0 : index
      %143 = vector.load %arg3[%c0_54, %c0_55] : memref<1x32xf32, #tpu.memory_space<vmem>>, vector<1x32xf32>
      %c0_56 = arith.constant 0 : index
      %c0_57 = arith.constant 0 : index
      %144 = vector.load %arg4[%c0_56, %c0_57] : memref<1x32xf32, #tpu.memory_space<vmem>>, vector<1x32xf32>
      %cst_58 = arith.constant dense<0.000000e+00> : vector<16xf32>
      %145 = vector.multi_reduction <add>, %142, %cst_58 [1] : vector<16x32xf32> to vector<16xf32>
      %146 = vector.shape_cast %145 : vector<16xf32> to vector<16x1xf32>
      %cst_59 = arith.constant 3.200000e+01 : f32
      %147 = vector.broadcast %cst_59 : f32 to vector<16x1xf32>
      %148 = arith.divf %146, %147 : vector<16x1xf32>
      %149 = vector.broadcast %148 : vector<16x1xf32> to vector<16x32xf32>
      %150 = arith.subf %142, %149 : vector<16x32xf32>
      %151 = arith.mulf %150, %150 : vector<16x32xf32>
      %cst_60 = arith.constant dense<0.000000e+00> : vector<16xf32>
      %152 = vector.multi_reduction <add>, %151, %cst_60 [1] : vector<16x32xf32> to vector<16xf32>
      %153 = vector.shape_cast %152 : vector<16xf32> to vector<16x1xf32>
      %cst_61 = arith.constant 3.200000e+01 : f32
      %154 = vector.broadcast %cst_61 : f32 to vector<16x1xf32>
      %155 = arith.divf %153, %154 : vector<16x1xf32>
      %156 = vector.broadcast %148 : vector<16x1xf32> to vector<16x32xf32>
      %157 = arith.subf %142, %156 : vector<16x32xf32>
      %cst_62 = arith.constant 9.99999974E-6 : f32
      %158 = vector.broadcast %cst_62 : f32 to vector<16x1xf32>
      %159 = arith.addf %155, %158 : vector<16x1xf32>
      %160 = math.rsqrt %159 : vector<16x1xf32>
      %161 = vector.broadcast %160 : vector<16x1xf32> to vector<16x32xf32>
      %162 = arith.mulf %157, %161 : vector<16x32xf32>
      %163 = vector.broadcast %143 : vector<1x32xf32> to vector<16x32xf32>
      %164 = arith.mulf %162, %163 : vector<16x32xf32>
      %165 = vector.broadcast %144 : vector<1x32xf32> to vector<16x32xf32>
      %166 = arith.addf %164, %165 : vector<16x32xf32>
      %167 = arith.truncf %166 : vector<16x32xf32> to vector<16x32xbf16>
      %c0_63 = arith.constant 0 : index
      %c0_64 = arith.constant 0 : index
      %168 = vector.load %arg5[%c0_63, %c0_64] : memref<32x96xbf16, #tpu.memory_space<vmem>>, vector<32x96xbf16>
      %cst_65 = arith.constant dense<0.000000e+00> : vector<16x96xf32>
      %169 = tpu.matmul %167, %168, %cst_65 {dimension_numbers = #tpu.dot_dimension_numbers<[1], [0], [0], [1], [0, 0, 1, 1], [], []>} : vector<16x32xbf16>, vector<32x96xbf16>, vector<16x96xf32> -> vector<16x96xf32>
      %c0_66 = arith.constant 0 : index
      %c0_67 = arith.constant 0 : index
      %170 = vector.load %arg6[%c0_66, %c0_67] : memref<1x96xf32, #tpu.memory_space<vmem>>, vector<1x96xf32>
      %171 = vector.broadcast %170 : vector<1x96xf32> to vector<16x96xf32>
      %172 = arith.addf %169, %171 : vector<16x96xf32>
      %173 = arith.truncf %172 : vector<16x96xf32> to vector<16x96xbf16>
      %c0_68 = arith.constant 0 : index
      %c0_69 = arith.constant 0 : index
      %174 = vector.load %arg16[%c0_68, %c0_69] : memref<16x96xbf16, #tpu.memory_space<vmem>>, vector<16x96xbf16>
      tpu.vector_store %arg16[%c0_68, %c0_69], %173 {strides = array<i32>} : memref<16x96xbf16, #tpu.memory_space<vmem>>, vector<16x96xbf16>,
    } else {
    }
    %c16_i32 = arith.constant 16 : i32
    %3 = arith.muli %arg1, %c16_i32 : i32
    %4 = tpu.assume_multiple %3, 16 : i32
    %c0 = arith.constant 0 : index
    %5 = arith.index_cast %4 : i32 to index
    %c0_1 = arith.constant 0 : index
    %6 = vector.load %arg2[%c0, %5, %c0_1] : memref<1x16x32xbf16, #tpu.memory_space<vmem>>, vector<1x16x32xbf16>
    %7 = vector.shape_cast %6 : vector<1x16x32xbf16> to vector<16x32xbf16>
    %8 = arith.extf %7 : vector<16x32xbf16> to vector<16x32xf32>
    %9 = arith.index_cast %4 : i32 to index
    %c0_2 = arith.constant 0 : index
    %10 = vector.load %arg16[%9, %c0_2] : memref<16x96xbf16, #tpu.memory_space<vmem>>, vector<16x96xbf16>
    %c0_3 = arith.constant 0 : index
    %c0_4 = arith.constant 0 : index
    %11 = vector.load %arg16[%c0_3, %c0_4] : memref<16x96xbf16, #tpu.memory_space<vmem>>, vector<16x96xbf16>
    %12 = vector.extract_strided_slice %11 {offsets = [0, 32], sizes = [16, 32], strides = [1, 1]} : vector<16x96xbf16> to vector<16x32xbf16>
    %13 = vector.extract_strided_slice %11 {offsets = [0, 64], sizes = [16, 32], strides = [1, 1]} : vector<16x96xbf16> to vector<16x32xbf16>
    %14 = vector.extract_strided_slice %10 {offsets = [0, 0], sizes = [16, 8], strides = [1, 1]} : vector<16x96xbf16> to vector<16x8xbf16>
    %15 = vector.extract_strided_slice %12 {offsets = [0, 0], sizes = [16, 8], strides = [1, 1]} : vector<16x32xbf16> to vector<16x8xbf16>
    %16 = vector.extract_strided_slice %13 {offsets = [0, 0], sizes = [16, 8], strides = [1, 1]} : vector<16x32xbf16> to vector<16x8xbf16>
    %cst = arith.constant dense<0.000000e+00> : vector<16x16xf32>
    %17 = tpu.matmul %14, %15, %cst {dimension_numbers = #tpu.dot_dimension_numbers<[1], [1], [0], [0], [0, 0, 1, 0], [], []>} : vector<16x8xbf16>, vector<16x8xbf16>, vector<16x16xf32> -> vector<16x16xf32>
    %cst_5 = arith.constant dense<0xFF800000> : vector<16xf32>
    %18 = vector.multi_reduction <maximumf>, %17, %cst_5 [1] : vector<16x16xf32> to vector<16xf32>
    %19 = vector.shape_cast %18 : vector<16xf32> to vector<16x1xf32>
    %20 = vector.broadcast %19 : vector<16x1xf32> to vector<16x16xf32>
    %21 = arith.subf %17, %20 : vector<16x16xf32>
    %22 = math.exp %21 : vector<16x16xf32>
    %cst_6 = arith.constant dense<0.000000e+00> : vector<16xf32>
    %23 = vector.multi_reduction <add>, %22, %cst_6 [1] : vector<16x16xf32> to vector<16xf32>
    %24 = vector.shape_cast %23 : vector<16xf32> to vector<16x1xf32>
    %25 = tpu.reciprocal %24 {approx = true} : vector<16x1xf32> -> vector<16x1xf32>
    %26 = vector.broadcast %25 : vector<16x1xf32> to vector<16x16xf32>
    %27 = arith.mulf %22, %26 : vector<16x16xf32>
    %28 = arith.truncf %27 : vector<16x16xf32> to vector<16x16xbf16>
    %cst_7 = arith.constant dense<0.000000e+00> : vector<16x8xf32>
    %29 = tpu.matmul %28, %16, %cst_7 {dimension_numbers = #tpu.dot_dimension_numbers<[1], [0], [0], [1], [0, 0, 1, 1], [], []>} : vector<16x16xbf16>, vector<16x8xbf16>, vector<16x8xf32> -> vector<16x8xf32>
    %30 = vector.extract_strided_slice %10 {offsets = [0, 8], sizes = [16, 8], strides = [1, 1]} : vector<16x96xbf16> to vector<16x8xbf16>
    %31 = vector.extract_strided_slice %12 {offsets = [0, 8], sizes = [16, 8], strides = [1, 1]} : vector<16x32xbf16> to vector<16x8xbf16>
    %32 = vector.extract_strided_slice %13 {offsets = [0, 8], sizes = [16, 8], strides = [1, 1]} : vector<16x32xbf16> to vector<16x8xbf16>
    %cst_8 = arith.constant dense<0.000000e+00> : vector<16x16xf32>
    %33 = tpu.matmul %30, %31, %cst_8 {dimension_numbers = #tpu.dot_dimension_numbers<[1], [1], [0], [0], [0, 0, 1, 0], [], []>} : vector<16x8xbf16>, vector<16x8xbf16>, vector<16x16xf32> -> vector<16x16xf32>
    %cst_9 = arith.constant dense<0xFF800000> : vector<16xf32>
    %34 = vector.multi_reduction <maximumf>, %33, %cst_9 [1] : vector<16x16xf32> to vector<16xf32>
    %35 = vector.shape_cast %34 : vector<16xf32> to vector<16x1xf32>
    %36 = vector.broadcast %35 : vector<16x1xf32> to vector<16x16xf32>
    %37 = arith.subf %33, %36 : vector<16x16xf32>
    %38 = math.exp %37 : vector<16x16xf32>
    %cst_10 = arith.constant dense<0.000000e+00> : vector<16xf32>
    %39 = vector.multi_reduction <add>, %38, %cst_10 [1] : vector<16x16xf32> to vector<16xf32>
    %40 = vector.shape_cast %39 : vector<16xf32> to vector<16x1xf32>
    %41 = tpu.reciprocal %40 {approx = true} : vector<16x1xf32> -> vector<16x1xf32>
    %42 = vector.broadcast %41 : vector<16x1xf32> to vector<16x16xf32>
    %43 = arith.mulf %38, %42 : vector<16x16xf32>
    %44 = arith.truncf %43 : vector<16x16xf32> to vector<16x16xbf16>
    %cst_11 = arith.constant dense<0.000000e+00> : vector<16x8xf32>
    %45 = tpu.matmul %44, %32, %cst_11 {dimension_numbers = #tpu.dot_dimension_numbers<[1], [0], [0], [1], [0, 0, 1, 1], [], []>} : vector<16x16xbf16>, vector<16x8xbf16>, vector<16x8xf32> -> vector<16x8xf32>
    %46 = vector.extract_strided_slice %10 {offsets = [0, 16], sizes = [16, 8], strides = [1, 1]} : vector<16x96xbf16> to vector<16x8xbf16>
    %47 = vector.extract_strided_slice %12 {offsets = [0, 16], sizes = [16, 8], strides = [1, 1]} : vector<16x32xbf16> to vector<16x8xbf16>
    %48 = vector.extract_strided_slice %13 {offsets = [0, 16], sizes = [16, 8], strides = [1, 1]} : vector<16x32xbf16> to vector<16x8xbf16>
    %cst_12 = arith.constant dense<0.000000e+00> : vector<16x16xf32>
    %49 = tpu.matmul %46, %47, %cst_12 {dimension_numbers = #tpu.dot_dimension_numbers<[1], [1], [0], [0], [0, 0, 1, 0], [], []>} : vector<16x8xbf16>, vector<16x8xbf16>, vector<16x16xf32> -> vector<16x16xf32>
    %cst_13 = arith.constant dense<0xFF800000> : vector<16xf32>
    %50 = vector.multi_reduction <maximumf>, %49, %cst_13 [1] : vector<16x16xf32> to vector<16xf32>
    %51 = vector.shape_cast %50 : vector<16xf32> to vector<16x1xf32>
    %52 = vector.broadcast %51 : vector<16x1xf32> to vector<16x16xf32>
    %53 = arith.subf %49, %52 : vector<16x16xf32>
    %54 = math.exp %53 : vector<16x16xf32>
    %cst_14 = arith.constant dense<0.000000e+00> : vector<16xf32>
    %55 = vector.multi_reduction <add>, %54, %cst_14 [1] : vector<16x16xf32> to vector<16xf32>
    %56 = vector.shape_cast %55 : vector<16xf32> to vector<16x1xf32>
    %57 = tpu.reciprocal %56 {approx = true} : vector<16x1xf32> -> vector<16x1xf32>
    %58 = vector.broadcast %57 : vector<16x1xf32> to vector<16x16xf32>
    %59 = arith.mulf %54, %58 : vector<16x16xf32>
    %60 = arith.truncf %59 : vector<16x16xf32> to vector<16x16xbf16>
    %cst_15 = arith.constant dense<0.000000e+00> : vector<16x8xf32>
    %61 = tpu.matmul %60, %48, %cst_15 {dimension_numbers = #tpu.dot_dimension_numbers<[1], [0], [0], [1], [0, 0, 1, 1], [], []>} : vector<16x16xbf16>, vector<16x8xbf16>, vector<16x8xf32> -> vector<16x8xf32>
    %62 = vector.extract_strided_slice %10 {offsets = [0, 24], sizes = [16, 8], strides = [1, 1]} : vector<16x96xbf16> to vector<16x8xbf16>
    %63 = vector.extract_strided_slice %12 {offsets = [0, 24], sizes = [16, 8], strides = [1, 1]} : vector<16x32xbf16> to vector<16x8xbf16>
    %64 = vector.extract_strided_slice %13 {offsets = [0, 24], sizes = [16, 8], strides = [1, 1]} : vector<16x32xbf16> to vector<16x8xbf16>
    %cst_16 = arith.constant dense<0.000000e+00> : vector<16x16xf32>
    %65 = tpu.matmul %62, %63, %cst_16 {dimension_numbers = #tpu.dot_dimension_numbers<[1], [1], [0], [0], [0, 0, 1, 0], [], []>} : vector<16x8xbf16>, vector<16x8xbf16>, vector<16x16xf32> -> vector<16x16xf32>
    %cst_17 = arith.constant dense<0xFF800000> : vector<16xf32>
    %66 = vector.multi_reduction <maximumf>, %65, %cst_17 [1] : vector<16x16xf32> to vector<16xf32>
    %67 = vector.shape_cast %66 : vector<16xf32> to vector<16x1xf32>
    %68 = vector.broadcast %67 : vector<16x1xf32> to vector<16x16xf32>
    %69 = arith.subf %65, %68 : vector<16x16xf32>
    %70 = math.exp %69 : vector<16x16xf32>
    %cst_18 = arith.constant dense<0.000000e+00> : vector<16xf32>
    %71 = vector.multi_reduction <add>, %70, %cst_18 [1] : vector<16x16xf32> to vector<16xf32>
    %72 = vector.shape_cast %71 : vector<16xf32> to vector<16x1xf32>
    %73 = tpu.reciprocal %72 {approx = true} : vector<16x1xf32> -> vector<16x1xf32>
    %74 = vector.broadcast %73 : vector<16x1xf32> to vector<16x16xf32>
    %75 = arith.mulf %70, %74 : vector<16x16xf32>
    %76 = arith.truncf %75 : vector<16x16xf32> to vector<16x16xbf16>
    %cst_19 = arith.constant dense<0.000000e+00> : vector<16x8xf32>
    %77 = tpu.matmul %76, %64, %cst_19 {dimension_numbers = #tpu.dot_dimension_numbers<[1], [0], [0], [1], [0, 0, 1, 1], [], []>} : vector<16x16xbf16>, vector<16x8xbf16>, vector<16x8xf32> -> vector<16x8xf32>
    %78 = tpu.concatenate %29, %45, %61, %77 in 1 : vector<16x8xf32>, vector<16x8xf32>, vector<16x8xf32>, vector<16x8xf32> -> vector<16x32xf32>
    %79 = arith.truncf %78 : vector<16x32xf32> to vector<16x32xbf16>
    %c0_20 = arith.constant 0 : index
    %c0_21 = arith.constant 0 : index
    %80 = vector.load %arg7[%c0_20, %c0_21] : memref<32x32xbf16, #tpu.memory_space<vmem>>, vector<32x32xbf16>
    %cst_22 = arith.constant dense<0.000000e+00> : vector<16x32xf32>
    %81 = tpu.matmul %79, %80, %cst_22 {dimension_numbers = #tpu.dot_dimension_numbers<[1], [0], [0], [1], [0, 0, 1, 1], [], []>} : vector<16x32xbf16>, vector<32x32xbf16>, vector<16x32xf32> -> vector<16x32xf32>
    %82 = arith.addf %8, %81 : vector<16x32xf32>
    %c0_23 = arith.constant 0 : index
    %c0_24 = arith.constant 0 : index
    %83 = vector.load %arg8[%c0_23, %c0_24] : memref<1x32xf32, #tpu.memory_space<vmem>>, vector<1x32xf32>
    %84 = vector.broadcast %83 : vector<1x32xf32> to vector<16x32xf32>
    %85 = arith.addf %82, %84 : vector<16x32xf32>
    %c0_25 = arith.constant 0 : index
    %c0_26 = arith.constant 0 : index
    %86 = vector.load %arg9[%c0_25, %c0_26] : memref<1x32xf32, #tpu.memory_space<vmem>>, vector<1x32xf32>
    %c0_27 = arith.constant 0 : index
    %c0_28 = arith.constant 0 : index
    %87 = vector.load %arg10[%c0_27, %c0_28] : memref<1x32xf32, #tpu.memory_space<vmem>>, vector<1x32xf32>
    %cst_29 = arith.constant dense<0.000000e+00> : vector<16xf32>
    %88 = vector.multi_reduction <add>, %85, %cst_29 [1] : vector<16x32xf32> to vector<16xf32>
    %89 = vector.shape_cast %88 : vector<16xf32> to vector<16x1xf32>
    %cst_30 = arith.constant 3.200000e+01 : f32
    %90 = vector.broadcast %cst_30 : f32 to vector<16x1xf32>
    %91 = arith.divf %89, %90 : vector<16x1xf32>
    %92 = vector.broadcast %91 : vector<16x1xf32> to vector<16x32xf32>
    %93 = arith.subf %85, %92 : vector<16x32xf32>
    %94 = arith.mulf %93, %93 : vector<16x32xf32>
    %cst_31 = arith.constant dense<0.000000e+00> : vector<16xf32>
    %95 = vector.multi_reduction <add>, %94, %cst_31 [1] : vector<16x32xf32> to vector<16xf32>
    %96 = vector.shape_cast %95 : vector<16xf32> to vector<16x1xf32>
    %cst_32 = arith.constant 3.200000e+01 : f32
    %97 = vector.broadcast %cst_32 : f32 to vector<16x1xf32>
    %98 = arith.divf %96, %97 : vector<16x1xf32>
    %99 = vector.broadcast %91 : vector<16x1xf32> to vector<16x32xf32>
    %100 = arith.subf %85, %99 : vector<16x32xf32>
    %cst_33 = arith.constant 9.99999974E-6 : f32
    %101 = vector.broadcast %cst_33 : f32 to vector<16x1xf32>
    %102 = arith.addf %98, %101 : vector<16x1xf32>
    %103 = math.rsqrt %102 : vector<16x1xf32>
    %104 = vector.broadcast %103 : vector<16x1xf32> to vector<16x32xf32>
    %105 = arith.mulf %100, %104 : vector<16x32xf32>
    %106 = vector.broadcast %86 : vector<1x32xf32> to vector<16x32xf32>
    %107 = arith.mulf %105, %106 : vector<16x32xf32>
    %108 = vector.broadcast %87 : vector<1x32xf32> to vector<16x32xf32>
    %109 = arith.addf %107, %108 : vector<16x32xf32>
    %110 = arith.truncf %109 : vector<16x32xf32> to vector<16x32xbf16>
    %c0_34 = arith.constant 0 : index
    %c0_35 = arith.constant 0 : index
    %111 = vector.load %arg11[%c0_34, %c0_35] : memref<32x128xbf16, #tpu.memory_space<vmem>>, vector<32x128xbf16>
    %cst_36 = arith.constant dense<0.000000e+00> : vector<16x128xf32>
    %112 = tpu.matmul %110, %111, %cst_36 {dimension_numbers = #tpu.dot_dimension_numbers<[1], [0], [0], [1], [0, 0, 1, 1], [], []>} : vector<16x32xbf16>, vector<32x128xbf16>, vector<16x128xf32> -> vector<16x128xf32>
    %c0_37 = arith.constant 0 : index
    %c0_38 = arith.constant 0 : index
    %113 = vector.load %arg12[%c0_37, %c0_38] : memref<1x128xf32, #tpu.memory_space<vmem>>, vector<1x128xf32>
    %114 = vector.broadcast %113 : vector<1x128xf32> to vector<16x128xf32>
    %115 = arith.addf %112, %114 : vector<16x128xf32>
    %116 = arith.mulf %115, %115 : vector<16x128xf32>
    %117 = arith.mulf %115, %116 : vector<16x128xf32>
    %cst_39 = arith.constant 4.471500e-02 : f32
    %118 = vector.broadcast %cst_39 : f32 to vector<16x128xf32>
    %119 = arith.mulf %118, %117 : vector<16x128xf32>
    %120 = arith.addf %115, %119 : vector<16x128xf32>
    %cst_40 = arith.constant 0.797884583 : f32
    %121 = vector.broadcast %cst_40 : f32 to vector<16x128xf32>
    %122 = arith.mulf %121, %120 : vector<16x128xf32>
    %123 = math.tanh %122 : vector<16x128xf32>
    %cst_41 = arith.constant 1.000000e+00 : f32
    %124 = vector.broadcast %cst_41 : f32 to vector<16x128xf32>
    %125 = arith.addf %124, %123 : vector<16x128xf32>
    %cst_42 = arith.constant 5.000000e-01 : f32
    %126 = vector.broadcast %cst_42 : f32 to vector<16x128xf32>
    %127 = arith.mulf %126, %125 : vector<16x128xf32>
    %128 = arith.mulf %115, %127 : vector<16x128xf32>
    %129 = arith.truncf %128 : vector<16x128xf32> to vector<16x128xbf16>
    %c0_43 = arith.constant 0 : index
    %c0_44 = arith.constant 0 : index
    %130 = vector.load %arg13[%c0_43, %c0_44] : memref<128x32xbf16, #tpu.memory_space<vmem>>, vector<128x32xbf16>
    %cst_45 = arith.constant dense<0.000000e+00> : vector<16x32xf32>
    %131 = tpu.matmul %129, %130, %cst_45 {dimension_numbers = #tpu.dot_dimension_numbers<[1], [0], [0], [1], [0, 0, 1, 1], [], []>} : vector<16x128xbf16>, vector<128x32xbf16>, vector<16x32xf32> -> vector<16x32xf32>
    %c0_46 = arith.constant 0 : index
    %c0_47 = arith.constant 0 : index
    %132 = vector.load %arg14[%c0_46, %c0_47] : memref<1x32xf32, #tpu.memory_space<vmem>>, vector<1x32xf32>
    %133 = vector.broadcast %132 : vector<1x32xf32> to vector<16x32xf32>
    %134 = arith.addf %131, %133 : vector<16x32xf32>
    %135 = arith.addf %85, %134 : vector<16x32xf32>
    %136 = arith.truncf %135 : vector<16x32xf32> to vector<16x32xbf16>
    %c0_48 = arith.constant 0 : index
    %c0_49 = arith.constant 0 : index
    %c0_50 = arith.constant 0 : index
    %137 = vector.load %arg15[%c0_48, %c0_49, %c0_50] : memref<1x16x32xbf16, #tpu.memory_space<vmem>>, vector<1x16x32xbf16>
    %138 = vector.shape_cast %137 : vector<1x16x32xbf16> to vector<16x32xbf16>
    %139 = vector.shape_cast %136 : vector<16x32xbf16> to vector<1x16x32xbf16>
    tpu.vector_store %arg15[%c0_48, %c0_49, %c0_50], %139 {strides = array<i32>} : memref<1x16x32xbf16, #tpu.memory_space<vmem>>, vector<1x16x32xbf16>,
    return
  }
  func.func @transform_0(%arg0: i32, %arg1: i32) -> (i32, i32, i32) {
    %c0_i32 = arith.constant 0 : i32
    %c0_i32_0 = arith.constant 0 : i32
    %c0_i32_1 = arith.constant 0 : i32
    return %arg0, %c0_i32, %c0_i32_0 : i32, i32, i32
  }
  func.func @transform_1(%arg0: i32, %arg1: i32) -> (i32, i32) {
    %c0_i32 = arith.constant 0 : i32
    %c0_i32_0 = arith.constant 0 : i32
    %c0_i32_1 = arith.constant 0 : i32
    return %c0_i32, %c0_i32_0 : i32, i32
  }
  func.func @transform_2(%arg0: i32, %arg1: i32) -> (i32, i32) {
    %c0_i32 = arith.constant 0 : i32
    %c0_i32_0 = arith.constant 0 : i32
    %c0_i32_1 = arith.constant 0 : i32
    return %c0_i32, %c0_i32_0 : i32, i32
  }
  func.func @transform_3(%arg0: i32, %arg1: i32) -> (i32, i32) {
    %c0_i32 = arith.constant 0 : i32
    %c0_i32_0 = arith.constant 0 : i32
    %c0_i32_1 = arith.constant 0 : i32
    return %c0_i32, %c0_i32_0 : i32, i32
  }
  func.func @transform_4(%arg0: i32, %arg1: i32) -> (i32, i32) {
    %c0_i32 = arith.constant 0 : i32
    %c0_i32_0 = arith.constant 0 : i32
    %c0_i32_1 = arith.constant 0 : i32
    return %c0_i32, %c0_i32_0 : i32, i32
  }
  func.func @transform_5(%arg0: i32, %arg1: i32) -> (i32, i32) {
    %c0_i32 = arith.constant 0 : i32
    %c0_i32_0 = arith.constant 0 : i32
    %c0_i32_1 = arith.constant 0 : i32
    return %c0_i32, %c0_i32_0 : i32, i32
  }
  func.func @transform_6(%arg0: i32, %arg1: i32) -> (i32, i32) {
    %c0_i32 = arith.constant 0 : i32
    %c0_i32_0 = arith.constant 0 : i32
    %c0_i32_1 = arith.constant 0 : i32
    return %c0_i32, %c0_i32_0 : i32, i32
  }
  func.func @transform_7(%arg0: i32, %arg1: i32) -> (i32, i32) {
    %c0_i32 = arith.constant 0 : i32
    %c0_i32_0 = arith.constant 0 : i32
    %c0_i32_1 = arith.constant 0 : i32
    return %c0_i32, %c0_i32_0 : i32, i32
  }
  func.func @transform_8(%arg0: i32, %arg1: i32) -> (i32, i32) {
    %c0_i32 = arith.constant 0 : i32
    %c0_i32_0 = arith.constant 0 : i32
    %c0_i32_1 = arith.constant 0 : i32
    return %c0_i32, %c0_i32_0 : i32, i32
  }
  func.func @transform_9(%arg0: i32, %arg1: i32) -> (i32, i32) {
    %c0_i32 = arith.constant 0 : i32
    %c0_i32_0 = arith.constant 0 : i32
    %c0_i32_1 = arith.constant 0 : i32
    return %c0_i32, %c0_i32_0 : i32, i32
  }
  func.func @transform_10(%arg0: i32, %arg1: i32) -> (i32, i32) {
    %c0_i32 = arith.constant 0 : i32
    %c0_i32_0 = arith.constant 0 : i32
    %c0_i32_1 = arith.constant 0 : i32
    return %c0_i32, %c0_i32_0 : i32, i32
  }
  func.func @transform_11(%arg0: i32, %arg1: i32) -> (i32, i32) {
    %c0_i32 = arith.constant 0 : i32
    %c0_i32_0 = arith.constant 0 : i32
    %c0_i32_1 = arith.constant 0 : i32
    return %c0_i32, %c0_i32_0 : i32, i32
  }
  func.func @transform_12(%arg0: i32, %arg1: i32) -> (i32, i32) {
    %c0_i32 = arith.constant 0 : i32
    %c0_i32_0 = arith.constant 0 : i32
    %c0_i32_1 = arith.constant 0 : i32
    return %c0_i32, %c0_i32_0 : i32, i32
  }
  func.func @transform_13(%arg0: i32, %arg1: i32) -> (i32, i32, i32) {
    %c0_i32 = arith.constant 0 : i32
    %c0_i32_0 = arith.constant 0 : i32
    return %arg0, %arg1, %c0_i32 : i32, i32, i32
  }
}

module attributes {stable_mosaic.version = 11 : i64} {
  func.func @_head_kernel(%arg0: i32, %arg1: memref<32x32xbf16, #tpu.memory_space<vmem>>, %arg2: memref<1x32xf32, #tpu.memory_space<vmem>>, %arg3: memref<1x32xf32, #tpu.memory_space<vmem>>, %arg4: memref<32x192xbf16, #tpu.memory_space<vmem>>, %arg5: memref<1x192xf32, #tpu.memory_space<vmem>>, %arg6: memref<32x192xf32, #tpu.memory_space<vmem>>) attributes {dimension_semantics = [#tpu.dimension_semantics<parallel>], iteration_bounds = array<i64: 1>, scalar_prefetch = 0 : i64, scratch_operands = 0 : i64, tpu.core_type = #tpu.core_type<tc>, window_params = [{transform_indices = @transform_0, window_bounds = array<i64: 32, 32>}, {pipeline_mode = #tpu.pipeline_mode<synchronous>, transform_indices = @transform_1, window_bounds = array<i64: 1, 32>}, {pipeline_mode = #tpu.pipeline_mode<synchronous>, transform_indices = @transform_2, window_bounds = array<i64: 1, 32>}, {pipeline_mode = #tpu.pipeline_mode<synchronous>, transform_indices = @transform_3, window_bounds = array<i64: 32, 192>}, {pipeline_mode = #tpu.pipeline_mode<synchronous>, transform_indices = @transform_4, window_bounds = array<i64: 1, 192>}, {transform_indices = @transform_5, window_bounds = array<i64: 32, 192>}]} {
    %c0 = arith.constant 0 : index
    %c0_0 = arith.constant 0 : index
    %0 = vector.load %arg1[%c0, %c0_0] : memref<32x32xbf16, #tpu.memory_space<vmem>>, vector<32x32xbf16>
    %1 = arith.extf %0 : vector<32x32xbf16> to vector<32x32xf32>
    %c0_1 = arith.constant 0 : index
    %c0_2 = arith.constant 0 : index
    %2 = vector.load %arg2[%c0_1, %c0_2] : memref<1x32xf32, #tpu.memory_space<vmem>>, vector<1x32xf32>
    %c0_3 = arith.constant 0 : index
    %c0_4 = arith.constant 0 : index
    %3 = vector.load %arg3[%c0_3, %c0_4] : memref<1x32xf32, #tpu.memory_space<vmem>>, vector<1x32xf32>
    %cst = arith.constant dense<0.000000e+00> : vector<32xf32>
    %4 = vector.multi_reduction <add>, %1, %cst [1] : vector<32x32xf32> to vector<32xf32>
    %5 = vector.shape_cast %4 : vector<32xf32> to vector<32x1xf32>
    %cst_5 = arith.constant 3.200000e+01 : f32
    %6 = vector.broadcast %cst_5 : f32 to vector<32x1xf32>
    %7 = arith.divf %5, %6 : vector<32x1xf32>
    %8 = vector.broadcast %7 : vector<32x1xf32> to vector<32x32xf32>
    %9 = arith.subf %1, %8 : vector<32x32xf32>
    %10 = arith.mulf %9, %9 : vector<32x32xf32>
    %cst_6 = arith.constant dense<0.000000e+00> : vector<32xf32>
    %11 = vector.multi_reduction <add>, %10, %cst_6 [1] : vector<32x32xf32> to vector<32xf32>
    %12 = vector.shape_cast %11 : vector<32xf32> to vector<32x1xf32>
    %cst_7 = arith.constant 3.200000e+01 : f32
    %13 = vector.broadcast %cst_7 : f32 to vector<32x1xf32>
    %14 = arith.divf %12, %13 : vector<32x1xf32>
    %15 = vector.broadcast %7 : vector<32x1xf32> to vector<32x32xf32>
    %16 = arith.subf %1, %15 : vector<32x32xf32>
    %cst_8 = arith.constant 9.99999974E-6 : f32
    %17 = vector.broadcast %cst_8 : f32 to vector<32x1xf32>
    %18 = arith.addf %14, %17 : vector<32x1xf32>
    %19 = math.rsqrt %18 : vector<32x1xf32>
    %20 = vector.broadcast %19 : vector<32x1xf32> to vector<32x32xf32>
    %21 = arith.mulf %16, %20 : vector<32x32xf32>
    %22 = vector.broadcast %2 : vector<1x32xf32> to vector<32x32xf32>
    %23 = arith.mulf %21, %22 : vector<32x32xf32>
    %24 = vector.broadcast %3 : vector<1x32xf32> to vector<32x32xf32>
    %25 = arith.addf %23, %24 : vector<32x32xf32>
    %26 = arith.truncf %25 : vector<32x32xf32> to vector<32x32xbf16>
    %c0_9 = arith.constant 0 : index
    %c0_10 = arith.constant 0 : index
    %27 = vector.load %arg4[%c0_9, %c0_10] : memref<32x192xbf16, #tpu.memory_space<vmem>>, vector<32x192xbf16>
    %cst_11 = arith.constant dense<0.000000e+00> : vector<32x192xf32>
    %28 = tpu.matmul %26, %27, %cst_11 {dimension_numbers = #tpu.dot_dimension_numbers<[1], [0], [0], [1], [0, 0, 1, 1], [], []>} : vector<32x32xbf16>, vector<32x192xbf16>, vector<32x192xf32> -> vector<32x192xf32>
    %c0_12 = arith.constant 0 : index
    %c0_13 = arith.constant 0 : index
    %29 = vector.load %arg5[%c0_12, %c0_13] : memref<1x192xf32, #tpu.memory_space<vmem>>, vector<1x192xf32>
    %30 = vector.broadcast %29 : vector<1x192xf32> to vector<32x192xf32>
    %31 = arith.addf %28, %30 : vector<32x192xf32>
    %32 = arith.negf %31 : vector<32x192xf32>
    %33 = math.exp %32 : vector<32x192xf32>
    %cst_14 = arith.constant 1.000000e+00 : f32
    %34 = vector.broadcast %cst_14 : f32 to vector<32x192xf32>
    %35 = arith.addf %34, %33 : vector<32x192xf32>
    %36 = arith.divf %34, %35 : vector<32x192xf32>
    %c0_15 = arith.constant 0 : index
    %c0_16 = arith.constant 0 : index
    %37 = vector.load %arg6[%c0_15, %c0_16] : memref<32x192xf32, #tpu.memory_space<vmem>>, vector<32x192xf32>
    tpu.vector_store %arg6[%c0_15, %c0_16], %36 {strides = array<i32>} : memref<32x192xf32, #tpu.memory_space<vmem>>, vector<32x192xf32>,
    return
  }
  func.func @transform_0(%arg0: i32) -> (i32, i32) {
    %c0_i32 = arith.constant 0 : i32
    %c0_i32_0 = arith.constant 0 : i32
    return %arg0, %c0_i32 : i32, i32
  }
  func.func @transform_1(%arg0: i32) -> (i32, i32) {
    %c0_i32 = arith.constant 0 : i32
    %c0_i32_0 = arith.constant 0 : i32
    %c0_i32_1 = arith.constant 0 : i32
    return %c0_i32, %c0_i32_0 : i32, i32
  }
  func.func @transform_2(%arg0: i32) -> (i32, i32) {
    %c0_i32 = arith.constant 0 : i32
    %c0_i32_0 = arith.constant 0 : i32
    %c0_i32_1 = arith.constant 0 : i32
    return %c0_i32, %c0_i32_0 : i32, i32
  }
  func.func @transform_3(%arg0: i32) -> (i32, i32) {
    %c0_i32 = arith.constant 0 : i32
    %c0_i32_0 = arith.constant 0 : i32
    %c0_i32_1 = arith.constant 0 : i32
    return %c0_i32, %c0_i32_0 : i32, i32
  }
  func.func @transform_4(%arg0: i32) -> (i32, i32) {
    %c0_i32 = arith.constant 0 : i32
    %c0_i32_0 = arith.constant 0 : i32
    %c0_i32_1 = arith.constant 0 : i32
    return %c0_i32, %c0_i32_0 : i32, i32
  }
  func.func @transform_5(%arg0: i32) -> (i32, i32) {
    %c0_i32 = arith.constant 0 : i32
    %c0_i32_0 = arith.constant 0 : i32
    return %arg0, %c0_i32 : i32, i32
  }
}

</mosaic_0001>

<llo_original>
// kernel: maxvit2_forward.4
$region0: #{maxvit2_forward.4}
  #allocation0 [shape = 'u32[]', space=smem, size = 0x4, offset = 0x4, fixed_abs, tag = 'smem constant byte address 0x4 - core index']
  #allocation1 [shape = 'u32[144,128]{1,0:T(1,128)}', space=vmem, size = 0x12000, scoped, tag = 'internal scratch']
  %s0 = inlined_call_operand.vmem [shape: f32[32,512], index: 0, kind: input, shape index: {}]
  %s1 = inlined_call_operand.vmem [shape: bf16[512,512], index: 1, kind: input, shape index: {}]
  %s2 = inlined_call_operand.vmem [shape: f32[1,512], index: 2, kind: input, shape index: {}]
  %s3 = inlined_call_operand.vmem [shape: bf16[512,32], index: 3, kind: input, shape index: {}]
  %s4 = inlined_call_operand.vmem [shape: f32[1,32], index: 4, kind: input, shape index: {}]
  %s5 = inlined_call_operand.vmem [shape: bf16[32,32], index: 5, kind: output, shape index: {}]
  %s6 = sld [smem:[#allocation0]]
  $region30: #{maxvit2_forward.4} parent=0
    _
  %s8 = ssub.s32 1, %s6
  %s9 = scalar_select 0, %s8, %s6
  // Predicated region
  $region2: #{maxvit2_forward.4} parent=0 // pred_check
    _
  $region3: #{maxvit2_forward.4} parent=0 // pred_check_branch
    %11 = sbr.rel (0) target = $region5
  $region4: #{maxvit2_forward.4} parent=0 // pred_region
    _
  $region5: #{maxvit2_forward.4} parent=0 // pred_fallthru
    _
  // Predicated region
  $region6: #{maxvit2_forward.4} parent=0 // pred_check
    _
  $region7: #{maxvit2_forward.4} parent=0 // pred_check_branch
    %13 = sbr.rel (0) target = $region9
  $region8: #{maxvit2_forward.4} parent=0 // pred_region
    _
  $region9: #{maxvit2_forward.4} parent=0 // pred_fallthru
    _
  // Predicated region
  $region10: #{maxvit2_forward.4} parent=0 // pred_check
    _
  $region11: #{maxvit2_forward.4} parent=0 // pred_check_branch
    %15 = sbr.rel (0) target = $region13
  $region12: #{maxvit2_forward.4} parent=0 // pred_region
    _
  $region13: #{maxvit2_forward.4} parent=0 // pred_fallthru
    _
  // Predicated region
  $region14: #{maxvit2_forward.4} parent=0 // pred_check
    _
  $region15: #{maxvit2_forward.4} parent=0 // pred_check_branch
    %17 = sbr.rel (0) target = $region17
  $region16: #{maxvit2_forward.4} parent=0 // pred_region
    _
  $region17: #{maxvit2_forward.4} parent=0 // pred_fallthru
    _
  // Predicated region
  $region18: #{maxvit2_forward.4} parent=0 // pred_check
    _
  $region19: #{maxvit2_forward.4} parent=0 // pred_check_branch
    %19 = sbr.rel (0) target = $region21
  $region20: #{maxvit2_forward.4} parent=0 // pred_region
    _
  $region21: #{maxvit2_forward.4} parent=0 // pred_fallthru
    _
  %v21 = vld [vmem:[%s0] sm:$0xff]
  %v22 = vld [vmem:[%s0 + $0x8] sm:$0xff]
  %v23 = vld [vmem:[%s0 + $0x10] sm:$0xff]
  %v24 = vld [vmem:[%s0 + $0x18] sm:$0xff]
  %v25 = vld [vmem:[%s0 + $0x20] sm:$0xff]
  %v26 = vld [vmem:[%s0 + $0x28] sm:$0xff]
  %v27 = vld [vmem:[%s0 + $0x30] sm:$0xff]
  %v28 = vld [vmem:[%s0 + $0x38] sm:$0xff]
  %v29 = vld [vmem:[%s0 + $0x40] sm:$0xff]
  %v30 = vld [vmem:[%s0 + $0x48] sm:$0xff]
  %v31 = vld [vmem:[%s0 + $0x50] sm:$0xff]
  %v32 = vld [vmem:[%s0 + $0x58] sm:$0xff]
  %v33 = vld [vmem:[%s0 + $0x60] sm:$0xff]
  %v34 = vld [vmem:[%s0 + $0x68] sm:$0xff]
  %v35 = vld [vmem:[%s0 + $0x70] sm:$0xff]
  %v36 = vld [vmem:[%s0 + $0x78] sm:$0xff]
  %v37 = vpack.c.bf16 %v25, %v21
  %v38 = vpack.c.bf16 %v26, %v22
  %v39 = vpack.c.bf16 %v27, %v23
  %v40 = vpack.c.bf16 %v28, %v24
  %v41 = vpack.c.bf16 %v33, %v29
  %v42 = vpack.c.bf16 %v34, %v30
  %v43 = vpack.c.bf16 %v35, %v31
  %v44 = vpack.c.bf16 %v36, %v32
  %v45 = vld [vmem:[%s1] sm:$0xff]
  %v46 = vld [vmem:[%s1 + $0x8] sm:$0xff]
  %v47 = vld [vmem:[%s1 + $0x10] sm:$0xff]
  %v48 = vld [vmem:[%s1 + $0x18] sm:$0xff]
  %v49 = vld [vmem:[%s1 + $0x20] sm:$0xff]
  %v50 = vld [vmem:[%s1 + $0x28] sm:$0xff]
  %v51 = vld [vmem:[%s1 + $0x30] sm:$0xff]
  %v52 = vld [vmem:[%s1 + $0x38] sm:$0xff]
  %v53 = vld [vmem:[%s1 + $0x40] sm:$0xff]
  %v54 = vld [vmem:[%s1 + $0x48] sm:$0xff]
  %v55 = vld [vmem:[%s1 + $0x50] sm:$0xff]
  %v56 = vld [vmem:[%s1 + $0x58] sm:$0xff]
  %v57 = vld [vmem:[%s1 + $0x60] sm:$0xff]
  %v58 = vld [vmem:[%s1 + $0x68] sm:$0xff]
  %v59 = vld [vmem:[%s1 + $0x70] sm:$0xff]
  %v60 = vld [vmem:[%s1 + $0x78] sm:$0xff]
  %v61 = vld [vmem:[%s1 + $0x80] sm:$0xff]
  %v62 = vld [vmem:[%s1 + $0x88] sm:$0xff]
  %v63 = vld [vmem:[%s1 + $0x90] sm:$0xff]
  %v64 = vld [vmem:[%s1 + $0x98] sm:$0xff]
  %v65 = vld [vmem:[%s1 + $0xa0] sm:$0xff]
  %v66 = vld [vmem:[%s1 + $0xa8] sm:$0xff]
  %v67 = vld [vmem:[%s1 + $0xb0] sm:$0xff]
  %v68 = vld [vmem:[%s1 + $0xb8] sm:$0xff]
  %v69 = vld [vmem:[%s1 + $0xc0] sm:$0xff]
  %v70 = vld [vmem:[%s1 + $0xc8] sm:$0xff]
  %v71 = vld [vmem:[%s1 + $0xd0] sm:$0xff]
  %v72 = vld [vmem:[%s1 + $0xd8] sm:$0xff]
  %v73 = vld [vmem:[%s1 + $0xe0] sm:$0xff]
  %v74 = vld [vmem:[%s1 + $0xe8] sm:$0xff]
  %v75 = vld [vmem:[%s1 + $0xf0] sm:$0xff]
  %v76 = vld [vmem:[%s1 + $0xf8] sm:$0xff]
  %v77 = vld [vmem:[%s1 + $0x100] sm:$0xff]
  %v78 = vld [vmem:[%s1 + $0x108] sm:$0xff]
  %v79 = vld [vmem:[%s1 + $0x110] sm:$0xff]
  %v80 = vld [vmem:[%s1 + $0x118] sm:$0xff]
  %v81 = vld [vmem:[%s1 + $0x120] sm:$0xff]
  %v82 = vld [vmem:[%s1 + $0x128] sm:$0xff]
  %v83 = vld [vmem:[%s1 + $0x130] sm:$0xff]
  %v84 = vld [vmem:[%s1 + $0x138] sm:$0xff]
  %v85 = vld [vmem:[%s1 + $0x140] sm:$0xff]
  %v86 = vld [vmem:[%s1 + $0x148] sm:$0xff]
  %v87 = vld [vmem:[%s1 + $0x150] sm:$0xff]
  %v88 = vld [vmem:[%s1 + $0x158] sm:$0xff]
  %v89 = vld [vmem:[%s1 + $0x160] sm:$0xff]
  %v90 = vld [vmem:[%s1 + $0x168] sm:$0xff]
  %v91 = vld [vmem:[%s1 + $0x170] sm:$0xff]
  %v92 = vld [vmem:[%s1 + $0x178] sm:$0xff]
  %v93 = vld [vmem:[%s1 + $0x180] sm:$0xff]
  %v94 = vld [vmem:[%s1 + $0x188] sm:$0xff]
  %v95 = vld [vmem:[%s1 + $0x190] sm:$0xff]
  %v96 = vld [vmem:[%s1 + $0x198] sm:$0xff]
  %v97 = vld [vmem:[%s1 + $0x1a0] sm:$0xff]
  %v98 = vld [vmem:[%s1 + $0x1a8] sm:$0xff]
  %v99 = vld [vmem:[%s1 + $0x1b0] sm:$0xff]
  %v100 = vld [vmem:[%s1 + $0x1b8] sm:$0xff]
  %v101 = vld [vmem:[%s1 + $0x1c0] sm:$0xff]
  %v102 = vld [vmem:[%s1 + $0x1c8] sm:$0xff]
  %v103 = vld [vmem:[%s1 + $0x1d0] sm:$0xff]
  %v104 = vld [vmem:[%s1 + $0x1d8] sm:$0xff]
  %v105 = vld [vmem:[%s1 + $0x1e0] sm:$0xff]
  %v106 = vld [vmem:[%s1 + $0x1e8] sm:$0xff]
  %v107 = vld [vmem:[%s1 + $0x1f0] sm:$0xff]
  %v108 = vld [vmem:[%s1 + $0x1f8] sm:$0xff]
  %v109 = vld [vmem:[%s1 + $0x200] sm:$0xff]
  %v110 = vld [vmem:[%s1 + $0x208] sm:$0xff]
  %v111 = vld [vmem:[%s1 + $0x210] sm:$0xff]
  %v112 = vld [vmem:[%s1 + $0x218] sm:$0xff]
  %v113 = vld [vmem:[%s1 + $0x220] sm:$0xff]
  %v114 = vld [vmem:[%s1 + $0x228] sm:$0xff]
  %v115 = vld [vmem:[%s1 + $0x230] sm:$0xff]
  %v116 = vld [vmem:[%s1 + $0x238] sm:$0xff]
  %v117 = vld [vmem:[%s1 + $0x240] sm:$0xff]
  %v118 = vld [vmem:[%s1 + $0x248] sm:$0xff]
  %v119 = vld [vmem:[%s1 + $0x250] sm:$0xff]
  %v120 = vld [vmem:[%s1 + $0x258] sm:$0xff]
  %v121 = vld [vmem:[%s1 + $0x260] sm:$0xff]
  %v122 = vld [vmem:[%s1 + $0x268] sm:$0xff]
  %v123 = vld [vmem:[%s1 + $0x270] sm:$0xff]
  %v124 = vld [vmem:[%s1 + $0x278] sm:$0xff]
  %v125 = vld [vmem:[%s1 + $0x280] sm:$0xff]
  %v126 = vld [vmem:[%s1 + $0x288] sm:$0xff]
  %v127 = vld [vmem:[%s1 + $0x290] sm:$0xff]
  %v128 = vld [vmem:[%s1 + $0x298] sm:$0xff]
  %v129 = vld [vmem:[%s1 + $0x2a0] sm:$0xff]
  %v130 = vld [vmem:[%s1 + $0x2a8] sm:$0xff]
  %v131 = vld [vmem:[%s1 + $0x2b0] sm:$0xff]
  %v132 = vld [vmem:[%s1 + $0x2b8] sm:$0xff]
  %v133 = vld [vmem:[%s1 + $0x2c0] sm:$0xff]
  %v134 = vld [vmem:[%s1 + $0x2c8] sm:$0xff]
  %v135 = vld [vmem:[%s1 + $0x2d0] sm:$0xff]
  %v136 = vld [vmem:[%s1 + $0x2d8] sm:$0xff]
  %v137 = vld [vmem:[%s1 + $0x2e0] sm:$0xff]
  %v138 = vld [vmem:[%s1 + $0x2e8] sm:$0xff]
  %v139 = vld [vmem:[%s1 + $0x2f0] sm:$0xff]
  %v140 = vld [vmem:[%s1 + $0x2f8] sm:$0xff]
  %v141 = vld [vmem:[%s1 + $0x300] sm:$0xff]
  %v142 = vld [vmem:[%s1 + $0x308] sm:$0xff]
  %v143 = vld [vmem:[%s1 + $0x310] sm:$0xff]
  %v144 = vld [vmem:[%s1 + $0x318] sm:$0xff]
  %v145 = vld [vmem:[%s1 + $0x320] sm:$0xff]
  %v146 = vld [vmem:[%s1 + $0x328] sm:$0xff]
  %v147 = vld [vmem:[%s1 + $0x330] sm:$0xff]
  %v148 = vld [vmem:[%s1 + $0x338] sm:$0xff]
  %v149 = vld [vmem:[%s1 + $0x340] sm:$0xff]
  %v150 = vld [vmem:[%s1 + $0x348] sm:$0xff]
  %v151 = vld [vmem:[%s1 + $0x350] sm:$0xff]
  %v152 = vld [vmem:[%s1 + $0x358] sm:$0xff]
  %v153 = vld [vmem:[%s1 + $0x360] sm:$0xff]
  %v154 = vld [vmem:[%s1 + $0x368] sm:$0xff]
  %v155 = vld [vmem:[%s1 + $0x370] sm:$0xff]
  %v156 = vld [vmem:[%s1 + $0x378] sm:$0xff]
  %v157 = vld [vmem:[%s1 + $0x380] sm:$0xff]
  %v158 = vld [vmem:[%s1 + $0x388] sm:$0xff]
  %v159 = vld [vmem:[%s1 + $0x390] sm:$0xff]
  %v160 = vld [vmem:[%s1 + $0x398] sm:$0xff]
  %v161 = vld [vmem:[%s1 + $0x3a0] sm:$0xff]
  %v162 = vld [vmem:[%s1 + $0x3a8] sm:$0xff]
  %v163 = vld [vmem:[%s1 + $0x3b0] sm:$0xff]
  %v164 = vld [vmem:[%s1 + $0x3b8] sm:$0xff]
  %v165 = vld [vmem:[%s1 + $0x3c0] sm:$0xff]
  %v166 = vld [vmem:[%s1 + $0x3c8] sm:$0xff]
  %v167 = vld [vmem:[%s1 + $0x3d0] sm:$0xff]
  %v168 = vld [vmem:[%s1 + $0x3d8] sm:$0xff]
  %v169 = vld [vmem:[%s1 + $0x3e0] sm:$0xff]
  %v170 = vld [vmem:[%s1 + $0x3e8] sm:$0xff]
  %v171 = vld [vmem:[%s1 + $0x3f0] sm:$0xff]
  %v172 = vld [vmem:[%s1 + $0x3f8] sm:$0xff]
  %v173 = vld [vmem:[%s2] sm:$0xf]
  %v175 = vlaneseq
  %v176 = vshrl.u32 %v175, 7
  %v177 = vsub.s32 0, %v176
  %v178 = vrot.slane %v173, %v177
  %v179 = vlaneseq
  %v180 = vshrl.u32 %v179, 7
  %v181 = vsub.s32 1, %v180
  %v182 = vrot.slane %v173, %v181
  %v183 = vlaneseq
  %v184 = vshrl.u32 %v183, 7
  %v185 = vsub.s32 2, %v184
  %v186 = vrot.slane %v173, %v185
  %v187 = vlaneseq
  %v188 = vshrl.u32 %v187, 7
  %v189 = vsub.s32 3, %v188
  %v190 = vrot.slane %v173, %v189
  %v323 = vunpack.c.l.b16 %v45
  %v324 = vunpack.c.h.b16 %v45
  %v325 = vunpack.c.l.b16 %v46
  %v326 = vunpack.c.h.b16 %v46
  %v327 = vunpack.c.l.b16 %v47
  %v328 = vunpack.c.h.b16 %v47
  %v329 = vunpack.c.l.b16 %v48
  %v330 = vunpack.c.h.b16 %v48
  %v331 = vunpack.c.l.b16 %v49
  %v332 = vunpack.c.h.b16 %v49
  %v333 = vunpack.c.l.b16 %v50
  %v334 = vunpack.c.h.b16 %v50
  %v335 = vunpack.c.l.b16 %v51
  %v336 = vunpack.c.h.b16 %v51
  %v337 = vunpack.c.l.b16 %v52
  %v338 = vunpack.c.h.b16 %v52
  %v339 = vunpack.c.l.b16 %v53
  %v340 = vunpack.c.h.b16 %v53
  %v341 = vunpack.c.l.b16 %v54
  %v342 = vunpack.c.h.b16 %v54
  %v343 = vunpack.c.l.b16 %v55
  %v344 = vunpack.c.h.b16 %v55
  %v345 = vunpack.c.l.b16 %v56
  %v346 = vunpack.c.h.b16 %v56
  %v347 = vunpack.c.l.b16 %v57
  %v348 = vunpack.c.h.b16 %v57
  %v349 = vunpack.c.l.b16 %v58
  %v350 = vunpack.c.h.b16 %v58
  %v351 = vunpack.c.l.b16 %v59
  %v352 = vunpack.c.h.b16 %v59
  %v353 = vunpack.c.l.b16 %v60
  %v354 = vunpack.c.h.b16 %v60
  %v355 = vunpack.c.l.b16 %v61
  %v356 = vunpack.c.h.b16 %v61
  %v357 = vunpack.c.l.b16 %v62
  %v358 = vunpack.c.h.b16 %v62
  %v359 = vunpack.c.l.b16 %v63
  %v360 = vunpack.c.h.b16 %v63
  %v361 = vunpack.c.l.b16 %v64
  %v362 = vunpack.c.h.b16 %v64
  %v363 = vunpack.c.l.b16 %v65
  %v364 = vunpack.c.h.b16 %v65
  %v365 = vunpack.c.l.b16 %v66
  %v366 = vunpack.c.h.b16 %v66
  %v367 = vunpack.c.l.b16 %v67
  %v368 = vunpack.c.h.b16 %v67
  %v369 = vunpack.c.l.b16 %v68
  %v370 = vunpack.c.h.b16 %v68
  %v371 = vunpack.c.l.b16 %v69
  %v372 = vunpack.c.h.b16 %v69
  %v373 = vunpack.c.l.b16 %v70
  %v374 = vunpack.c.h.b16 %v70
  %v375 = vunpack.c.l.b16 %v71
  %v376 = vunpack.c.h.b16 %v71
  %v377 = vunpack.c.l.b16 %v72
  %v378 = vunpack.c.h.b16 %v72
  %v379 = vunpack.c.l.b16 %v73
  %v380 = vunpack.c.h.b16 %v73
  %v381 = vunpack.c.l.b16 %v74
  %v382 = vunpack.c.h.b16 %v74
  %v383 = vunpack.c.l.b16 %v75
  %v384 = vunpack.c.h.b16 %v75
  %v385 = vunpack.c.l.b16 %v76
  %v386 = vunpack.c.h.b16 %v76
  %v387 = vunpack.c.l.b16 %v77
  %v388 = vunpack.c.h.b16 %v77
  %v389 = vunpack.c.l.b16 %v78
  %v390 = vunpack.c.h.b16 %v78
  %v391 = vunpack.c.l.b16 %v79
  %v392 = vunpack.c.h.b16 %v79
  %v393 = vunpack.c.l.b16 %v80
  %v394 = vunpack.c.h.b16 %v80
  %v395 = vunpack.c.l.b16 %v81
  %v396 = vunpack.c.h.b16 %v81
  %v397 = vunpack.c.l.b16 %v82
  %v398 = vunpack.c.h.b16 %v82
  %v399 = vunpack.c.l.b16 %v83
  %v400 = vunpack.c.h.b16 %v83
  %v401 = vunpack.c.l.b16 %v84
  %v402 = vunpack.c.h.b16 %v84
  %v403 = vunpack.c.l.b16 %v85
  %v404 = vunpack.c.h.b16 %v85
  %v405 = vunpack.c.l.b16 %v86
  %v406 = vunpack.c.h.b16 %v86
  %v407 = vunpack.c.l.b16 %v87
  %v408 = vunpack.c.h.b16 %v87
  %v409 = vunpack.c.l.b16 %v88
  %v410 = vunpack.c.h.b16 %v88
  %v411 = vunpack.c.l.b16 %v89
  %v412 = vunpack.c.h.b16 %v89
  %v413 = vunpack.c.l.b16 %v90
  %v414 = vunpack.c.h.b16 %v90
  %v415 = vunpack.c.l.b16 %v91
  %v416 = vunpack.c.h.b16 %v91
  %v417 = vunpack.c.l.b16 %v92
  %v418 = vunpack.c.h.b16 %v92
  %v419 = vunpack.c.l.b16 %v93
  %v420 = vunpack.c.h.b16 %v93
  %v421 = vunpack.c.l.b16 %v94
  %v422 = vunpack.c.h.b16 %v94
  %v423 = vunpack.c.l.b16 %v95
  %v424 = vunpack.c.h.b16 %v95
  %v425 = vunpack.c.l.b16 %v96
  %v426 = vunpack.c.h.b16 %v96
  %v427 = vunpack.c.l.b16 %v97
  %v428 = vunpack.c.h.b16 %v97
  %v429 = vunpack.c.l.b16 %v98
  %v430 = vunpack.c.h.b16 %v98
  %v431 = vunpack.c.l.b16 %v99
  %v432 = vunpack.c.h.b16 %v99
  %v433 = vunpack.c.l.b16 %v100
  %v434 = vunpack.c.h.b16 %v100
  %v435 = vunpack.c.l.b16 %v101
  %v436 = vunpack.c.h.b16 %v101
  %v437 = vunpack.c.l.b16 %v102
  %v438 = vunpack.c.h.b16 %v102
  %v439 = vunpack.c.l.b16 %v103
  %v440 = vunpack.c.h.b16 %v103
  %v441 = vunpack.c.l.b16 %v104
  %v442 = vunpack.c.h.b16 %v104
  %v443 = vunpack.c.l.b16 %v105
  %v444 = vunpack.c.h.b16 %v105
  %v445 = vunpack.c.l.b16 %v106
  %v446 = vunpack.c.h.b16 %v106
  %v447 = vunpack.c.l.b16 %v107
  %v448 = vunpack.c.h.b16 %v107
  %v449 = vunpack.c.l.b16 %v108
  %v450 = vunpack.c.h.b16 %v108
  %v451 = vunpack.c.l.b16 %v109
  %v452 = vunpack.c.h.b16 %v109
  %v453 = vunpack.c.l.b16 %v110
  %v454 = vunpack.c.h.b16 %v110
  %v455 = vunpack.c.l.b16 %v111
  %v456 = vunpack.c.h.b16 %v111
  %v457 = vunpack.c.l.b16 %v112
  %v458 = vunpack.c.h.b16 %v112
  %v459 = vunpack.c.l.b16 %v113
  %v460 = vunpack.c.h.b16 %v113
  %v461 = vunpack.c.l.b16 %v114
  %v462 = vunpack.c.h.b16 %v114
  %v463 = vunpack.c.l.b16 %v115
  %v464 = vunpack.c.h.b16 %v115
  %v465 = vunpack.c.l.b16 %v116
  %v466 = vunpack.c.h.b16 %v116
  %v467 = vunpack.c.l.b16 %v117
  %v468 = vunpack.c.h.b16 %v117
  %v469 = vunpack.c.l.b16 %v118
  %v470 = vunpack.c.h.b16 %v118
  %v471 = vunpack.c.l.b16 %v119
  %v472 = vunpack.c.h.b16 %v119
  %v473 = vunpack.c.l.b16 %v120
  %v474 = vunpack.c.h.b16 %v120
  %v475 = vunpack.c.l.b16 %v121
  %v476 = vunpack.c.h.b16 %v121
  %v477 = vunpack.c.l.b16 %v122
  %v478 = vunpack.c.h.b16 %v122
  %v479 = vunpack.c.l.b16 %v123
  %v480 = vunpack.c.h.b16 %v123
  %v481 = vunpack.c.l.b16 %v124
  %v482 = vunpack.c.h.b16 %v124
  %v483 = vunpack.c.l.b16 %v125
  %v484 = vunpack.c.h.b16 %v125
  %v485 = vunpack.c.l.b16 %v126
  %v486 = vunpack.c.h.b16 %v126
  %v487 = vunpack.c.l.b16 %v127
  %v488 = vunpack.c.h.b16 %v127
  %v489 = vunpack.c.l.b16 %v128
  %v490 = vunpack.c.h.b16 %v128
  %v491 = vunpack.c.l.b16 %v129
  %v492 = vunpack.c.h.b16 %v129
  %v493 = vunpack.c.l.b16 %v130
  %v494 = vunpack.c.h.b16 %v130
  %v495 = vunpack.c.l.b16 %v131
  %v496 = vunpack.c.h.b16 %v131
  %v497 = vunpack.c.l.b16 %v132
  %v498 = vunpack.c.h.b16 %v132
  %v499 = vunpack.c.l.b16 %v133
  %v500 = vunpack.c.h.b16 %v133
  %v501 = vunpack.c.l.b16 %v134
  %v502 = vunpack.c.h.b16 %v134
  %v503 = vunpack.c.l.b16 %v135
  %v504 = vunpack.c.h.b16 %v135
  %v505 = vunpack.c.l.b16 %v136
  %v506 = vunpack.c.h.b16 %v136
  %v507 = vunpack.c.l.b16 %v137
  %v508 = vunpack.c.h.b16 %v137
  %v509 = vunpack.c.l.b16 %v138
  %v510 = vunpack.c.h.b16 %v138
  %v511 = vunpack.c.l.b16 %v139
  %v512 = vunpack.c.h.b16 %v139
  %v513 = vunpack.c.l.b16 %v140
  %v514 = vunpack.c.h.b16 %v140
  %v515 = vunpack.c.l.b16 %v141
  %v516 = vunpack.c.h.b16 %v141
  %v517 = vunpack.c.l.b16 %v142
  %v518 = vunpack.c.h.b16 %v142
  %v519 = vunpack.c.l.b16 %v143
  %v520 = vunpack.c.h.b16 %v143
  %v521 = vunpack.c.l.b16 %v144
  %v522 = vunpack.c.h.b16 %v144
  %v523 = vunpack.c.l.b16 %v145
  %v524 = vunpack.c.h.b16 %v145
  %v525 = vunpack.c.l.b16 %v146
  %v526 = vunpack.c.h.b16 %v146
  %v527 = vunpack.c.l.b16 %v147
  %v528 = vunpack.c.h.b16 %v147
  %v529 = vunpack.c.l.b16 %v148
  %v530 = vunpack.c.h.b16 %v148
  %v531 = vunpack.c.l.b16 %v149
  %v532 = vunpack.c.h.b16 %v149
  %v533 = vunpack.c.l.b16 %v150
  %v534 = vunpack.c.h.b16 %v150
  %v535 = vunpack.c.l.b16 %v151
  %v536 = vunpack.c.h.b16 %v151
  %v537 = vunpack.c.l.b16 %v152
  %v538 = vunpack.c.h.b16 %v152
  %v539 = vunpack.c.l.b16 %v153
  %v540 = vunpack.c.h.b16 %v153
  %v541 = vunpack.c.l.b16 %v154
  %v542 = vunpack.c.h.b16 %v154
  %v543 = vunpack.c.l.b16 %v155
  %v544 = vunpack.c.h.b16 %v155
  %v545 = vunpack.c.l.b16 %v156
  %v546 = vunpack.c.h.b16 %v156
  %v547 = vunpack.c.l.b16 %v157
  %v548 = vunpack.c.h.b16 %v157
  %v549 = vunpack.c.l.b16 %v158
  %v550 = vunpack.c.h.b16 %v158
  %v551 = vunpack.c.l.b16 %v159
  %v552 = vunpack.c.h.b16 %v159
  %v553 = vunpack.c.l.b16 %v160
  %v554 = vunpack.c.h.b16 %v160
  %v555 = vunpack.c.l.b16 %v161
  %v556 = vunpack.c.h.b16 %v161
  %v557 = vunpack.c.l.b16 %v162
  %v558 = vunpack.c.h.b16 %v162
  %v559 = vunpack.c.l.b16 %v163
  %v560 = vunpack.c.h.b16 %v163
  %v561 = vunpack.c.l.b16 %v164
  %v562 = vunpack.c.h.b16 %v164
  %v563 = vunpack.c.l.b16 %v165
  %v564 = vunpack.c.h.b16 %v165
  %v565 = vunpack.c.l.b16 %v166
  %v566 = vunpack.c.h.b16 %v166
  %v567 = vunpack.c.l.b16 %v167
  %v568 = vunpack.c.h.b16 %v167
  %v569 = vunpack.c.l.b16 %v168
  %v570 = vunpack.c.h.b16 %v168
  %v571 = vunpack.c.l.b16 %v169
  %v572 = vunpack.c.h.b16 %v169
  %v573 = vunpack.c.l.b16 %v170
  %v574 = vunpack.c.h.b16 %v170
  %v575 = vunpack.c.l.b16 %v171
  %v576 = vunpack.c.h.b16 %v171
  %v577 = vunpack.c.l.b16 %v172
  %v578 = vunpack.c.h.b16 %v172
  %v579 = vpack.c.b16 %v327, %v323
  %v580 = vpack.c.b16 %v328, %v324
  %v581 = vpack.c.b16 %v329, %v325
  %v582 = vpack.c.b16 %v330, %v326
  %v583 = vpack.c.b16 %v335, %v331
  %v584 = vpack.c.b16 %v336, %v332
  %v585 = vpack.c.b16 %v337, %v333
  %v586 = vpack.c.b16 %v338, %v334
  %v587 = vpack.c.b16 %v343, %v339
  %v588 = vpack.c.b16 %v344, %v340
  %v589 = vpack.c.b16 %v345, %v341
  %v590 = vpack.c.b16 %v346, %v342
  %v591 = vpack.c.b16 %v351, %v347
  %v592 = vpack.c.b16 %v352, %v348
  %v593 = vpack.c.b16 %v353, %v349
  %v594 = vpack.c.b16 %v354, %v350
  %v595 = vpack.c.b16 %v359, %v355
  %v596 = vpack.c.b16 %v360, %v356
  %v597 = vpack.c.b16 %v361, %v357
  %v598 = vpack.c.b16 %v362, %v358
  %v599 = vpack.c.b16 %v367, %v363
  %v600 = vpack.c.b16 %v368, %v364
  %v601 = vpack.c.b16 %v369, %v365
  %v602 = vpack.c.b16 %v370, %v366
  %v603 = vpack.c.b16 %v375, %v371
  %v604 = vpack.c.b16 %v376, %v372
  %v605 = vpack.c.b16 %v377, %v373
  %v606 = vpack.c.b16 %v378, %v374
  %v607 = vpack.c.b16 %v383, %v379
  %v608 = vpack.c.b16 %v384, %v380
  %v609 = vpack.c.b16 %v385, %v381
  %v610 = vpack.c.b16 %v386, %v382
  %v611 = vpack.c.b16 %v391, %v387
  %v612 = vpack.c.b16 %v392, %v388
  %v613 = vpack.c.b16 %v393, %v389
  %v614 = vpack.c.b16 %v394, %v390
  %v615 = vpack.c.b16 %v399, %v395
  %v616 = vpack.c.b16 %v400, %v396
  %v617 = vpack.c.b16 %v401, %v397
  %v618 = vpack.c.b16 %v402, %v398
  %v619 = vpack.c.b16 %v407, %v403
  %v620 = vpack.c.b16 %v408, %v404
  %v621 = vpack.c.b16 %v409, %v405
  %v622 = vpack.c.b16 %v410, %v406
  %v623 = vpack.c.b16 %v415, %v411
  %v624 = vpack.c.b16 %v416, %v412
  %v625 = vpack.c.b16 %v417, %v413
  %v626 = vpack.c.b16 %v418, %v414
  %v627 = vpack.c.b16 %v423, %v419
  %v628 = vpack.c.b16 %v424, %v420
  %v629 = vpack.c.b16 %v425, %v421
  %v630 = vpack.c.b16 %v426, %v422
  %v631 = vpack.c.b16 %v431, %v427
  %v632 = vpack.c.b16 %v432, %v428
  %v633 = vpack.c.b16 %v433, %v429
  %v634 = vpack.c.b16 %v434, %v430
  %v635 = vpack.c.b16 %v439, %v435
  %v636 = vpack.c.b16 %v440, %v436
  %v637 = vpack.c.b16 %v441, %v437
  %v638 = vpack.c.b16 %v442, %v438
  %v639 = vpack.c.b16 %v447, %v443
  %v640 = vpack.c.b16 %v448, %v444
  %v641 = vpack.c.b16 %v449, %v445
  %v642 = vpack.c.b16 %v450, %v446
  %v643 = vpack.c.b16 %v455, %v451
  %v644 = vpack.c.b16 %v456, %v452
  %v645 = vpack.c.b16 %v457, %v453
  %v646 = vpack.c.b16 %v458, %v454
  %v647 = vpack.c.b16 %v463, %v459
  %v648 = vpack.c.b16 %v464, %v460
  %v649 = vpack.c.b16 %v465, %v461
  %v650 = vpack.c.b16 %v466, %v462
  %v651 = vpack.c.b16 %v471, %v467
  %v652 = vpack.c.b16 %v472, %v468
  %v653 = vpack.c.b16 %v473, %v469
  %v654 = vpack.c.b16 %v474, %v470
  %v655 = vpack.c.b16 %v479, %v475
  %v656 = vpack.c.b16 %v480, %v476
  %v657 = vpack.c.b16 %v481, %v477
  %v658 = vpack.c.b16 %v482, %v478
  %v659 = vpack.c.b16 %v487, %v483
  %v660 = vpack.c.b16 %v488, %v484
  %v661 = vpack.c.b16 %v489, %v485
  %v662 = vpack.c.b16 %v490, %v486
  %v663 = vpack.c.b16 %v495, %v491
  %v664 = vpack.c.b16 %v496, %v492
  %v665 = vpack.c.b16 %v497, %v493
  %v666 = vpack.c.b16 %v498, %v494
  %v667 = vpack.c.b16 %v503, %v499
  %v668 = vpack.c.b16 %v504, %v500
  %v669 = vpack.c.b16 %v505, %v501
  %v670 = vpack.c.b16 %v506, %v502
  %v671 = vpack.c.b16 %v511, %v507
  %v672 = vpack.c.b16 %v512, %v508
  %v673 = vpack.c.b16 %v513, %v509
  %v674 = vpack.c.b16 %v514, %v510
  %v675 = vpack.c.b16 %v519, %v515
  %v676 = vpack.c.b16 %v520, %v516
  %v677 = vpack.c.b16 %v521, %v517
  %v678 = vpack.c.b16 %v522, %v518
  %v679 = vpack.c.b16 %v527, %v523
  %v680 = vpack.c.b16 %v528, %v524
  %v681 = vpack.c.b16 %v529, %v525
  %v682 = vpack.c.b16 %v530, %v526
  %v683 = vpack.c.b16 %v535, %v531
  %v684 = vpack.c.b16 %v536, %v532
  %v685 = vpack.c.b16 %v537, %v533
  %v686 = vpack.c.b16 %v538, %v534
  %v687 = vpack.c.b16 %v543, %v539
  %v688 = vpack.c.b16 %v544, %v540
  %v689 = vpack.c.b16 %v545, %v541
  %v690 = vpack.c.b16 %v546, %v542
  %v691 = vpack.c.b16 %v551, %v547
  %v692 = vpack.c.b16 %v552, %v548
  %v693 = vpack.c.b16 %v553, %v549
  %v694 = vpack.c.b16 %v554, %v550
  %v695 = vpack.c.b16 %v559, %v555
  %v696 = vpack.c.b16 %v560, %v556
  %v697 = vpack.c.b16 %v561, %v557
  %v698 = vpack.c.b16 %v562, %v558
  %v699 = vpack.c.b16 %v567, %v563
  %v700 = vpack.c.b16 %v568, %v564
  %v701 = vpack.c.b16 %v569, %v565
  %v702 = vpack.c.b16 %v570, %v566
  %v703 = vpack.c.b16 %v575, %v571
  %v704 = vpack.c.b16 %v576, %v572
  %v705 = vpack.c.b16 %v577, %v573
  %v706 = vpack.c.b16 %v578, %v574
  %835 = vmatprep.subr.bf16.mxu0 %v608
  %836 = vmatpush1.bf16.msra.mxu0 %v607
  %837 = vmatprep.subr.bf16.mxu0 %v604
  %838 = vmatpush1.bf16.msra.mxu0 %v603
  %839 = vmatprep.subr.bf16.mxu0 %v600
  %840 = vmatpush1.bf16.msra.mxu0 %v599
  %841 = vmatprep.subr.bf16.mxu0 %v596
  %842 = vmatpush1.bf16.msra.mxu0 %v595
  %843 = vmatprep.subr.bf16.mxu0 %v592
  %844 = vmatpush1.bf16.msra.mxu0 %v591
  %845 = vmatprep.subr.bf16.mxu0 %v588
  %846 = vmatpush1.bf16.msra.mxu0 %v587
  %847 = vmatprep.subr.bf16.mxu0 %v584
  %848 = vmatpush1.bf16.msra.mxu0 %v583
  %849 = vmatprep.subr.bf16.mxu0 %v580
  %850 = vmatpush1.bf16.msra.mxu0 %v579
  %851 = vmatprep.subr.bf16.mxu0 %v640
  %852 = vmatpush2.bf16.msra.mxu0 %v639
  %853 = vmatprep.subr.bf16.mxu0 %v636
  %854 = vmatpush2.bf16.msra.mxu0 %v635
  %855 = vmatprep.subr.bf16.mxu0 %v632
  %856 = vmatpush2.bf16.msra.mxu0 %v631
  %857 = vmatprep.subr.bf16.mxu0 %v628
  %858 = vmatpush2.bf16.msra.mxu0 %v627
  %859 = vmatprep.subr.bf16.mxu0 %v624
  %860 = vmatpush2.bf16.msra.mxu0 %v623
  %861 = vmatprep.subr.bf16.mxu0 %v620
  %862 = vmatpush2.bf16.msra.mxu0 %v619
  %863 = vmatprep.subr.bf16.mxu0 %v616
  %864 = vmatpush2.bf16.msra.mxu0 %v615
  %865 = vmatprep.subr.bf16.mxu0 %v612
  %866 = vmatpush2.bf16.msra.mxu0 %v611
  %867 = vmatprep.mubr.bf16.mxu0 %v38
  %868 = vmatmul.mubr.bf16.gmra.mxu0 %v37
  %v869 = vpop.f32.mrf.mxu0
  %v870 = vadd.f32 %v178, %v869
  %v871 = vpop.f32.mrf.mxu0
  %v872 = vadd.f32 %v182, %v871
  %v873 = vpop.f32.mrf.mxu0
  %v874 = vadd.f32 %v178, %v873
  %v875 = vpop.f32.mrf.mxu0
  %v876 = vadd.f32 %v182, %v875
  %877 = vmatprep.mubr.bf16.mxu0 %v42
  %878 = vmatmul.mubr.bf16.gmra.mxu0 %v41
  %v879 = vpop.f32.mrf.mxu0
  %v880 = vadd.f32 %v178, %v879
  %v881 = vpop.f32.mrf.mxu0
  %v882 = vadd.f32 %v182, %v881
  %v883 = vpop.f32.mrf.mxu0
  %v884 = vadd.f32 %v178, %v883
  %v885 = vpop.f32.mrf.mxu0
  %v886 = vadd.f32 %v182, %v885
  %887 = vdwg.mxu0
  %888 = vmatprep.subr.bf16.mxu0 %v672
  %889 = vmatpush1.bf16.msra.mxu0 %v671
  %890 = vmatprep.subr.bf16.mxu0 %v668
  %891 = vmatpush1.bf16.msra.mxu0 %v667
  %892 = vmatprep.subr.bf16.mxu0 %v664
  %893 = vmatpush1.bf16.msra.mxu0 %v663
  %894 = vmatprep.subr.bf16.mxu0 %v660
  %895 = vmatpush1.bf16.msra.mxu0 %v659
  %896 = vmatprep.subr.bf16.mxu0 %v656
  %897 = vmatpush1.bf16.msra.mxu0 %v655
  %898 = vmatprep.subr.bf16.mxu0 %v652
  %899 = vmatpush1.bf16.msra.mxu0 %v651
  %900 = vmatprep.subr.bf16.mxu0 %v648
  %901 = vmatpush1.bf16.msra.mxu0 %v647
  %902 = vmatprep.subr.bf16.mxu0 %v644
  %903 = vmatpush1.bf16.msra.mxu0 %v643
  %904 = vmatprep.subr.bf16.mxu0 %v704
  %905 = vmatpush2.bf16.msra.mxu0 %v703
  %906 = vmatprep.subr.bf16.mxu0 %v700
  %907 = vmatpush2.bf16.msra.mxu0 %v699
  %908 = vmatprep.subr.bf16.mxu0 %v696
  %909 = vmatpush2.bf16.msra.mxu0 %v695
  %910 = vmatprep.subr.bf16.mxu0 %v692
  %911 = vmatpush2.bf16.msra.mxu0 %v691
  %912 = vmatprep.subr.bf16.mxu0 %v688
  %913 = vmatpush2.bf16.msra.mxu0 %v687
  %914 = vmatprep.subr.bf16.mxu0 %v684
  %915 = vmatpush2.bf16.msra.mxu0 %v683
  %916 = vmatprep.subr.bf16.mxu0 %v680
  %917 = vmatpush2.bf16.msra.mxu0 %v679
  %918 = vmatprep.subr.bf16.mxu0 %v676
  %919 = vmatpush2.bf16.msra.mxu0 %v675
  %920 = vmatprep.mubr.bf16.mxu0 %v40
  %921 = vmatmul.mubr.bf16.gmra.mxu0 %v39
  %v922 = vpop.f32.mrf.mxu0
  %v923 = vadd.f32 %v870, %v922
  %v924 = vpop.f32.mrf.mxu0
  %v925 = vadd.f32 %v872, %v924
  %v926 = vpop.f32.mrf.mxu0
  %v927 = vadd.f32 %v874, %v926
  %v928 = vpop.f32.mrf.mxu0
  %v929 = vadd.f32 %v876, %v928
  %930 = vmatprep.mubr.bf16.mxu0 %v44
  %931 = vmatmul.mubr.bf16.gmra.mxu0 %v43
  %v932 = vpop.f32.mrf.mxu0
  %v933 = vadd.f32 %v880, %v932
  %v934 = vpop.f32.mrf.mxu0
  %v935 = vadd.f32 %v882, %v934
  %v936 = vpop.f32.mrf.mxu0
  %v937 = vadd.f32 %v884, %v936
  %v938 = vpop.f32.mrf.mxu0
  %v939 = vadd.f32 %v886, %v938
  %940 = vdwg.mxu0
  %941 = vmatprep.subr.bf16.mxu0 %v610
  %942 = vmatpush1.bf16.msra.mxu0 %v609
  %943 = vmatprep.subr.bf16.mxu0 %v606
  %944 = vmatpush1.bf16.msra.mxu0 %v605
  %945 = vmatprep.subr.bf16.mxu0 %v602
  %946 = vmatpush1.bf16.msra.mxu0 %v601
  %947 = vmatprep.subr.bf16.mxu0 %v598
  %948 = vmatpush1.bf16.msra.mxu0 %v597
  %949 = vmatprep.subr.bf16.mxu0 %v594
  %950 = vmatpush1.bf16.msra.mxu0 %v593
  %951 = vmatprep.subr.bf16.mxu0 %v590
  %952 = vmatpush1.bf16.msra.mxu0 %v589
  %953 = vmatprep.subr.bf16.mxu0 %v586
  %954 = vmatpush1.bf16.msra.mxu0 %v585
  %955 = vmatprep.subr.bf16.mxu0 %v582
  %956 = vmatpush1.bf16.msra.mxu0 %v581
  %957 = vmatprep.subr.bf16.mxu0 %v642
  %958 = vmatpush2.bf16.msra.mxu0 %v641
  %959 = vmatprep.subr.bf16.mxu0 %v638
  %960 = vmatpush2.bf16.msra.mxu0 %v637
  %961 = vmatprep.subr.bf16.mxu0 %v634
  %962 = vmatpush2.bf16.msra.mxu0 %v633
  %963 = vmatprep.subr.bf16.mxu0 %v630
  %964 = vmatpush2.bf16.msra.mxu0 %v629
  %965 = vmatprep.subr.bf16.mxu0 %v626
  %966 = vmatpush2.bf16.msra.mxu0 %v625
  %967 = vmatprep.subr.bf16.mxu0 %v622
  %968 = vmatpush2.bf16.msra.mxu0 %v621
  %969 = vmatprep.subr.bf16.mxu0 %v618
  %970 = vmatpush2.bf16.msra.mxu0 %v617
  %971 = vmatprep.subr.bf16.mxu0 %v614
  %972 = vmatpush2.bf16.msra.mxu0 %v613
  %973 = vmatprep.mubr.bf16.mxu0 %v38
  %974 = vmatmul.mubr.bf16.gmra.mxu0 %v37
  %v975 = vpop.f32.mrf.mxu0
  %v976 = vadd.f32 %v186, %v975
  %v977 = vpop.f32.mrf.mxu0
  %v978 = vadd.f32 %v190, %v977
  %v979 = vpop.f32.mrf.mxu0
  %v980 = vadd.f32 %v186, %v979
  %v981 = vpop.f32.mrf.mxu0
  %v982 = vadd.f32 %v190, %v981
  %983 = vmatprep.mubr.bf16.mxu0 %v42
  %984 = vmatmul.mubr.bf16.gmra.mxu0 %v41
  %v985 = vpop.f32.mrf.mxu0
  %v986 = vadd.f32 %v186, %v985
  %v987 = vpop.f32.mrf.mxu0
  %v988 = vadd.f32 %v190, %v987
  %v989 = vpop.f32.mrf.mxu0
  %v990 = vadd.f32 %v186, %v989
  %v991 = vpop.f32.mrf.mxu0
  %v992 = vadd.f32 %v190, %v991
  %993 = vdwg.mxu0
  %994 = vmatprep.subr.bf16.mxu0 %v674
  %995 = vmatpush1.bf16.msra.mxu0 %v673
  %996 = vmatprep.subr.bf16.mxu0 %v670
  %997 = vmatpush1.bf16.msra.mxu0 %v669
  %998 = vmatprep.subr.bf16.mxu0 %v666
  %999 = vmatpush1.bf16.msra.mxu0 %v665
  %1000 = vmatprep.subr.bf16.mxu0 %v662
  %1001 = vmatpush1.bf16.msra.mxu0 %v661
  %1002 = vmatprep.subr.bf16.mxu0 %v658
  %1003 = vmatpush1.bf16.msra.mxu0 %v657
  %1004 = vmatprep.subr.bf16.mxu0 %v654
  %1005 = vmatpush1.bf16.msra.mxu0 %v653
  %1006 = vmatprep.subr.bf16.mxu0 %v650
  %1007 = vmatpush1.bf16.msra.mxu0 %v649
  %1008 = vmatprep.subr.bf16.mxu0 %v646
  %1009 = vmatpush1.bf16.msra.mxu0 %v645
  %1010 = vmatprep.subr.bf16.mxu0 %v706
  %1011 = vmatpush2.bf16.msra.mxu0 %v705
  %1012 = vmatprep.subr.bf16.mxu0 %v702
  %1013 = vmatpush2.bf16.msra.mxu0 %v701
  %1014 = vmatprep.subr.bf16.mxu0 %v698
  %1015 = vmatpush2.bf16.msra.mxu0 %v697
  %1016 = vmatprep.subr.bf16.mxu0 %v694
  %1017 = vmatpush2.bf16.msra.mxu0 %v693
  %1018 = vmatprep.subr.bf16.mxu0 %v690
  %1019 = vmatpush2.bf16.msra.mxu0 %v689
  %1020 = vmatprep.subr.bf16.mxu0 %v686
  %1021 = vmatpush2.bf16.msra.mxu0 %v685
  %1022 = vmatprep.subr.bf16.mxu0 %v682
  %1023 = vmatpush2.bf16.msra.mxu0 %v681
  %1024 = vmatprep.subr.bf16.mxu0 %v678
  %1025 = vmatpush2.bf16.msra.mxu0 %v677
  %1026 = vmatprep.mubr.bf16.mxu0 %v40
  %1027 = vmatmul.mubr.bf16.gmra.mxu0 %v39
  %v1028 = vpop.f32.mrf.mxu0
  %v1029 = vadd.f32 %v976, %v1028
  %v1030 = vpop.f32.mrf.mxu0
  %v1031 = vadd.f32 %v978, %v1030
  %v1032 = vpop.f32.mrf.mxu0
  %v1033 = vadd.f32 %v980, %v1032
  %v1034 = vpop.f32.mrf.mxu0
  %v1035 = vadd.f32 %v982, %v1034
  %1036 = vmatprep.mubr.bf16.mxu0 %v44
  %1037 = vmatmul.mubr.bf16.gmra.mxu0 %v43
  %v1038 = vpop.f32.mrf.mxu0
  %v1039 = vadd.f32 %v986, %v1038
  %v1040 = vpop.f32.mrf.mxu0
  %v1041 = vadd.f32 %v988, %v1040
  %v1042 = vpop.f32.mrf.mxu0
  %v1043 = vadd.f32 %v990, %v1042
  %v1044 = vpop.f32.mrf.mxu0
  %v1045 = vadd.f32 %v992, %v1044
  %1046 = vdwg.mxu0
  %v1047 = vmax.f32 %v923, 0.0
  %v1048 = vmax.f32 %v925, 0.0
  %v1049 = vmax.f32 %v1029, 0.0
  %v1050 = vmax.f32 %v1031, 0.0
  %v1051 = vmax.f32 %v927, 0.0
  %v1052 = vmax.f32 %v929, 0.0
  %v1053 = vmax.f32 %v1033, 0.0
  %v1054 = vmax.f32 %v1035, 0.0
  %v1055 = vmax.f32 %v933, 0.0
  %v1056 = vmax.f32 %v935, 0.0
  %v1057 = vmax.f32 %v1039, 0.0
  %v1058 = vmax.f32 %v1041, 0.0
  %v1059 = vmax.f32 %v937, 0.0
  %v1060 = vmax.f32 %v939, 0.0
  %v1061 = vmax.f32 %v1043, 0.0
  %v1062 = vmax.f32 %v1045, 0.0
  %v1063 = vpack.c.bf16 %v1051, %v1047
  %v1064 = vpack.c.bf16 %v1052, %v1048
  %v1065 = vpack.c.bf16 %v1053, %v1049
  %v1066 = vpack.c.bf16 %v1054, %v1050
  %v1067 = vpack.c.bf16 %v1059, %v1055
  %v1068 = vpack.c.bf16 %v1060, %v1056
  %v1069 = vpack.c.bf16 %v1061, %v1057
  %v1070 = vpack.c.bf16 %v1062, %v1058
  %v1071 = vld [vmem:[%s3] sm:$0xf]
  %v1072 = vld [vmem:[%s3 + $0x4] sm:$0xf]
  %v1073 = vld [vmem:[%s3 + $0x8] sm:$0xf]
  %v1074 = vld [vmem:[%s3 + $0xc] sm:$0xf]
  %v1075 = vld [vmem:[%s3 + $0x10] sm:$0xf]
  %v1076 = vld [vmem:[%s3 + $0x14] sm:$0xf]
  %v1077 = vld [vmem:[%s3 + $0x18] sm:$0xf]
  %v1078 = vld [vmem:[%s3 + $0x1c] sm:$0xf]
  %v1079 = vld [vmem:[%s3 + $0x20] sm:$0xf]
  %v1080 = vld [vmem:[%s3 + $0x24] sm:$0xf]
  %v1081 = vld [vmem:[%s3 + $0x28] sm:$0xf]
  %v1082 = vld [vmem:[%s3 + $0x2c] sm:$0xf]
  %v1083 = vld [vmem:[%s3 + $0x30] sm:$0xf]
  %v1084 = vld [vmem:[%s3 + $0x34] sm:$0xf]
  %v1085 = vld [vmem:[%s3 + $0x38] sm:$0xf]
  %v1086 = vld [vmem:[%s3 + $0x3c] sm:$0xf]
  %v1087 = vld [vmem:[%s3 + $0x40] sm:$0xf]
  %v1088 = vld [vmem:[%s3 + $0x44] sm:$0xf]
  %v1089 = vld [vmem:[%s3 + $0x48] sm:$0xf]
  %v1090 = vld [vmem:[%s3 + $0x4c] sm:$0xf]
  %v1091 = vld [vmem:[%s3 + $0x50] sm:$0xf]
  %v1092 = vld [vmem:[%s3 + $0x54] sm:$0xf]
  %v1093 = vld [vmem:[%s3 + $0x58] sm:$0xf]
  %v1094 = vld [vmem:[%s3 + $0x5c] sm:$0xf]
  %v1095 = vld [vmem:[%s3 + $0x60] sm:$0xf]
  %v1096 = vld [vmem:[%s3 + $0x64] sm:$0xf]
  %v1097 = vld [vmem:[%s3 + $0x68] sm:$0xf]
  %v1098 = vld [vmem:[%s3 + $0x6c] sm:$0xf]
  %v1099 = vld [vmem:[%s3 + $0x70] sm:$0xf]
  %v1100 = vld [vmem:[%s3 + $0x74] sm:$0xf]
  %v1101 = vld [vmem:[%s3 + $0x78] sm:$0xf]
  %v1102 = vld [vmem:[%s3 + $0x7c] sm:$0xf]
  %v1103 = vld [vmem:[%s3 + $0x80] sm:$0xf]
  %v1104 = vld [vmem:[%s3 + $0x84] sm:$0xf]
  %v1105 = vld [vmem:[%s3 + $0x88] sm:$0xf]
  %v1106 = vld [vmem:[%s3 + $0x8c] sm:$0xf]
  %v1107 = vld [vmem:[%s3 + $0x90] sm:$0xf]
  %v1108 = vld [vmem:[%s3 + $0x94] sm:$0xf]
  %v1109 = vld [vmem:[%s3 + $0x98] sm:$0xf]
  %v1110 = vld [vmem:[%s3 + $0x9c] sm:$0xf]
  %v1111 = vld [vmem:[%s3 + $0xa0] sm:$0xf]
  %v1112 = vld [vmem:[%s3 + $0xa4] sm:$0xf]
  %v1113 = vld [vmem:[%s3 + $0xa8] sm:$0xf]
  %v1114 = vld [vmem:[%s3 + $0xac] sm:$0xf]
  %v1115 = vld [vmem:[%s3 + $0xb0] sm:$0xf]
  %v1116 = vld [vmem:[%s3 + $0xb4] sm:$0xf]
  %v1117 = vld [vmem:[%s3 + $0xb8] sm:$0xf]
  %v1118 = vld [vmem:[%s3 + $0xbc] sm:$0xf]
  %v1119 = vld [vmem:[%s3 + $0xc0] sm:$0xf]
  %v1120 = vld [vmem:[%s3 + $0xc4] sm:$0xf]
  %v1121 = vld [vmem:[%s3 + $0xc8] sm:$0xf]
  %v1122 = vld [vmem:[%s3 + $0xcc] sm:$0xf]
  %v1123 = vld [vmem:[%s3 + $0xd0] sm:$0xf]
  %v1124 = vld [vmem:[%s3 + $0xd4] sm:$0xf]
  %v1125 = vld [vmem:[%s3 + $0xd8] sm:$0xf]
  %v1126 = vld [vmem:[%s3 + $0xdc] sm:$0xf]
  %v1127 = vld [vmem:[%s3 + $0xe0] sm:$0xf]
  %v1128 = vld [vmem:[%s3 + $0xe4] sm:$0xf]
  %v1129 = vld [vmem:[%s3 + $0xe8] sm:$0xf]
  %v1130 = vld [vmem:[%s3 + $0xec] sm:$0xf]
  %v1131 = vld [vmem:[%s3 + $0xf0] sm:$0xf]
  %v1132 = vld [vmem:[%s3 + $0xf4] sm:$0xf]
  %v1133 = vld [vmem:[%s3 + $0xf8] sm:$0xf]
  %v1134 = vld [vmem:[%s3 + $0xfc] sm:$0xf]
  %v1135 = vld [vmem:[%s4] sm:$0x1]
  %v1137 = vlaneseq
  %v1138 = vshrl.u32 %v1137, 7
  %v1139 = vsub.s32 0, %v1138
  %v1140 = vrot.slane %v1135, %v1139
  %v1206 = vunpack.c.l.b16 %v1071
  %v1207 = vunpack.c.l.b16 %v1072
  %v1208 = vunpack.c.l.b16 %v1073
  %v1209 = vunpack.c.l.b16 %v1074
  %v1210 = vunpack.c.l.b16 %v1075
  %v1211 = vunpack.c.l.b16 %v1076
  %v1212 = vunpack.c.l.b16 %v1077
  %v1213 = vunpack.c.l.b16 %v1078
  %v1214 = vunpack.c.l.b16 %v1079
  %v1215 = vunpack.c.l.b16 %v1080
  %v1216 = vunpack.c.l.b16 %v1081
  %v1217 = vunpack.c.l.b16 %v1082
  %v1218 = vunpack.c.l.b16 %v1083
  %v1219 = vunpack.c.l.b16 %v1084
  %v1220 = vunpack.c.l.b16 %v1085
  %v1221 = vunpack.c.l.b16 %v1086
  %v1222 = vunpack.c.l.b16 %v1087
  %v1223 = vunpack.c.l.b16 %v1088
  %v1224 = vunpack.c.l.b16 %v1089
  %v1225 = vunpack.c.l.b16 %v1090
  %v1226 = vunpack.c.l.b16 %v1091
  %v1227 = vunpack.c.l.b16 %v1092
  %v1228 = vunpack.c.l.b16 %v1093
  %v1229 = vunpack.c.l.b16 %v1094
  %v1230 = vunpack.c.l.b16 %v1095
  %v1231 = vunpack.c.l.b16 %v1096
  %v1232 = vunpack.c.l.b16 %v1097
  %v1233 = vunpack.c.l.b16 %v1098
  %v1234 = vunpack.c.l.b16 %v1099
  %v1235 = vunpack.c.l.b16 %v1100
  %v1236 = vunpack.c.l.b16 %v1101
  %v1237 = vunpack.c.l.b16 %v1102
  %v1238 = vunpack.c.l.b16 %v1103
  %v1239 = vunpack.c.l.b16 %v1104
  %v1240 = vunpack.c.l.b16 %v1105
  %v1241 = vunpack.c.l.b16 %v1106
  %v1242 = vunpack.c.l.b16 %v1107
  %v1243 = vunpack.c.l.b16 %v1108
  %v1244 = vunpack.c.l.b16 %v1109
  %v1245 = vunpack.c.l.b16 %v1110
  %v1246 = vunpack.c.l.b16 %v1111
  %v1247 = vunpack.c.l.b16 %v1112
  %v1248 = vunpack.c.l.b16 %v1113
  %v1249 = vunpack.c.l.b16 %v1114
  %v1250 = vunpack.c.l.b16 %v1115
  %v1251 = vunpack.c.l.b16 %v1116
  %v1252 = vunpack.c.l.b16 %v1117
  %v1253 = vunpack.c.l.b16 %v1118
  %v1254 = vunpack.c.l.b16 %v1119
  %v1255 = vunpack.c.l.b16 %v1120
  %v1256 = vunpack.c.l.b16 %v1121
  %v1257 = vunpack.c.l.b16 %v1122
  %v1258 = vunpack.c.l.b16 %v1123
  %v1259 = vunpack.c.l.b16 %v1124
  %v1260 = vunpack.c.l.b16 %v1125
  %v1261 = vunpack.c.l.b16 %v1126
  %v1262 = vunpack.c.l.b16 %v1127
  %v1263 = vunpack.c.l.b16 %v1128
  %v1264 = vunpack.c.l.b16 %v1129
  %v1265 = vunpack.c.l.b16 %v1130
  %v1266 = vunpack.c.l.b16 %v1131
  %v1267 = vunpack.c.l.b16 %v1132
  %v1268 = vunpack.c.l.b16 %v1133
  %v1269 = vunpack.c.l.b16 %v1134
  %v1270 = vpack.c.b16 %v1207, %v1206
  %v1271 = vpack.c.b16 %v1209, %v1208
  %v1272 = vpack.c.b16 %v1211, %v1210
  %v1273 = vpack.c.b16 %v1213, %v1212
  %v1274 = vpack.c.b16 %v1215, %v1214
  %v1275 = vpack.c.b16 %v1217, %v1216
  %v1276 = vpack.c.b16 %v1219, %v1218
  %v1277 = vpack.c.b16 %v1221, %v1220
  %v1278 = vpack.c.b16 %v1223, %v1222
  %v1279 = vpack.c.b16 %v1225, %v1224
  %v1280 = vpack.c.b16 %v1227, %v1226
  %v1281 = vpack.c.b16 %v1229, %v1228
  %v1282 = vpack.c.b16 %v1231, %v1230
  %v1283 = vpack.c.b16 %v1233, %v1232
  %v1284 = vpack.c.b16 %v1235, %v1234
  %v1285 = vpack.c.b16 %v1237, %v1236
  %v1286 = vpack.c.b16 %v1239, %v1238
  %v1287 = vpack.c.b16 %v1241, %v1240
  %v1288 = vpack.c.b16 %v1243, %v1242
  %v1289 = vpack.c.b16 %v1245, %v1244
  %v1290 = vpack.c.b16 %v1247, %v1246
  %v1291 = vpack.c.b16 %v1249, %v1248
  %v1292 = vpack.c.b16 %v1251, %v1250
  %v1293 = vpack.c.b16 %v1253, %v1252
  %v1294 = vpack.c.b16 %v1255, %v1254
  %v1295 = vpack.c.b16 %v1257, %v1256
  %v1296 = vpack.c.b16 %v1259, %v1258
  %v1297 = vpack.c.b16 %v1261, %v1260
  %v1298 = vpack.c.b16 %v1263, %v1262
  %v1299 = vpack.c.b16 %v1265, %v1264
  %v1300 = vpack.c.b16 %v1267, %v1266
  %v1301 = vpack.c.b16 %v1269, %v1268
  %1334 = vmatprep.subr.bf16.mxu0 0
  %1335 = vmatpush1.bf16.msra.mxu0 %v1277
  %1336 = vmatprep.subr.bf16.mxu0 0
  %1337 = vmatpush1.bf16.msra.mxu0 %v1276
  %1338 = vmatprep.subr.bf16.mxu0 0
  %1339 = vmatpush1.bf16.msra.mxu0 %v1275
  %1340 = vmatprep.subr.bf16.mxu0 0
  %1341 = vmatpush1.bf16.msra.mxu0 %v1274
  %1342 = vmatprep.subr.bf16.mxu0 0
  %1343 = vmatpush1.bf16.msra.mxu0 %v1273
  %1344 = vmatprep.subr.bf16.mxu0 0
  %1345 = vmatpush1.bf16.msra.mxu0 %v1272
  %1346 = vmatprep.subr.bf16.mxu0 0
  %1347 = vmatpush1.bf16.msra.mxu0 %v1271
  %1348 = vmatprep.subr.bf16.mxu0 0
  %1349 = vmatpush1.bf16.msra.mxu0 %v1270
  %1350 = vmatprep.subr.bf16.mxu0 0
  %1351 = vmatpush2.bf16.msra.mxu0 %v1285
  %1352 = vmatprep.subr.bf16.mxu0 0
  %1353 = vmatpush2.bf16.msra.mxu0 %v1284
  %1354 = vmatprep.subr.bf16.mxu0 0
  %1355 = vmatpush2.bf16.msra.mxu0 %v1283
  %1356 = vmatprep.subr.bf16.mxu0 0
  %1357 = vmatpush2.bf16.msra.mxu0 %v1282
  %1358 = vmatprep.subr.bf16.mxu0 0
  %1359 = vmatpush2.bf16.msra.mxu0 %v1281
  %1360 = vmatprep.subr.bf16.mxu0 0
  %1361 = vmatpush2.bf16.msra.mxu0 %v1280
  %1362 = vmatprep.subr.bf16.mxu0 0
  %1363 = vmatpush2.bf16.msra.mxu0 %v1279
  %1364 = vmatprep.subr.bf16.mxu0 0
  %1365 = vmatpush2.bf16.msra.mxu0 %v1278
  %1366 = vmatprep.mubr.bf16.mxu0 %v1064
  %1367 = vmatmul.mubr.bf16.gmra.mxu0 %v1063
  %v1368 = vpop.f32.mrf.mxu0
  %v1369 = vadd.f32 %v1140, %v1368
  %v1370 = vpop.f32.mrf.mxu0
  %v1371 = vpop.f32.mrf.mxu0
  %v1372 = vadd.f32 %v1140, %v1371
  %v1373 = vpop.f32.mrf.mxu0
  %1374 = vmatprep.mubr.bf16.mxu0 %v1068
  %1375 = vmatmul.mubr.bf16.gmra.mxu0 %v1067
  %v1376 = vpop.f32.mrf.mxu0
  %v1377 = vadd.f32 %v1140, %v1376
  %v1378 = vpop.f32.mrf.mxu0
  %v1379 = vpop.f32.mrf.mxu0
  %v1380 = vadd.f32 %v1140, %v1379
  %v1381 = vpop.f32.mrf.mxu0
  %1382 = vdwg.mxu0
  %1383 = vmatprep.subr.bf16.mxu0 0
  %1384 = vmatpush1.bf16.msra.mxu0 %v1293
  %1385 = vmatprep.subr.bf16.mxu0 0
  %1386 = vmatpush1.bf16.msra.mxu0 %v1292
  %1387 = vmatprep.subr.bf16.mxu0 0
  %1388 = vmatpush1.bf16.msra.mxu0 %v1291
  %1389 = vmatprep.subr.bf16.mxu0 0
  %1390 = vmatpush1.bf16.msra.mxu0 %v1290
  %1391 = vmatprep.subr.bf16.mxu0 0
  %1392 = vmatpush1.bf16.msra.mxu0 %v1289
  %1393 = vmatprep.subr.bf16.mxu0 0
  %1394 = vmatpush1.bf16.msra.mxu0 %v1288
  %1395 = vmatprep.subr.bf16.mxu0 0
  %1396 = vmatpush1.bf16.msra.mxu0 %v1287
  %1397 = vmatprep.subr.bf16.mxu0 0
  %1398 = vmatpush1.bf16.msra.mxu0 %v1286
  %1399 = vmatprep.subr.bf16.mxu0 0
  %1400 = vmatpush2.bf16.msra.mxu0 %v1301
  %1401 = vmatprep.subr.bf16.mxu0 0
  %1402 = vmatpush2.bf16.msra.mxu0 %v1300
  %1403 = vmatprep.subr.bf16.mxu0 0
  %1404 = vmatpush2.bf16.msra.mxu0 %v1299
  %1405 = vmatprep.subr.bf16.mxu0 0
  %1406 = vmatpush2.bf16.msra.mxu0 %v1298
  %1407 = vmatprep.subr.bf16.mxu0 0
  %1408 = vmatpush2.bf16.msra.mxu0 %v1297
  %1409 = vmatprep.subr.bf16.mxu0 0
  %1410 = vmatpush2.bf16.msra.mxu0 %v1296
  %1411 = vmatprep.subr.bf16.mxu0 0
  %1412 = vmatpush2.bf16.msra.mxu0 %v1295
  %1413 = vmatprep.subr.bf16.mxu0 0
  %1414 = vmatpush2.bf16.msra.mxu0 %v1294
  %1415 = vmatprep.mubr.bf16.mxu0 %v1066
  %1416 = vmatmul.mubr.bf16.gmra.mxu0 %v1065
  %v1417 = vpop.f32.mrf.mxu0
  %v1418 = vadd.f32 %v1369, %v1417
  %v1419 = vpop.f32.mrf.mxu0
  %v1420 = vpop.f32.mrf.mxu0
  %v1421 = vadd.f32 %v1372, %v1420
  %v1422 = vpop.f32.mrf.mxu0
  %1423 = vmatprep.mubr.bf16.mxu0 %v1070
  %1424 = vmatmul.mubr.bf16.gmra.mxu0 %v1069
  %v1425 = vpop.f32.mrf.mxu0
  %v1426 = vadd.f32 %v1377, %v1425
  %v1427 = vpop.f32.mrf.mxu0
  %v1428 = vpop.f32.mrf.mxu0
  %v1429 = vadd.f32 %v1380, %v1428
  %v1430 = vpop.f32.mrf.mxu0
  %1431 = vdwg.mxu0
  %v1432 = vpack.c.bf16 %v1421, %v1418
  %v1433 = vpack.c.bf16 %v1429, %v1426
  %v1436 = vunpack.c.l.b16 %v1432
  %v1437 = vunpack.c.h.b16 %v1432
  %v1438 = vunpack.c.l.b16 %v1433
  %v1439 = vunpack.c.h.b16 %v1433
  %v1440 = vpack.c.b16 %v1436, %v1436
  %v1441 = vpack.c.b16 %v1437, %v1437
  %v1442 = vpack.c.b16 %v1438, %v1438
  %v1443 = vpack.c.b16 %v1439, %v1439
  %vm1448 = vcmask 257024
  %1449 = vst.msk [vmem:[%s5] sm:$0xf] %vm1448, %v1440
  %1450 = vst.msk [vmem:[%s5 + $0x4] sm:$0xf] %vm1448, %v1441
  %1451 = vst.msk [vmem:[%s5 + $0x8] sm:$0xf] %vm1448, %v1442
  %1452 = vst.msk [vmem:[%s5 + $0xc] sm:$0xf] %vm1448, %v1443
  // Predicated region
  $region22: #{maxvit2_forward.4} parent=0 // pred_check
    _
  $region23: #{maxvit2_forward.4} parent=0 // pred_check_branch
    %1454 = sbr.rel (0) target = $region25
  $region24: #{maxvit2_forward.4} parent=0 // pred_region
    _
  $region25: #{maxvit2_forward.4} parent=0 // pred_fallthru
    _
  // Predicated region
  $region26: #{maxvit2_forward.4} parent=0 // pred_check
    _
  $region27: #{maxvit2_forward.4} parent=0 // pred_check_branch
    %1456 = sbr.rel (0) target = $region29
  $region28: #{maxvit2_forward.4} parent=0 // pred_region
    _
  $region29: #{maxvit2_forward.4} parent=0 // pred_fallthru
    _

// kernel: maxvit2_forward.5
$region0: #{maxvit2_forward.5}
  #allocation0 [shape = 'u32[]', space=smem, size = 0x4, offset = 0x4, fixed_abs, tag = 'smem constant byte address 0x4 - core index']
  #allocation1 [shape = 'u32[144,128]{1,0:T(1,128)}', space=vmem, size = 0x12000, scoped, tag = 'internal scratch']
  #allocation2 [shape = 'bf16[16,96]{1,0:T(8,128)(2,1)}', space=vmem, size = 0x1000, scoped, tag = 'scratch operand']
  %s0 = inlined_call_operand.vmem [shape: bf16[2,16,32], index: 0, kind: input, shape index: {}]
  %s1 = inlined_call_operand.vmem [shape: f32[1,32], index: 1, kind: input, shape index: {}]
  %s2 = inlined_call_operand.vmem [shape: f32[1,32], index: 2, kind: input, shape index: {}]
  %s3 = inlined_call_operand.vmem [shape: bf16[32,96], index: 3, kind: input, shape index: {}]
  %s4 = inlined_call_operand.vmem [shape: f32[1,96], index: 4, kind: input, shape index: {}]
  %s5 = inlined_call_operand.vmem [shape: bf16[32,32], index: 5, kind: input, shape index: {}]
  %s6 = inlined_call_operand.vmem [shape: f32[1,32], index: 6, kind: input, shape index: {}]
  %s7 = inlined_call_operand.vmem [shape: f32[1,32], index: 7, kind: input, shape index: {}]
  %s8 = inlined_call_operand.vmem [shape: f32[1,32], index: 8, kind: input, shape index: {}]
  %s9 = inlined_call_operand.vmem [shape: bf16[32,128], index: 9, kind: input, shape index: {}]
  %s10 = inlined_call_operand.vmem [shape: f32[1,128], index: 10, kind: input, shape index: {}]
  %s11 = inlined_call_operand.vmem [shape: bf16[128,32], index: 11, kind: input, shape index: {}]
  %s12 = inlined_call_operand.vmem [shape: f32[1,32], index: 12, kind: input, shape index: {}]
  %s13 = inlined_call_operand.vmem [shape: bf16[2,16,32], index: 13, kind: output, shape index: {}]
  %s14 = sld [smem:[#allocation0]]
  $region89: #{maxvit2_forward.5} parent=0
    _
  %s16 = ssub.s32 1, %s14
  %s17 = scalar_select 0, %s16, %s14
  loop: start=0, step=1, limit=4
  $region2: #{maxvit2_forward.5} parent=0 // loop_pre_header
    _
  $region3: #{maxvit2_forward.5} parent=0 // loop_header
    %s19 = sphi 0, %s23
    %p20 = scmp.ge.s32.totalorder %s19, 4
    %s26 = sphi 0, %s38
    %s27 = sphi 0, %s34
    %s28 = sphi 0, %s26
    %s29 = sphi 0, %s27
    %s30 = sphi 0, %s28
    %s31 = sphi 0, %s29
    %s41 = sphi 0, %s43
    %s44 = sphi 0, %s41
    %s45 = sphi 0, %s44
    %s61 = sphi 0, %s45
    %s65 = sphi 0, %s65
    %s67 = sphi 0, %s65
    %s68 = sphi 0, %s67
    %s82 = sphi 0, %s68
    %s86 = sphi 0, %s86
    %s88 = sphi 0, %s86
    %s89 = sphi 0, %s88
    %s103 = sphi 0, %s89
    %s107 = sphi 0, %s107
    %s109 = sphi 0, %s107
    %s110 = sphi 0, %s109
    %s124 = sphi 0, %s110
    %s128 = sphi 0, %s128
    %s130 = sphi 0, %s128
    %s131 = sphi 0, %s130
    %s145 = sphi 0, %s131
    %s149 = sphi 0, %s149
    %s151 = sphi 0, %s149
    %s152 = sphi 0, %s151
    %s166 = sphi 0, %s152
    %s170 = sphi 0, %s170
    %s172 = sphi 0, %s170
    %s173 = sphi 0, %s172
    %s187 = sphi 0, %s173
    %s191 = sphi 0, %s191
    %s193 = sphi 0, %s191
    %s194 = sphi 0, %s193
    %s208 = sphi 0, %s194
    %s212 = sphi 0, %s212
    %s214 = sphi 0, %s212
    %s215 = sphi 0, %s214
    %s229 = sphi 0, %s215
    %s233 = sphi 0, %s233
    %s235 = sphi 0, %s233
    %s236 = sphi 0, %s235
    %s250 = sphi 0, %s236
    %s254 = sphi 0, %s254
    %s256 = sphi 0, %s254
    %s257 = sphi 0, %s256
    %s271 = sphi 0, %s257
    %s275 = sphi 0, %s275
    %s277 = sphi 0, %s275
    %s278 = sphi 0, %s277
    %s292 = sphi 0, %s278
    %s296 = sphi 0, %s296
    %s298 = sphi 0, %s296
    %s299 = sphi 0, %s298
    %s313 = sphi 0, %s299
    %s321 = sphi 0, %s323
    %s324 = sphi 0, %s321
    %s325 = sphi 0, %s324
    %s341 = sphi 0, %s325
  $region4: #{maxvit2_forward.5} parent=0 // loop_header_branch
    %22 = sbr.rel (%p20) target = $region8
  $region5: #{maxvit2_forward.5} parent=0 // loop_body
    %s24 = ssub.s32 %s19, 1
    %s25 = ssub.s32 %s19, 2
    %s32 = sadd.s32 1, %s27
    %p33 = scmp.ge.s32.totalorder %s32, 1
    %s34 = scalar_select %p33, 0, %s32
    %s35 = sadd.s32 1, %s26
    %s36 = scalar_select %p33, %s35, %s26
    %p37 = scmp.ge.s32.totalorder %s36, 2
    %s38 = scalar_select %p37, 0, %s36
    %s39 = ssub.s32 %s26, %s38
    %p40 = scmp.eq.s32.totalorder %s39, 0
    %s42 = sadd.s32 %s41, 1
    %s43 = scalar_select %p40, %s41, %s42
    %p46 = pneg %p40
    %p47 = scmp.eq.s32.totalorder %s19, 1
    %p48 = por %p46, %p47
    %p49 = scmp.ne.s32.totalorder %s41, %s44
    %p50 = scmp.eq.s32.totalorder %s19, 0
    %p51 = por %p49, %p50
    %p52 = scmp.ne.s32.totalorder %s41, %s44
    %p53 = scmp.eq.s32.totalorder %s24, 1
    %p54 = por %p52, %p53
    %p55 = scmp.ne.s32.totalorder %s44, %s45
    %p56 = scmp.eq.s32.totalorder %s24, 0
    %p57 = por %p55, %p56
    %p58 = scmp.ne.s32.totalorder %s44, %s45
    %p59 = scmp.eq.s32.totalorder %s25, 1
    %p60 = por %p58, %p59
    %p62 = scmp.ne.s32.totalorder %s45, %s61
    %p63 = scmp.eq.s32.totalorder %s25, 0
    %p64 = por %p62, %p63
    %s66 = sadd.s32 %s65, 1
    %p69 = scmp.eq.s32.totalorder %s19, 1
    %p70 = scmp.ne.s32.totalorder %s65, %s67
    %p71 = scmp.eq.s32.totalorder %s19, 0
    %p72 = por %p70, %p71
    %p73 = scmp.ne.s32.totalorder %s65, %s67
    %p74 = scmp.eq.s32.totalorder %s24, 1
    %p75 = por %p73, %p74
    %p76 = scmp.ne.s32.totalorder %s67, %s68
    %p77 = scmp.eq.s32.totalorder %s24, 0
    %p78 = por %p76, %p77
    %p79 = scmp.ne.s32.totalorder %s67, %s68
    %p80 = scmp.eq.s32.totalorder %s25, 1
    %p81 = por %p79, %p80
    %p83 = scmp.ne.s32.totalorder %s68, %s82
    %p84 = scmp.eq.s32.totalorder %s25, 0
    %p85 = por %p83, %p84
    %s87 = sadd.s32 %s86, 1
    %p90 = scmp.eq.s32.totalorder %s19, 1
    %p91 = scmp.ne.s32.totalorder %s86, %s88
    %p92 = scmp.eq.s32.totalorder %s19, 0
    %p93 = por %p91, %p92
    %p94 = scmp.ne.s32.totalorder %s86, %s88
    %p95 = scmp.eq.s32.totalorder %s24, 1
    %p96 = por %p94, %p95
    %p97 = scmp.ne.s32.totalorder %s88, %s89
    %p98 = scmp.eq.s32.totalorder %s24, 0
    %p99 = por %p97, %p98
    %p100 = scmp.ne.s32.totalorder %s88, %s89
    %p101 = scmp.eq.s32.totalorder %s25, 1
    %p102 = por %p100, %p101
    %p104 = scmp.ne.s32.totalorder %s89, %s103
    %p105 = scmp.eq.s32.totalorder %s25, 0
    %p106 = por %p104, %p105
    %s108 = sadd.s32 %s107, 1
    %p111 = scmp.eq.s32.totalorder %s19, 1
    %p112 = scmp.ne.s32.totalorder %s107, %s109
    %p113 = scmp.eq.s32.totalorder %s19, 0
    %p114 = por %p112, %p113
    %p115 = scmp.ne.s32.totalorder %s107, %s109
    %p116 = scmp.eq.s32.totalorder %s24, 1
    %p117 = por %p115, %p116
    %p118 = scmp.ne.s32.totalorder %s109, %s110
    %p119 = scmp.eq.s32.totalorder %s24, 0
    %p120 = por %p118, %p119
    %p121 = scmp.ne.s32.totalorder %s109, %s110
    %p122 = scmp.eq.s32.totalorder %s25, 1
    %p123 = por %p121, %p122
    %p125 = scmp.ne.s32.totalorder %s110, %s124
    %p126 = scmp.eq.s32.totalorder %s25, 0
    %p127 = por %p125, %p126
    %s129 = sadd.s32 %s128, 1
    %p132 = scmp.eq.s32.totalorder %s19, 1
    %p133 = scmp.ne.s32.totalorder %s128, %s130
    %p134 = scmp.eq.s32.totalorder %s19, 0
    %p135 = por %p133, %p134
    %p136 = scmp.ne.s32.totalorder %s128, %s130
    %p137 = scmp.eq.s32.totalorder %s24, 1
    %p138 = por %p136, %p137
    %p139 = scmp.ne.s32.totalorder %s130, %s131
    %p140 = scmp.eq.s32.totalorder %s24, 0
    %p141 = por %p139, %p140
    %p142 = scmp.ne.s32.totalorder %s130, %s131
    %p143 = scmp.eq.s32.totalorder %s25, 1
    %p144 = por %p142, %p143
    %p146 = scmp.ne.s32.totalorder %s131, %s145
    %p147 = scmp.eq.s32.totalorder %s25, 0
    %p148 = por %p146, %p147
    %s150 = sadd.s32 %s149, 1
    %p153 = scmp.eq.s32.totalorder %s19, 1
    %p154 = scmp.ne.s32.totalorder %s149, %s151
    %p155 = scmp.eq.s32.totalorder %s19, 0
    %p156 = por %p154, %p155
    %p157 = scmp.ne.s32.totalorder %s149, %s151
    %p158 = scmp.eq.s32.totalorder %s24, 1
    %p159 = por %p157, %p158
    %p160 = scmp.ne.s32.totalorder %s151, %s152
    %p161 = scmp.eq.s32.totalorder %s24, 0
    %p162 = por %p160, %p161
    %p163 = scmp.ne.s32.totalorder %s151, %s152
    %p164 = scmp.eq.s32.totalorder %s25, 1
    %p165 = por %p163, %p164
    %p167 = scmp.ne.s32.totalorder %s152, %s166
    %p168 = scmp.eq.s32.totalorder %s25, 0
    %p169 = por %p167, %p168
    %s171 = sadd.s32 %s170, 1
    %p174 = scmp.eq.s32.totalorder %s19, 1
    %p175 = scmp.ne.s32.totalorder %s170, %s172
    %p176 = scmp.eq.s32.totalorder %s19, 0
    %p177 = por %p175, %p176
    %p178 = scmp.ne.s32.totalorder %s170, %s172
    %p179 = scmp.eq.s32.totalorder %s24, 1
    %p180 = por %p178, %p179
    %p181 = scmp.ne.s32.totalorder %s172, %s173
    %p182 = scmp.eq.s32.totalorder %s24, 0
    %p183 = por %p181, %p182
    %p184 = scmp.ne.s32.totalorder %s172, %s173
    %p185 = scmp.eq.s32.totalorder %s25, 1
    %p186 = por %p184, %p185
    %p188 = scmp.ne.s32.totalorder %s173, %s187
    %p189 = scmp.eq.s32.totalorder %s25, 0
    %p190 = por %p188, %p189
    %s192 = sadd.s32 %s191, 1
    %p195 = scmp.eq.s32.totalorder %s19, 1
    %p196 = scmp.ne.s32.totalorder %s191, %s193
    %p197 = scmp.eq.s32.totalorder %s19, 0
    %p198 = por %p196, %p197
    %p199 = scmp.ne.s32.totalorder %s191, %s193
    %p200 = scmp.eq.s32.totalorder %s24, 1
    %p201 = por %p199, %p200
    %p202 = scmp.ne.s32.totalorder %s193, %s194
    %p203 = scmp.eq.s32.totalorder %s24, 0
    %p204 = por %p202, %p203
    %p205 = scmp.ne.s32.totalorder %s193, %s194
    %p206 = scmp.eq.s32.totalorder %s25, 1
    %p207 = por %p205, %p206
    %p209 = scmp.ne.s32.totalorder %s194, %s208
    %p210 = scmp.eq.s32.totalorder %s25, 0
    %p211 = por %p209, %p210
    %s213 = sadd.s32 %s212, 1
    %p216 = scmp.eq.s32.totalorder %s19, 1
    %p217 = scmp.ne.s32.totalorder %s212, %s214
    %p218 = scmp.eq.s32.totalorder %s19, 0
    %p219 = por %p217, %p218
    %p220 = scmp.ne.s32.totalorder %s212, %s214
    %p221 = scmp.eq.s32.totalorder %s24, 1
    %p222 = por %p220, %p221
    %p223 = scmp.ne.s32.totalorder %s214, %s215
    %p224 = scmp.eq.s32.totalorder %s24, 0
    %p225 = por %p223, %p224
    %p226 = scmp.ne.s32.totalorder %s214, %s215
    %p227 = scmp.eq.s32.totalorder %s25, 1
    %p228 = por %p226, %p227
    %p230 = scmp.ne.s32.totalorder %s215, %s229
    %p231 = scmp.eq.s32.totalorder %s25, 0
    %p232 = por %p230, %p231
    %s234 = sadd.s32 %s233, 1
    %p237 = scmp.eq.s32.totalorder %s19, 1
    %p238 = scmp.ne.s32.totalorder %s233, %s235
    %p239 = scmp.eq.s32.totalorder %s19, 0
    %p240 = por %p238, %p239
    %p241 = scmp.ne.s32.totalorder %s233, %s235
    %p242 = scmp.eq.s32.totalorder %s24, 1
    %p243 = por %p241, %p242
    %p244 = scmp.ne.s32.totalorder %s235, %s236
    %p245 = scmp.eq.s32.totalorder %s24, 0
    %p246 = por %p244, %p245
    %p247 = scmp.ne.s32.totalorder %s235, %s236
    %p248 = scmp.eq.s32.totalorder %s25, 1
    %p249 = por %p247, %p248
    %p251 = scmp.ne.s32.totalorder %s236, %s250
    %p252 = scmp.eq.s32.totalorder %s25, 0
    %p253 = por %p251, %p252
    %s255 = sadd.s32 %s254, 1
    %p258 = scmp.eq.s32.totalorder %s19, 1
    %p259 = scmp.ne.s32.totalorder %s254, %s256
    %p260 = scmp.eq.s32.totalorder %s19, 0
    %p261 = por %p259, %p260
    %p262 = scmp.ne.s32.totalorder %s254, %s256
    %p263 = scmp.eq.s32.totalorder %s24, 1
    %p264 = por %p262, %p263
    %p265 = scmp.ne.s32.totalorder %s256, %s257
    %p266 = scmp.eq.s32.totalorder %s24, 0
    %p267 = por %p265, %p266
    %p268 = scmp.ne.s32.totalorder %s256, %s257
    %p269 = scmp.eq.s32.totalorder %s25, 1
    %p270 = por %p268, %p269
    %p272 = scmp.ne.s32.totalorder %s257, %s271
    %p273 = scmp.eq.s32.totalorder %s25, 0
    %p274 = por %p272, %p273
    %s276 = sadd.s32 %s275, 1
    %p279 = scmp.eq.s32.totalorder %s19, 1
    %p280 = scmp.ne.s32.totalorder %s275, %s277
    %p281 = scmp.eq.s32.totalorder %s19, 0
    %p282 = por %p280, %p281
    %p283 = scmp.ne.s32.totalorder %s275, %s277
    %p284 = scmp.eq.s32.totalorder %s24, 1
    %p285 = por %p283, %p284
    %p286 = scmp.ne.s32.totalorder %s277, %s278
    %p287 = scmp.eq.s32.totalorder %s24, 0
    %p288 = por %p286, %p287
    %p289 = scmp.ne.s32.totalorder %s277, %s278
    %p290 = scmp.eq.s32.totalorder %s25, 1
    %p291 = por %p289, %p290
    %p293 = scmp.ne.s32.totalorder %s278, %s292
    %p294 = scmp.eq.s32.totalorder %s25, 0
    %p295 = por %p293, %p294
    %s297 = sadd.s32 %s296, 1
    %p300 = scmp.eq.s32.totalorder %s19, 1
    %p301 = scmp.ne.s32.totalorder %s296, %s298
    %p302 = scmp.eq.s32.totalorder %s19, 0
    %p303 = por %p301, %p302
    %p304 = scmp.ne.s32.totalorder %s296, %s298
    %p305 = scmp.eq.s32.totalorder %s24, 1
    %p306 = por %p304, %p305
    %p307 = scmp.ne.s32.totalorder %s298, %s299
    %p308 = scmp.eq.s32.totalorder %s24, 0
    %p309 = por %p307, %p308
    %p310 = scmp.ne.s32.totalorder %s298, %s299
    %p311 = scmp.eq.s32.totalorder %s25, 1
    %p312 = por %p310, %p311
    %p314 = scmp.ne.s32.totalorder %s299, %s313
    %p315 = scmp.eq.s32.totalorder %s25, 0
    %p316 = por %p314, %p315
    %s317 = ssub.s32 %s26, %s38
    %s318 = ssub.s32 %s27, %s34
    %s319 = sor.u32 %s317, %s318
    %p320 = scmp.eq.s32.totalorder %s319, 0
    %s322 = sadd.s32 %s321, 1
    %s323 = scalar_select %p320, %s321, %s322
    %p326 = pneg %p320
    %p327 = scmp.eq.s32.totalorder %s19, 1
    %p328 = por %p326, %p327
    %p329 = scmp.ne.s32.totalorder %s321, %s324
    %p330 = scmp.eq.s32.totalorder %s19, 0
    %p331 = por %p329, %p330
    %p332 = scmp.ne.s32.totalorder %s321, %s324
    %p333 = scmp.eq.s32.totalorder %s24, 1
    %p334 = por %p332, %p333
    %p335 = scmp.ne.s32.totalorder %s324, %s325
    %p336 = scmp.eq.s32.totalorder %s24, 0
    %p337 = por %p335, %p336
    %p338 = scmp.ne.s32.totalorder %s324, %s325
    %p339 = scmp.eq.s32.totalorder %s25, 1
    %p340 = por %p338, %p339
    %p342 = scmp.ne.s32.totalorder %s325, %s341
    %p343 = scmp.eq.s32.totalorder %s25, 0
    %p344 = por %p342, %p343
    %p345 = scmp.le.s32.totalorder 1, %s19
    %p346 = scmp.lt.s32.totalorder %s19, 3
    %p347 = pnand %p345, %p346
    %p348 = pneg %p347
    // Predicated region
    $region9: #{maxvit2_forward.5} parent=5 // pred_check
      _
    $region10: #{maxvit2_forward.5} parent=5 // pred_check_branch
      %350 = sbr.rel (%p347) target = $region12
    $region11: #{maxvit2_forward.5} parent=5 // pred_region
      %s351 = ssub.s32 %s19, 1
      // Predicated region
      $region13: #{maxvit2_forward.5} parent=11 // pred_check
        %p352 = pneg %p78
      $region14: #{maxvit2_forward.5} parent=11 // pred_check_branch
        %354 = sbr.rel (%p352) target = $region16
      $region15: #{maxvit2_forward.5} parent=11 // pred_region
        _
      $region16: #{maxvit2_forward.5} parent=11 // pred_fallthru
        _
      // Predicated region
      $region17: #{maxvit2_forward.5} parent=11 // pred_check
        %p355 = pneg %p99
      $region18: #{maxvit2_forward.5} parent=11 // pred_check_branch
        %357 = sbr.rel (%p355) target = $region20
      $region19: #{maxvit2_forward.5} parent=11 // pred_region
        _
      $region20: #{maxvit2_forward.5} parent=11 // pred_fallthru
        _
      // Predicated region
      $region21: #{maxvit2_forward.5} parent=11 // pred_check
        %p358 = pneg %p120
      $region22: #{maxvit2_forward.5} parent=11 // pred_check_branch
        %360 = sbr.rel (%p358) target = $region24
      $region23: #{maxvit2_forward.5} parent=11 // pred_region
        _
      $region24: #{maxvit2_forward.5} parent=11 // pred_fallthru
        _
      // Predicated region
      $region25: #{maxvit2_forward.5} parent=11 // pred_check
        %p361 = pneg %p141
      $region26: #{maxvit2_forward.5} parent=11 // pred_check_branch
        %363 = sbr.rel (%p361) target = $region28
      $region27: #{maxvit2_forward.5} parent=11 // pred_region
        _
      $region28: #{maxvit2_forward.5} parent=11 // pred_fallthru
        _
      // Predicated region
      $region29: #{maxvit2_forward.5} parent=11 // pred_check
        %p364 = pneg %p162
      $region30: #{maxvit2_forward.5} parent=11 // pred_check_branch
        %366 = sbr.rel (%p364) target = $region32
      $region31: #{maxvit2_forward.5} parent=11 // pred_region
        _
      $region32: #{maxvit2_forward.5} parent=11 // pred_fallthru
        _
      // Predicated region
      $region33: #{maxvit2_forward.5} parent=11 // pred_check
        %p367 = pneg %p183
      $region34: #{maxvit2_forward.5} parent=11 // pred_check_branch
        %369 = sbr.rel (%p367) target = $region36
      $region35: #{maxvit2_forward.5} parent=11 // pred_region
        _
      $region36: #{maxvit2_forward.5} parent=11 // pred_fallthru
        _
      // Predicated region
      $region37: #{maxvit2_forward.5} parent=11 // pred_check
        %p370 = pneg %p204
      $region38: #{maxvit2_forward.5} parent=11 // pred_check_branch
        %372 = sbr.rel (%p370) target = $region40
      $region39: #{maxvit2_forward.5} parent=11 // pred_region
        _
      $region40: #{maxvit2_forward.5} parent=11 // pred_fallthru
        _
      // Predicated region
      $region41: #{maxvit2_forward.5} parent=11 // pred_check
        %p373 = pneg %p225
      $region42: #{maxvit2_forward.5} parent=11 // pred_check_branch
        %375 = sbr.rel (%p373) target = $region44
      $region43: #{maxvit2_forward.5} parent=11 // pred_region
        _
      $region44: #{maxvit2_forward.5} parent=11 // pred_fallthru
        _
      // Predicated region
      $region45: #{maxvit2_forward.5} parent=11 // pred_check
        %p376 = pneg %p246
      $region46: #{maxvit2_forward.5} parent=11 // pred_check_branch
        %378 = sbr.rel (%p376) target = $region48
      $region47: #{maxvit2_forward.5} parent=11 // pred_region
        _
      $region48: #{maxvit2_forward.5} parent=11 // pred_fallthru
        _
      // Predicated region
      $region49: #{maxvit2_forward.5} parent=11 // pred_check
        %p379 = pneg %p267
      $region50: #{maxvit2_forward.5} parent=11 // pred_check_branch
        %381 = sbr.rel (%p379) target = $region52
      $region51: #{maxvit2_forward.5} parent=11 // pred_region
        _
      $region52: #{maxvit2_forward.5} parent=11 // pred_fallthru
        _
      // Predicated region
      $region53: #{maxvit2_forward.5} parent=11 // pred_check
        %p382 = pneg %p288
      $region54: #{maxvit2_forward.5} parent=11 // pred_check_branch
        %384 = sbr.rel (%p382) target = $region56
      $region55: #{maxvit2_forward.5} parent=11 // pred_region
        _
      $region56: #{maxvit2_forward.5} parent=11 // pred_fallthru
        _
      // Predicated region
      $region57: #{maxvit2_forward.5} parent=11 // pred_check
        %p385 = pneg %p309
      $region58: #{maxvit2_forward.5} parent=11 // pred_check_branch
        %387 = sbr.rel (%p385) target = $region60
      $region59: #{maxvit2_forward.5} parent=11 // pred_region
        _
      $region60: #{maxvit2_forward.5} parent=11 // pred_fallthru
        _
    $region12: #{maxvit2_forward.5} parent=5 // pred_fallthru
      _
    %p388 = scmp.lt.s32.totalorder %s19, 2
    // Predicated region
    $region61: #{maxvit2_forward.5} parent=5 // pred_check
      %p389 = pneg %p388
    $region62: #{maxvit2_forward.5} parent=5 // pred_check_branch
      %391 = sbr.rel (%p389) target = $region64
    $region63: #{maxvit2_forward.5} parent=5 // pred_region
      // Predicated region
      $region65: #{maxvit2_forward.5} parent=63 // pred_check
        %p392 = pneg %p51
      $region66: #{maxvit2_forward.5} parent=63 // pred_check_branch
        %394 = sbr.rel (%p392) target = $region68
      $region67: #{maxvit2_forward.5} parent=63 // pred_region
        %p395 = scmp.lt.s32.totalorder %s26, 1
        %s396 = scalar_select %p395, %s26, 1
        %s397 = smul.addr %s396, 2
        %s398 = smul.addr %s397, 4
        %s399 = scalar_lea.vmem %s0, %s398
      $region68: #{maxvit2_forward.5} parent=63 // pred_fallthru
        _
    $region64: #{maxvit2_forward.5} parent=5 // pred_fallthru
      _
    %p400 = scmp.le.s32.totalorder 1, %s19
    %p401 = scmp.lt.s32.totalorder %s19, 3
    %p402 = pnand %p400, %p401
    %p403 = pneg %p402
    // Predicated region
    $region69: #{maxvit2_forward.5} parent=5 // pred_check
      _
    $region70: #{maxvit2_forward.5} parent=5 // pred_check_branch
      %405 = sbr.rel (%p402) target = $region72
    $region71: #{maxvit2_forward.5} parent=5 // pred_region
      %s406 = ssub.s32 %s19, 1
      %p407 = scmp.lt.s32.totalorder %s28, 1
      %s408 = scalar_select %p407, %s28, 1
      %s409 = smul.addr %s408, 2
      %s410 = smul.addr %s409, 4
      %s411 = scalar_lea.vmem %s0, %s410
      %p412 = pneg %p57
      %p413 = pneg %p54
      %p414 = pneg %p78
      %p415 = pneg %p75
      %p416 = pneg %p99
      %p417 = pneg %p96
      %p418 = pneg %p120
      %p419 = pneg %p117
      %p420 = pneg %p141
      %p421 = pneg %p138
      %p422 = pneg %p162
      %p423 = pneg %p159
      %p424 = pneg %p183
      %p425 = pneg %p180
      %p426 = pneg %p204
      %p427 = pneg %p201
      %p428 = pneg %p225
      %p429 = pneg %p222
      %p430 = pneg %p246
      %p431 = pneg %p243
      %p432 = pneg %p267
      %p433 = pneg %p264
      %p434 = pneg %p288
      %p435 = pneg %p285
      %p436 = pneg %p309
      %p437 = pneg %p306
      %p438 = pneg %p337
      %p439 = pneg %p334
      %s440 = smul.u32 2, %s29
      %p441 = scmp.lt.s32.totalorder %s28, 1
      %s442 = scalar_select %p441, %s28, 1
      %p443 = scmp.lt.s32.totalorder %s440, 1
      %s444 = scalar_select %p443, %s440, 1
      %s445 = smul.addr %s442, 2
      %s446 = sadd.s32 %s444, %s445
      %s447 = smul.addr %s446, 4
      %s448 = scalar_lea.vmem %s13, %s447
      %p449 = scmp.lt.s32.totalorder %s28, 1
      %s450 = scalar_select %p449, %s28, 1
      %s451 = smul.addr %s450, 2
      %s452 = smul.addr %s451, 4
      %s453 = scalar_lea.vmem %s0, %s452
      %s454 = smul.u32 2, %s29
      %p455 = scmp.lt.s32.totalorder %s28, 1
      %s456 = scalar_select %p455, %s28, 1
      %p457 = scmp.lt.s32.totalorder %s454, 1
      %s458 = scalar_select %p457, %s454, 1
      %s459 = smul.addr %s456, 2
      %s460 = sadd.s32 %s458, %s459
      %s461 = smul.addr %s460, 4
      %s462 = scalar_lea.vmem %s13, %s461
      %s463 = smul.u32 2, %s29
      %p465 = scmp.eq.s32.totalorder %s29, 0
      // Predicated region
      $region73: #{maxvit2_forward.5} parent=71 // pred_check
        %p466 = pneg %p465
      $region74: #{maxvit2_forward.5} parent=71 // pred_check_branch
        %468 = sbr.rel (%p466) target = $region76
      $region75: #{maxvit2_forward.5} parent=71 // pred_region
        %v469 = vld [vmem:[%s453] sm:$0xf]
        %v470 = vld [vmem:[%s453 + $0x4] sm:$0xf]
        %v471 = vunpack.c.l.bf16 %v469
        %v472 = vunpack.c.l.bf16 %v470
        %v473 = vld [vmem:[%s1] sm:$0x1]
        %v474 = vld [vmem:[%s2] sm:$0x1]
        %vm475 = vcmask 261120
        %v476 = vsel %vm475, %v471, 0.0
        %477 = vadd.xlane.f32.xlu0 %v476
        %v478 = vpop.xlane.xlu0 %477
        %v479 = vsel %vm475, %v472, 0.0
        %480 = vadd.xlane.f32.xlu0 %v479
        %v481 = vpop.xlane.xlu0 %480
        %v482 = vrcp.pop 32.0
        %v483 = vmul.f32 %v478, %v482
        %v484 = vmul.f32 %v481, %v482
        %v485 = vsub.f32 %v471, %v483
        %v486 = vsub.f32 %v472, %v484
        %v487 = vmul.f32 %v485, %v485
        %v488 = vmul.f32 %v486, %v486
        %v489 = vsel %vm475, %v487, 0.0
        %490 = vadd.xlane.f32.xlu0 %v489
        %v491 = vpop.xlane.xlu0 %490
        %v492 = vsel %vm475, %v488, 0.0
        %493 = vadd.xlane.f32.xlu0 %v492
        %v494 = vpop.xlane.xlu0 %493
        %v495 = vmul.f32 %v491, %v482
        %v496 = vmul.f32 %v494, %v482
        %v497 = vadd.f32 %v495, 1e-05
        %v498 = vadd.f32 %v496, 1e-05
        %v499 = vrsqrt.pop %v497
        %v500 = vrsqrt.pop %v498
        %v501 = vmul.f32 %v485, %v499
        %v502 = vmul.f32 %v486, %v500
        %v504 = vlaneseq
        %v505 = vshrl.u32 %v504, 7
        %v506 = vsub.s32 0, %v505
        %v507 = vrot.slane %v473, %v506
        %v509 = vmul.f32 %v501, %v507
        %v510 = vmul.f32 %v502, %v507
        %v512 = vlaneseq
        %v513 = vshrl.u32 %v512, 7
        %v514 = vsub.s32 0, %v513
        %v515 = vrot.slane %v474, %v514
        %v517 = vadd.f32 %v509, %v515
        %v518 = vadd.f32 %v510, %v515
        %v519 = vpack.c.bf16 %v518, %v517
        %v520 = vld [vmem:[%s3] sm:$0xf]
        %v521 = vld [vmem:[%s3 + $0x4] sm:$0xf]
        %v522 = vld [vmem:[%s3 + $0x8] sm:$0xf]
        %v523 = vld [vmem:[%s3 + $0xc] sm:$0xf]
        %v524 = vld [vmem:[%s4] sm:$0x1]
        %v526 = vlaneseq
        %v527 = vshrl.u32 %v526, 7
        %v528 = vsub.s32 0, %v527
        %v529 = vrot.slane %v524, %v528
        %v535 = vunpack.c.l.b16 %v520
        %v536 = vunpack.c.l.b16 %v521
        %v537 = vunpack.c.l.b16 %v522
        %v538 = vunpack.c.l.b16 %v523
        %v539 = vpack.c.b16 %v536, %v535
        %v540 = vpack.c.b16 %v538, %v537
        %v544 = vsel %vm475, %v519, 0
        %546 = vmatprep.subr.bf16.mxu0 0
        %547 = vmatpush1.bf16.msra.mxu0 0
        %548 = vmatprep.subr.bf16.mxu0 0
        %549 = vmatpush1.bf16.msra.mxu0 0
        %550 = vmatprep.subr.bf16.mxu0 0
        %551 = vmatpush1.bf16.msra.mxu0 0
        %552 = vmatprep.subr.bf16.mxu0 0
        %553 = vmatpush1.bf16.msra.mxu0 0
        %554 = vmatprep.subr.bf16.mxu0 0
        %555 = vmatpush1.bf16.msra.mxu0 0
        %556 = vmatprep.subr.bf16.mxu0 0
        %557 = vmatpush1.bf16.msra.mxu0 0
        %558 = vmatprep.subr.bf16.mxu0 0
        %559 = vmatpush1.bf16.msra.mxu0 %v540
        %560 = vmatprep.subr.bf16.mxu0 0
        %561 = vmatpush1.bf16.msra.mxu0 %v539
        %562 = vmatprep.subr.bf16.mxu0 0
        %563 = vmatpush2.bf16.msra.mxu0 0
        %564 = vmatprep.subr.bf16.mxu0 0
        %565 = vmatpush2.bf16.msra.mxu0 0
        %566 = vmatprep.subr.bf16.mxu0 0
        %567 = vmatpush2.bf16.msra.mxu0 0
        %568 = vmatprep.subr.bf16.mxu0 0
        %569 = vmatpush2.bf16.msra.mxu0 0
        %570 = vmatprep.subr.bf16.mxu0 0
        %571 = vmatpush2.bf16.msra.mxu0 0
        %572 = vmatprep.subr.bf16.mxu0 0
        %573 = vmatpush2.bf16.msra.mxu0 0
        %574 = vmatprep.subr.bf16.mxu0 0
        %575 = vmatpush2.bf16.msra.mxu0 0
        %576 = vmatprep.subr.bf16.mxu0 0
        %577 = vmatpush2.bf16.msra.mxu0 0
        %578 = vmatprep.mubr.bf16.mxu0 0
        %579 = vmatmul.mubr.bf16.gmra.mxu0 %v544
        %v580 = vpop.f32.mrf.mxu0
        %v581 = vadd.f32 %v529, %v580
        %v582 = vpop.f32.mrf.mxu0
        %v583 = vpop.f32.mrf.mxu0
        %v584 = vadd.f32 %v529, %v583
        %v585 = vpop.f32.mrf.mxu0
        %586 = vdwg.mxu0
        %v587 = vpack.c.bf16 %v584, %v581
        %v589 = vunpack.c.l.b16 %v587
        %v590 = vunpack.c.h.b16 %v587
        %v591 = vpack.c.b16 %v589, %v589
        %v592 = vpack.c.b16 %v590, %v590
        %vm595 = vcmask 781312
        %596 = vst.msk [vmem:[#allocation2] sm:$0xf] %vm595, %v591
        %597 = vst.msk [vmem:[#allocation2 + $0x4] sm:$0xf] %vm595, %v592
      $region76: #{maxvit2_forward.5} parent=71 // pred_fallthru
        _
      %s598 = smul.u32 %s29, 16
      %s599 = sshra.s32 %s598, 3
      %s600 = sand.u32 %s598, 7
      %s601 = smul.addr %s599, 4
      %s602 = scalar_lea.vmem %s453, %s601
      %v603 = vld [vmem:[%s602] sm:$0xf]
      %v604 = vld [vmem:[%s602 + $0x4] sm:$0xf]
      %v605 = vunpack.c.l.bf16 %v603
      %v606 = vunpack.c.l.bf16 %v604
      %s607 = smul.addr %s599, 4
      %s608 = scalar_lea.vmem [#allocation2], %s607
      %v609 = vld [vmem:[%s608] sm:$0xf]
      %v610 = vld [vmem:[%s608 + $0x4] sm:$0xf]
      %v611 = vld [vmem:[#allocation2] sm:$0xf]
      %v612 = vld [vmem:[#allocation2 + $0x4] sm:$0xf]
      %v615 = vunpack.c.l.b16 %v609
      %v616 = vunpack.c.l.b16 %v610
      %v617 = vpack.c.b16 %v616, %v615
      %v620 = vunpack.c.l.b16 %v611
      %v621 = vunpack.c.l.b16 %v612
      %v622 = vpack.c.b16 %v621, %v620
      %623 = vrot.lane.b32.xlu0 %v622, 96
      %v624 = vpop.permute.xlu0 %623
      %vm625 = vcmask 64512
      %v627 = vsel %vm625, %v617, 0
      %v630 = vsel %vm625, %v624, 0
      %632 = vmatprep.subr.bf16.mxu0 0
      %633 = vmatpush1.bf16.xpose.msra.mxu0 0
      %634 = vmatprep.subr.bf16.mxu0 0
      %635 = vmatpush1.bf16.xpose.msra.mxu0 0
      %636 = vmatprep.subr.bf16.mxu0 0
      %637 = vmatpush1.bf16.xpose.msra.mxu0 0
      %638 = vmatprep.subr.bf16.mxu0 0
      %639 = vmatpush1.bf16.xpose.msra.mxu0 0
      %640 = vmatprep.subr.bf16.mxu0 0
      %641 = vmatpush1.bf16.xpose.msra.mxu0 0
      %642 = vmatprep.subr.bf16.mxu0 0
      %643 = vmatpush1.bf16.xpose.msra.mxu0 0
      %644 = vmatprep.subr.bf16.mxu0 0
      %645 = vmatpush1.bf16.xpose.msra.mxu0 0
      %646 = vmatprep.subr.bf16.mxu0 0
      %647 = vmatpush1.bf16.xpose.msra.mxu0 %v630
      %648 = vmatprep.subr.bf16.mxu0 0
      %649 = vmatpush2.bf16.xpose.msra.mxu0 0
      %650 = vmatprep.subr.bf16.mxu0 0
      %651 = vmatpush2.bf16.xpose.msra.mxu0 0
      %652 = vmatprep.subr.bf16.mxu0 0
      %653 = vmatpush2.bf16.xpose.msra.mxu0 0
      %654 = vmatprep.subr.bf16.mxu0 0
      %655 = vmatpush2.bf16.xpose.msra.mxu0 0
      %656 = vmatprep.subr.bf16.mxu0 0
      %657 = vmatpush2.bf16.xpose.msra.mxu0 0
      %658 = vmatprep.subr.bf16.mxu0 0
      %659 = vmatpush2.bf16.xpose.msra.mxu0 0
      %660 = vmatprep.subr.bf16.mxu0 0
      %661 = vmatpush2.bf16.xpose.msra.mxu0 0
      %662 = vmatprep.subr.bf16.mxu0 0
      %663 = vmatpush2.bf16.xpose.msra.mxu0 0
      %664 = vmatprep.mubr.bf16.mxu0 0
      %665 = vmatmul.mubr.bf16.gmra.mxu0 %v627
      %v666 = vpop.f32.mrf.mxu0
      %v667 = vadd.f32 0.0, %v666
      %v668 = vpop.f32.mrf.mxu0
      %v669 = vpop.f32.mrf.mxu0
      %v670 = vadd.f32 0.0, %v669
      %v671 = vpop.f32.mrf.mxu0
      %672 = vdwg.mxu0
      %vm673 = vcmask 130048
      %v674 = vsel %vm673, %v667, -inf
      %675 = vmax.xlane.f32.xlu0 %v674
      %v676 = vpop.xlane.xlu0 %675
      %v677 = vsel %vm673, %v670, -inf
      %678 = vmax.xlane.f32.xlu0 %v677
      %v679 = vpop.xlane.xlu0 %678
      %v680 = vsub.f32 %v667, %v676
      %v681 = vsub.f32 %v670, %v679
      %v682 = vmul.f32 %v680, 1.442695
      %v683 = vpow.pop %v682
      %v684 = vmul.f32 %v681, 1.442695
      %v685 = vpow.pop %v684
      %v686 = vsel %vm673, %v683, 0.0
      %687 = vadd.xlane.f32.xlu0 %v686
      %v688 = vpop.xlane.xlu0 %687
      %v689 = vsel %vm673, %v685, 0.0
      %690 = vadd.xlane.f32.xlu0 %v689
      %v691 = vpop.xlane.xlu0 %690
      %v692 = vrcp.pop %v688
      %v693 = vrcp.pop %v691
      %v694 = vmul.f32 %v683, %v692
      %v695 = vmul.f32 %v685, %v693
      %v696 = vpack.c.bf16 %v695, %v694
      %697 = vrot.lane.b32.xlu0 %v622, 64
      %v698 = vpop.permute.xlu0 %697
      %v701 = vsel %vm673, %v696, 0
      %703 = vmatprep.subr.bf16.mxu0 0
      %704 = vmatpush1.bf16.msra.mxu0 0
      %705 = vmatprep.subr.bf16.mxu0 0
      %706 = vmatpush1.bf16.msra.mxu0 0
      %707 = vmatprep.subr.bf16.mxu0 0
      %708 = vmatpush1.bf16.msra.mxu0 0
      %709 = vmatprep.subr.bf16.mxu0 0
      %710 = vmatpush1.bf16.msra.mxu0 0
      %711 = vmatprep.subr.bf16.mxu0 0
      %712 = vmatpush1.bf16.msra.mxu0 0
      %713 = vmatprep.subr.bf16.mxu0 0
      %714 = vmatpush1.bf16.msra.mxu0 0
      %715 = vmatprep.subr.bf16.mxu0 0
      %716 = vmatpush1.bf16.msra.mxu0 0
      %717 = vmatprep.subr.bf16.mxu0 0
      %718 = vmatpush1.bf16.msra.mxu0 %v698
      %719 = vmatprep.subr.bf16.mxu0 0
      %720 = vmatpush2.bf16.msra.mxu0 0
      %721 = vmatprep.subr.bf16.mxu0 0
      %722 = vmatpush2.bf16.msra.mxu0 0
      %723 = vmatprep.subr.bf16.mxu0 0
      %724 = vmatpush2.bf16.msra.mxu0 0
      %725 = vmatprep.subr.bf16.mxu0 0
      %726 = vmatpush2.bf16.msra.mxu0 0
      %727 = vmatprep.subr.bf16.mxu0 0
      %728 = vmatpush2.bf16.msra.mxu0 0
      %729 = vmatprep.subr.bf16.mxu0 0
      %730 = vmatpush2.bf16.msra.mxu0 0
      %731 = vmatprep.subr.bf16.mxu0 0
      %732 = vmatpush2.bf16.msra.mxu0 0
      %733 = vmatprep.subr.bf16.mxu0 0
      %734 = vmatpush2.bf16.msra.mxu0 0
      %735 = vmatprep.mubr.bf16.mxu0 0
      %736 = vmatmul.mubr.bf16.gmra.mxu0 %v701
      %v737 = vpop.f32.mrf.mxu0
      %v738 = vadd.f32 0.0, %v737
      %v739 = vpop.f32.mrf.mxu0
      %v740 = vpop.f32.mrf.mxu0
      %v741 = vadd.f32 0.0, %v740
      %v742 = vpop.f32.mrf.mxu0
      %743 = vdwg.mxu0
      %744 = vrot.lane.b32.xlu0 %v617, 120
      %v745 = vpop.permute.xlu0 %744
      %746 = vrot.lane.b32.xlu0 %v622, 88
      %v747 = vpop.permute.xlu0 %746
      %v749 = vsel %vm625, %v745, 0
      %v752 = vsel %vm625, %v747, 0
      %754 = vmatprep.subr.bf16.mxu0 0
      %755 = vmatpush1.bf16.xpose.msra.mxu0 0
      %756 = vmatprep.subr.bf16.mxu0 0
      %757 = vmatpush1.bf16.xpose.msra.mxu0 0
      %758 = vmatprep.subr.bf16.mxu0 0
      %759 = vmatpush1.bf16.xpose.msra.mxu0 0
      %760 = vmatprep.subr.bf16.mxu0 0
      %761 = vmatpush1.bf16.xpose.msra.mxu0 0
      %762 = vmatprep.subr.bf16.mxu0 0
      %763 = vmatpush1.bf16.xpose.msra.mxu0 0
      %764 = vmatprep.subr.bf16.mxu0 0
      %765 = vmatpush1.bf16.xpose.msra.mxu0 0
      %766 = vmatprep.subr.bf16.mxu0 0
      %767 = vmatpush1.bf16.xpose.msra.mxu0 0
      %768 = vmatprep.subr.bf16.mxu0 0
      %769 = vmatpush1.bf16.xpose.msra.mxu0 %v752
      %770 = vmatprep.subr.bf16.mxu0 0
      %771 = vmatpush2.bf16.xpose.msra.mxu0 0
      %772 = vmatprep.subr.bf16.mxu0 0
      %773 = vmatpush2.bf16.xpose.msra.mxu0 0
      %774 = vmatprep.subr.bf16.mxu0 0
      %775 = vmatpush2.bf16.xpose.msra.mxu0 0
      %776 = vmatprep.subr.bf16.mxu0 0
      %777 = vmatpush2.bf16.xpose.msra.mxu0 0
      %778 = vmatprep.subr.bf16.mxu0 0
      %779 = vmatpush2.bf16.xpose.msra.mxu0 0
      %780 = vmatprep.subr.bf16.mxu0 0
      %781 = vmatpush2.bf16.xpose.msra.mxu0 0
      %782 = vmatprep.subr.bf16.mxu0 0
      %783 = vmatpush2.bf16.xpose.msra.mxu0 0
      %784 = vmatprep.subr.bf16.mxu0 0
      %785 = vmatpush2.bf16.xpose.msra.mxu0 0
      %786 = vmatprep.mubr.bf16.mxu0 0
      %787 = vmatmul.mubr.bf16.gmra.mxu0 %v749
      %v788 = vpop.f32.mrf.mxu0
      %v789 = vadd.f32 0.0, %v788
      %v790 = vpop.f32.mrf.mxu0
      %v791 = vpop.f32.mrf.mxu0
      %v792 = vadd.f32 0.0, %v791
      %v793 = vpop.f32.mrf.mxu0
      %794 = vdwg.mxu0
      %v795 = vsel %vm673, %v789, -inf
      %796 = vmax.xlane.f32.xlu0 %v795
      %v797 = vpop.xlane.xlu0 %796
      %v798 = vsel %vm673, %v792, -inf
      %799 = vmax.xlane.f32.xlu0 %v798
      %v800 = vpop.xlane.xlu0 %799
      %v801 = vsub.f32 %v789, %v797
      %v802 = vsub.f32 %v792, %v800
      %v803 = vmul.f32 %v801, 1.442695
      %v804 = vpow.pop %v803
      %v805 = vmul.f32 %v802, 1.442695
      %v806 = vpow.pop %v805
      %v807 = vsel %vm673, %v804, 0.0
      %808 = vadd.xlane.f32.xlu0 %v807
      %v809 = vpop.xlane.xlu0 %808
      %v810 = vsel %vm673, %v806, 0.0
      %811 = vadd.xlane.f32.xlu0 %v810
      %v812 = vpop.xlane.xlu0 %811
      %v813 = vrcp.pop %v809
      %v814 = vrcp.pop %v812
      %v815 = vmul.f32 %v804, %v813
      %v816 = vmul.f32 %v806, %v814
      %v817 = vpack.c.bf16 %v816, %v815
      %818 = vrot.lane.b32.xlu0 %v622, 56
      %v819 = vpop.permute.xlu0 %818
      %v822 = vsel %vm673, %v817, 0
      %824 = vmatprep.subr.bf16.mxu0 0
      %825 = vmatpush1.bf16.msra.mxu0 0
      %826 = vmatprep.subr.bf16.mxu0 0
      %827 = vmatpush1.bf16.msra.mxu0 0
      %828 = vmatprep.subr.bf16.mxu0 0
      %829 = vmatpush1.bf16.msra.mxu0 0
      %830 = vmatprep.subr.bf16.mxu0 0
      %831 = vmatpush1.bf16.msra.mxu0 0
      %832 = vmatprep.subr.bf16.mxu0 0
      %833 = vmatpush1.bf16.msra.mxu0 0
      %834 = vmatprep.subr.bf16.mxu0 0
      %835 = vmatpush1.bf16.msra.mxu0 0
      %836 = vmatprep.subr.bf16.mxu0 0
      %837 = vmatpush1.bf16.msra.mxu0 0
      %838 = vmatprep.subr.bf16.mxu0 0
      %839 = vmatpush1.bf16.msra.mxu0 %v819
      %840 = vmatprep.subr.bf16.mxu0 0
      %841 = vmatpush2.bf16.msra.mxu0 0
      %842 = vmatprep.subr.bf16.mxu0 0
      %843 = vmatpush2.bf16.msra.mxu0 0
      %844 = vmatprep.subr.bf16.mxu0 0
      %845 = vmatpush2.bf16.msra.mxu0 0
      %846 = vmatprep.subr.bf16.mxu0 0
      %847 = vmatpush2.bf16.msra.mxu0 0
      %848 = vmatprep.subr.bf16.mxu0 0
      %849 = vmatpush2.bf16.msra.mxu0 0
      %850 = vmatprep.subr.bf16.mxu0 0
      %851 = vmatpush2.bf16.msra.mxu0 0
      %852 = vmatprep.subr.bf16.mxu0 0
      %853 = vmatpush2.bf16.msra.mxu0 0
      %854 = vmatprep.subr.bf16.mxu0 0
      %855 = vmatpush2.bf16.msra.mxu0 0
      %856 = vmatprep.mubr.bf16.mxu0 0
      %857 = vmatmul.mubr.bf16.gmra.mxu0 %v822
      %v858 = vpop.f32.mrf.mxu0
      %v859 = vadd.f32 0.0, %v858
      %v860 = vpop.f32.mrf.mxu0
      %v861 = vpop.f32.mrf.mxu0
      %v862 = vadd.f32 0.0, %v861
      %v863 = vpop.f32.mrf.mxu0
      %864 = vdwg.mxu0
      %865 = vrot.lane.b32.xlu0 %v617, 112
      %v866 = vpop.permute.xlu0 %865
      %867 = vrot.lane.b32.xlu0 %v622, 80
      %v868 = vpop.permute.xlu0 %867
      %v870 = vsel %vm625, %v866, 0
      %v873 = vsel %vm625, %v868, 0
      %875 = vmatprep.subr.bf16.mxu0 0
      %876 = vmatpush1.bf16.xpose.msra.mxu0 0
      %877 = vmatprep.subr.bf16.mxu0 0
      %878 = vmatpush1.bf16.xpose.msra.mxu0 0
      %879 = vmatprep.subr.bf16.mxu0 0
      %880 = vmatpush1.bf16.xpose.msra.mxu0 0
      %881 = vmatprep.subr.bf16.mxu0 0
      %882 = vmatpush1.bf16.xpose.msra.mxu0 0
      %883 = vmatprep.subr.bf16.mxu0 0
      %884 = vmatpush1.bf16.xpose.msra.mxu0 0
      %885 = vmatprep.subr.bf16.mxu0 0
      %886 = vmatpush1.bf16.xpose.msra.mxu0 0
      %887 = vmatprep.subr.bf16.mxu0 0
      %888 = vmatpush1.bf16.xpose.msra.mxu0 0
      %889 = vmatprep.subr.bf16.mxu0 0
      %890 = vmatpush1.bf16.xpose.msra.mxu0 %v873
      %891 = vmatprep.subr.bf16.mxu0 0
      %892 = vmatpush2.bf16.xpose.msra.mxu0 0
      %893 = vmatprep.subr.bf16.mxu0 0
      %894 = vmatpush2.bf16.xpose.msra.mxu0 0
      %895 = vmatprep.subr.bf16.mxu0 0
      %896 = vmatpush2.bf16.xpose.msra.mxu0 0
      %897 = vmatprep.subr.bf16.mxu0 0
      %898 = vmatpush2.bf16.xpose.msra.mxu0 0
      %899 = vmatprep.subr.bf16.mxu0 0
      %900 = vmatpush2.bf16.xpose.msra.mxu0 0
      %901 = vmatprep.subr.bf16.mxu0 0
      %902 = vmatpush2.bf16.xpose.msra.mxu0 0
      %903 = vmatprep.subr.bf16.mxu0 0
      %904 = vmatpush2.bf16.xpose.msra.mxu0 0
      %905 = vmatprep.subr.bf16.mxu0 0
      %906 = vmatpush2.bf16.xpose.msra.mxu0 0
      %907 = vmatprep.mubr.bf16.mxu0 0
      %908 = vmatmul.mubr.bf16.gmra.mxu0 %v870
      %v909 = vpop.f32.mrf.mxu0
      %v910 = vadd.f32 0.0, %v909
      %v911 = vpop.f32.mrf.mxu0
      %v912 = vpop.f32.mrf.mxu0
      %v913 = vadd.f32 0.0, %v912
      %v914 = vpop.f32.mrf.mxu0
      %915 = vdwg.mxu0
      %v916 = vsel %vm673, %v910, -inf
      %917 = vmax.xlane.f32.xlu0 %v916
      %v918 = vpop.xlane.xlu0 %917
      %v919 = vsel %vm673, %v913, -inf
      %920 = vmax.xlane.f32.xlu0 %v919
      %v921 = vpop.xlane.xlu0 %920
      %v922 = vsub.f32 %v910, %v918
      %v923 = vsub.f32 %v913, %v921
      %v924 = vmul.f32 %v922, 1.442695
      %v925 = vpow.pop %v924
      %v926 = vmul.f32 %v923, 1.442695
      %v927 = vpow.pop %v926
      %v928 = vsel %vm673, %v925, 0.0
      %929 = vadd.xlane.f32.xlu0 %v928
      %v930 = vpop.xlane.xlu0 %929
      %v931 = vsel %vm673, %v927, 0.0
      %932 = vadd.xlane.f32.xlu0 %v931
      %v933 = vpop.xlane.xlu0 %932
      %v934 = vrcp.pop %v930
      %v935 = vrcp.pop %v933
      %v936 = vmul.f32 %v925, %v934
      %v937 = vmul.f32 %v927, %v935
      %v938 = vpack.c.bf16 %v937, %v936
      %939 = vrot.lane.b32.xlu0 %v622, 48
      %v940 = vpop.permute.xlu0 %939
      %v943 = vsel %vm673, %v938, 0
      %945 = vmatprep.subr.bf16.mxu0 0
      %946 = vmatpush1.bf16.msra.mxu0 0
      %947 = vmatprep.subr.bf16.mxu0 0
      %948 = vmatpush1.bf16.msra.mxu0 0
      %949 = vmatprep.subr.bf16.mxu0 0
      %950 = vmatpush1.bf16.msra.mxu0 0
      %951 = vmatprep.subr.bf16.mxu0 0
      %952 = vmatpush1.bf16.msra.mxu0 0
      %953 = vmatprep.subr.bf16.mxu0 0
      %954 = vmatpush1.bf16.msra.mxu0 0
      %955 = vmatprep.subr.bf16.mxu0 0
      %956 = vmatpush1.bf16.msra.mxu0 0
      %957 = vmatprep.subr.bf16.mxu0 0
      %958 = vmatpush1.bf16.msra.mxu0 0
      %959 = vmatprep.subr.bf16.mxu0 0
      %960 = vmatpush1.bf16.msra.mxu0 %v940
      %961 = vmatprep.subr.bf16.mxu0 0
      %962 = vmatpush2.bf16.msra.mxu0 0
      %963 = vmatprep.subr.bf16.mxu0 0
      %964 = vmatpush2.bf16.msra.mxu0 0
      %965 = vmatprep.subr.bf16.mxu0 0
      %966 = vmatpush2.bf16.msra.mxu0 0
      %967 = vmatprep.subr.bf16.mxu0 0
      %968 = vmatpush2.bf16.msra.mxu0 0
      %969 = vmatprep.subr.bf16.mxu0 0
      %970 = vmatpush2.bf16.msra.mxu0 0
      %971 = vmatprep.subr.bf16.mxu0 0
      %972 = vmatpush2.bf16.msra.mxu0 0
      %973 = vmatprep.subr.bf16.mxu0 0
      %974 = vmatpush2.bf16.msra.mxu0 0
      %975 = vmatprep.subr.bf16.mxu0 0
      %976 = vmatpush2.bf16.msra.mxu0 0
      %977 = vmatprep.mubr.bf16.mxu0 0
      %978 = vmatmul.mubr.bf16.gmra.mxu0 %v943
      %v979 = vpop.f32.mrf.mxu0
      %v980 = vadd.f32 0.0, %v979
      %v981 = vpop.f32.mrf.mxu0
      %v982 = vpop.f32.mrf.mxu0
      %v983 = vadd.f32 0.0, %v982
      %v984 = vpop.f32.mrf.mxu0
      %985 = vdwg.mxu0
      %986 = vrot.lane.b32.xlu0 %v617, 104
      %v987 = vpop.permute.xlu0 %986
      %988 = vrot.lane.b32.xlu0 %v622, 72
      %v989 = vpop.permute.xlu0 %988
      %v991 = vsel %vm625, %v987, 0
      %v994 = vsel %vm625, %v989, 0
      %996 = vmatprep.subr.bf16.mxu0 0
      %997 = vmatpush1.bf16.xpose.msra.mxu0 0
      %998 = vmatprep.subr.bf16.mxu0 0
      %999 = vmatpush1.bf16.xpose.msra.mxu0 0
      %1000 = vmatprep.subr.bf16.mxu0 0
      %1001 = vmatpush1.bf16.xpose.msra.mxu0 0
      %1002 = vmatprep.subr.bf16.mxu0 0
      %1003 = vmatpush1.bf16.xpose.msra.mxu0 0
      %1004 = vmatprep.subr.bf16.mxu0 0
      %1005 = vmatpush1.bf16.xpose.msra.mxu0 0
      %1006 = vmatprep.subr.bf16.mxu0 0
      %1007 = vmatpush1.bf16.xpose.msra.mxu0 0
      %1008 = vmatprep.subr.bf16.mxu0 0
      %1009 = vmatpush1.bf16.xpose.msra.mxu0 0
      %1010 = vmatprep.subr.bf16.mxu0 0
      %1011 = vmatpush1.bf16.xpose.msra.mxu0 %v994
      %1012 = vmatprep.subr.bf16.mxu0 0
      %1013 = vmatpush2.bf16.xpose.msra.mxu0 0
      %1014 = vmatprep.subr.bf16.mxu0 0
      %1015 = vmatpush2.bf16.xpose.msra.mxu0 0
      %1016 = vmatprep.subr.bf16.mxu0 0
      %1017 = vmatpush2.bf16.xpose.msra.mxu0 0
      %1018 = vmatprep.subr.bf16.mxu0 0
      %1019 = vmatpush2.bf16.xpose.msra.mxu0 0
      %1020 = vmatprep.subr.bf16.mxu0 0
      %1021 = vmatpush2.bf16.xpose.msra.mxu0 0
      %1022 = vmatprep.subr.bf16.mxu0 0
      %1023 = vmatpush2.bf16.xpose.msra.mxu0 0
      %1024 = vmatprep.subr.bf16.mxu0 0
      %1025 = vmatpush2.bf16.xpose.msra.mxu0 0
      %1026 = vmatprep.subr.bf16.mxu0 0
      %1027 = vmatpush2.bf16.xpose.msra.mxu0 0
      %1028 = vmatprep.mubr.bf16.mxu0 0
      %1029 = vmatmul.mubr.bf16.gmra.mxu0 %v991
      %v1030 = vpop.f32.mrf.mxu0
      %v1031 = vadd.f32 0.0, %v1030
      %v1032 = vpop.f32.mrf.mxu0
      %v1033 = vpop.f32.mrf.mxu0
      %v1034 = vadd.f32 0.0, %v1033
      %v1035 = vpop.f32.mrf.mxu0
      %1036 = vdwg.mxu0
      %v1037 = vsel %vm673, %v1031, -inf
      %1038 = vmax.xlane.f32.xlu0 %v1037
      %v1039 = vpop.xlane.xlu0 %1038
      %v1040 = vsel %vm673, %v1034, -inf
      %1041 = vmax.xlane.f32.xlu0 %v1040
      %v1042 = vpop.xlane.xlu0 %1041
      %v1043 = vsub.f32 %v1031, %v1039
      %v1044 = vsub.f32 %v1034, %v1042
      %v1045 = vmul.f32 %v1043, 1.442695
      %v1046 = vpow.pop %v1045
      %v1047 = vmul.f32 %v1044, 1.442695
      %v1048 = vpow.pop %v1047
      %v1049 = vsel %vm673, %v1046, 0.0
      %1050 = vadd.xlane.f32.xlu0 %v1049
      %v1051 = vpop.xlane.xlu0 %1050
      %v1052 = vsel %vm673, %v1048, 0.0
      %1053 = vadd.xlane.f32.xlu0 %v1052
      %v1054 = vpop.xlane.xlu0 %1053
      %v1055 = vrcp.pop %v1051
      %v1056 = vrcp.pop %v1054
      %v1057 = vmul.f32 %v1046, %v1055
      %v1058 = vmul.f32 %v1048, %v1056
      %v1059 = vpack.c.bf16 %v1058, %v1057
      %1060 = vrot.lane.b32.xlu0 %v622, 40
      %v1061 = vpop.permute.xlu0 %1060
      %v1064 = vsel %vm673, %v1059, 0
      %1066 = vmatprep.subr.bf16.mxu0 0
      %1067 = vmatpush1.bf16.msra.mxu0 0
      %1068 = vmatprep.subr.bf16.mxu0 0
      %1069 = vmatpush1.bf16.msra.mxu0 0
      %1070 = vmatprep.subr.bf16.mxu0 0
      %1071 = vmatpush1.bf16.msra.mxu0 0
      %1072 = vmatprep.subr.bf16.mxu0 0
      %1073 = vmatpush1.bf16.msra.mxu0 0
      %1074 = vmatprep.subr.bf16.mxu0 0
      %1075 = vmatpush1.bf16.msra.mxu0 0
      %1076 = vmatprep.subr.bf16.mxu0 0
      %1077 = vmatpush1.bf16.msra.mxu0 0
      %1078 = vmatprep.subr.bf16.mxu0 0
      %1079 = vmatpush1.bf16.msra.mxu0 0
      %1080 = vmatprep.subr.bf16.mxu0 0
      %1081 = vmatpush1.bf16.msra.mxu0 %v1061
      %1082 = vmatprep.subr.bf16.mxu0 0
      %1083 = vmatpush2.bf16.msra.mxu0 0
      %1084 = vmatprep.subr.bf16.mxu0 0
      %1085 = vmatpush2.bf16.msra.mxu0 0
      %1086 = vmatprep.subr.bf16.mxu0 0
      %1087 = vmatpush2.bf16.msra.mxu0 0
      %1088 = vmatprep.subr.bf16.mxu0 0
      %1089 = vmatpush2.bf16.msra.mxu0 0
      %1090 = vmatprep.subr.bf16.mxu0 0
      %1091 = vmatpush2.bf16.msra.mxu0 0
      %1092 = vmatprep.subr.bf16.mxu0 0
      %1093 = vmatpush2.bf16.msra.mxu0 0
      %1094 = vmatprep.subr.bf16.mxu0 0
      %1095 = vmatpush2.bf16.msra.mxu0 0
      %1096 = vmatprep.subr.bf16.mxu0 0
      %1097 = vmatpush2.bf16.msra.mxu0 0
      %1098 = vmatprep.mubr.bf16.mxu0 0
      %1099 = vmatmul.mubr.bf16.gmra.mxu0 %v1064
      %v1100 = vpop.f32.mrf.mxu0
      %v1101 = vadd.f32 0.0, %v1100
      %v1102 = vpop.f32.mrf.mxu0
      %v1103 = vpop.f32.mrf.mxu0
      %v1104 = vadd.f32 0.0, %v1103
      %v1105 = vpop.f32.mrf.mxu0
      %1106 = vdwg.mxu0
      %1109 = vrot.lane.b32.xlu0 %v859, 8
      %v1110 = vpop.permute.xlu0 %1109
      %1111 = vrot.lane.b32.xlu0 %v862, 8
      %v1112 = vpop.permute.xlu0 %1111
      %1117 = vrot.lane.b32.xlu0 %v980, 16
      %v1118 = vpop.permute.xlu0 %1117
      %1119 = vrot.lane.b32.xlu0 %v983, 16
      %v1120 = vpop.permute.xlu0 %1119
      %1125 = vrot.lane.b32.xlu0 %v1101, 24
      %v1126 = vpop.permute.xlu0 %1125
      %1127 = vrot.lane.b32.xlu0 %v1104, 24
      %v1128 = vpop.permute.xlu0 %1127
      %v1131 = vsel %vm625, %v738, %v1110
      %v1132 = vsel %vm625, %v741, %v1112
      %v1133 = vsel %vm673, %v1131, %v1118
      %v1134 = vsel %vm673, %v1132, %v1120
      %vm1135 = vcmask 195584
      %v1136 = vsel %vm1135, %v1133, %v1126
      %v1137 = vsel %vm1135, %v1134, %v1128
      %v1138 = vpack.c.bf16 %v1137, %v1136
      %v1139 = vld [vmem:[%s5] sm:$0xf]
      %v1140 = vld [vmem:[%s5 + $0x4] sm:$0xf]
      %v1141 = vld [vmem:[%s5 + $0x8] sm:$0xf]
      %v1142 = vld [vmem:[%s5 + $0xc] sm:$0xf]
      %v1147 = vunpack.c.l.b16 %v1139
      %v1148 = vunpack.c.l.b16 %v1140
      %v1149 = vunpack.c.l.b16 %v1141
      %v1150 = vunpack.c.l.b16 %v1142
      %v1151 = vpack.c.b16 %v1148, %v1147
      %v1152 = vpack.c.b16 %v1150, %v1149
      %vm1155 = vcmask 261120
      %v1157 = vsel %vm1155, %v1138, 0
      %1159 = vmatprep.subr.bf16.mxu0 0
      %1160 = vmatpush1.bf16.msra.mxu0 0
      %1161 = vmatprep.subr.bf16.mxu0 0
      %1162 = vmatpush1.bf16.msra.mxu0 0
      %1163 = vmatprep.subr.bf16.mxu0 0
      %1164 = vmatpush1.bf16.msra.mxu0 0
      %1165 = vmatprep.subr.bf16.mxu0 0
      %1166 = vmatpush1.bf16.msra.mxu0 0
      %1167 = vmatprep.subr.bf16.mxu0 0
      %1168 = vmatpush1.bf16.msra.mxu0 0
      %1169 = vmatprep.subr.bf16.mxu0 0
      %1170 = vmatpush1.bf16.msra.mxu0 0
      %1171 = vmatprep.subr.bf16.mxu0 0
      %1172 = vmatpush1.bf16.msra.mxu0 %v1152
      %1173 = vmatprep.subr.bf16.mxu0 0
      %1174 = vmatpush1.bf16.msra.mxu0 %v1151
      %1175 = vmatprep.subr.bf16.mxu0 0
      %1176 = vmatpush2.bf16.msra.mxu0 0
      %1177 = vmatprep.subr.bf16.mxu0 0
      %1178 = vmatpush2.bf16.msra.mxu0 0
      %1179 = vmatprep.subr.bf16.mxu0 0
      %1180 = vmatpush2.bf16.msra.mxu0 0
      %1181 = vmatprep.subr.bf16.mxu0 0
      %1182 = vmatpush2.bf16.msra.mxu0 0
      %1183 = vmatprep.subr.bf16.mxu0 0
      %1184 = vmatpush2.bf16.msra.mxu0 0
      %1185 = vmatprep.subr.bf16.mxu0 0
      %1186 = vmatpush2.bf16.msra.mxu0 0
      %1187 = vmatprep.subr.bf16.mxu0 0
      %1188 = vmatpush2.bf16.msra.mxu0 0
      %1189 = vmatprep.subr.bf16.mxu0 0
      %1190 = vmatpush2.bf16.msra.mxu0 0
      %1191 = vmatprep.mubr.bf16.mxu0 0
      %1192 = vmatmul.mubr.bf16.gmra.mxu0 %v1157
      %v1193 = vpop.f32.mrf.mxu0
      %v1194 = vadd.f32 0.0, %v1193
      %v1195 = vpop.f32.mrf.mxu0
      %v1196 = vpop.f32.mrf.mxu0
      %v1197 = vadd.f32 0.0, %v1196
      %v1198 = vpop.f32.mrf.mxu0
      %1199 = vdwg.mxu0
      %v1200 = vadd.f32 %v605, %v1194
      %v1201 = vadd.f32 %v606, %v1197
      %v1202 = vld [vmem:[%s6] sm:$0x1]
      %v1204 = vlaneseq
      %v1205 = vshrl.u32 %v1204, 7
      %v1206 = vsub.s32 0, %v1205
      %v1207 = vrot.slane %v1202, %v1206
      %v1209 = vadd.f32 %v1200, %v1207
      %v1210 = vadd.f32 %v1201, %v1207
      %v1211 = vld [vmem:[%s7] sm:$0x1]
      %v1212 = vld [vmem:[%s8] sm:$0x1]
      %v1213 = vsel %vm1155, %v1209, 0.0
      %1214 = vadd.xlane.f32.xlu0 %v1213
      %v1215 = vpop.xlane.xlu0 %1214
      %v1216 = vsel %vm1155, %v1210, 0.0
      %1217 = vadd.xlane.f32.xlu0 %v1216
      %v1218 = vpop.xlane.xlu0 %1217
      %v1219 = vrcp.pop 32.0
      %v1220 = vmul.f32 %v1215, %v1219
      %v1221 = vmul.f32 %v1218, %v1219
      %v1222 = vsub.f32 %v1209, %v1220
      %v1223 = vsub.f32 %v1210, %v1221
      %v1224 = vmul.f32 %v1222, %v1222
      %v1225 = vmul.f32 %v1223, %v1223
      %v1226 = vsel %vm1155, %v1224, 0.0
      %1227 = vadd.xlane.f32.xlu0 %v1226
      %v1228 = vpop.xlane.xlu0 %1227
      %v1229 = vsel %vm1155, %v1225, 0.0
      %1230 = vadd.xlane.f32.xlu0 %v1229
      %v1231 = vpop.xlane.xlu0 %1230
      %v1232 = vmul.f32 %v1228, %v1219
      %v1233 = vmul.f32 %v1231, %v1219
      %v1234 = vadd.f32 %v1232, 1e-05
      %v1235 = vadd.f32 %v1233, 1e-05
      %v1236 = vrsqrt.pop %v1234
      %v1237 = vrsqrt.pop %v1235
      %v1238 = vmul.f32 %v1222, %v1236
      %v1239 = vmul.f32 %v1223, %v1237
      %v1241 = vlaneseq
      %v1242 = vshrl.u32 %v1241, 7
      %v1243 = vsub.s32 0, %v1242
      %v1244 = vrot.slane %v1211, %v1243
      %v1246 = vmul.f32 %v1238, %v1244
      %v1247 = vmul.f32 %v1239, %v1244
      %v1249 = vlaneseq
      %v1250 = vshrl.u32 %v1249, 7
      %v1251 = vsub.s32 0, %v1250
      %v1252 = vrot.slane %v1212, %v1251
      %v1254 = vadd.f32 %v1246, %v1252
      %v1255 = vadd.f32 %v1247, %v1252
      %v1256 = vpack.c.bf16 %v1255, %v1254
      %v1257 = vld [vmem:[%s9] sm:$0xf]
      %v1258 = vld [vmem:[%s9 + $0x4] sm:$0xf]
      %v1259 = vld [vmem:[%s9 + $0x8] sm:$0xf]
      %v1260 = vld [vmem:[%s9 + $0xc] sm:$0xf]
      %v1261 = vld [vmem:[%s10] sm:$0x1]
      %v1263 = vlaneseq
      %v1264 = vshrl.u32 %v1263, 7
      %v1265 = vsub.s32 0, %v1264
      %v1266 = vrot.slane %v1261, %v1265
      %v1272 = vunpack.c.l.b16 %v1257
      %v1273 = vunpack.c.l.b16 %v1258
      %v1274 = vunpack.c.l.b16 %v1259
      %v1275 = vunpack.c.l.b16 %v1260
      %v1276 = vpack.c.b16 %v1273, %v1272
      %v1277 = vpack.c.b16 %v1275, %v1274
      %v1281 = vsel %vm1155, %v1256, 0
      %1283 = vmatprep.subr.bf16.mxu0 0
      %1284 = vmatpush1.bf16.msra.mxu0 0
      %1285 = vmatprep.subr.bf16.mxu0 0
      %1286 = vmatpush1.bf16.msra.mxu0 0
      %1287 = vmatprep.subr.bf16.mxu0 0
      %1288 = vmatpush1.bf16.msra.mxu0 0
      %1289 = vmatprep.subr.bf16.mxu0 0
      %1290 = vmatpush1.bf16.msra.mxu0 0
      %1291 = vmatprep.subr.bf16.mxu0 0
      %1292 = vmatpush1.bf16.msra.mxu0 0
      %1293 = vmatprep.subr.bf16.mxu0 0
      %1294 = vmatpush1.bf16.msra.mxu0 0
      %1295 = vmatprep.subr.bf16.mxu0 0
      %1296 = vmatpush1.bf16.msra.mxu0 %v1277
      %1297 = vmatprep.subr.bf16.mxu0 0
      %1298 = vmatpush1.bf16.msra.mxu0 %v1276
      %1299 = vmatprep.subr.bf16.mxu0 0
      %1300 = vmatpush2.bf16.msra.mxu0 0
      %1301 = vmatprep.subr.bf16.mxu0 0
      %1302 = vmatpush2.bf16.msra.mxu0 0
      %1303 = vmatprep.subr.bf16.mxu0 0
      %1304 = vmatpush2.bf16.msra.mxu0 0
      %1305 = vmatprep.subr.bf16.mxu0 0
      %1306 = vmatpush2.bf16.msra.mxu0 0
      %1307 = vmatprep.subr.bf16.mxu0 0
      %1308 = vmatpush2.bf16.msra.mxu0 0
      %1309 = vmatprep.subr.bf16.mxu0 0
      %1310 = vmatpush2.bf16.msra.mxu0 0
      %1311 = vmatprep.subr.bf16.mxu0 0
      %1312 = vmatpush2.bf16.msra.mxu0 0
      %1313 = vmatprep.subr.bf16.mxu0 0
      %1314 = vmatpush2.bf16.msra.mxu0 0
      %1315 = vmatprep.mubr.bf16.mxu0 0
      %1316 = vmatmul.mubr.bf16.gmra.mxu0 %v1281
      %v1317 = vpop.f32.mrf.mxu0
      %v1318 = vadd.f32 %v1266, %v1317
      %v1319 = vpop.f32.mrf.mxu0
      %v1320 = vpop.f32.mrf.mxu0
      %v1321 = vadd.f32 %v1266, %v1320
      %v1322 = vpop.f32.mrf.mxu0
      %1323 = vdwg.mxu0
      %v1324 = vmul.f32 %v1318, %v1318
      %v1325 = vmul.f32 %v1321, %v1321
      %v1326 = vmul.f32 %v1318, %v1324
      %v1327 = vmul.f32 %v1321, %v1325
      %v1328 = vmul.f32 %v1326, 0.044715
      %v1329 = vmul.f32 %v1327, 0.044715
      %v1330 = vadd.f32 %v1318, %v1328
      %v1331 = vadd.f32 %v1321, %v1329
      %v1332 = vmul.f32 %v1330, 0.7978846
      %v1333 = vmul.f32 %v1331, 0.7978846
      %v1334 = vtanh.pop %v1332
      %v1335 = vtanh.pop %v1333
      %v1336 = vadd.f32 %v1334, 1.0
      %v1337 = vadd.f32 %v1335, 1.0
      %v1338 = vmul.f32 %v1336, 0.5
      %v1339 = vmul.f32 %v1337, 0.5
      %v1340 = vmul.f32 %v1318, %v1338
      %v1341 = vmul.f32 %v1321, %v1339
      %v1342 = vpack.c.bf16 %v1341, %v1340
      %v1343 = vld [vmem:[%s11] sm:$0xf]
      %v1344 = vld [vmem:[%s11 + $0x4] sm:$0xf]
      %v1345 = vld [vmem:[%s11 + $0x8] sm:$0xf]
      %v1346 = vld [vmem:[%s11 + $0xc] sm:$0xf]
      %v1347 = vld [vmem:[%s11 + $0x10] sm:$0xf]
      %v1348 = vld [vmem:[%s11 + $0x14] sm:$0xf]
      %v1349 = vld [vmem:[%s11 + $0x18] sm:$0xf]
      %v1350 = vld [vmem:[%s11 + $0x1c] sm:$0xf]
      %v1351 = vld [vmem:[%s11 + $0x20] sm:$0xf]
      %v1352 = vld [vmem:[%s11 + $0x24] sm:$0xf]
      %v1353 = vld [vmem:[%s11 + $0x28] sm:$0xf]
      %v1354 = vld [vmem:[%s11 + $0x2c] sm:$0xf]
      %v1355 = vld [vmem:[%s11 + $0x30] sm:$0xf]
      %v1356 = vld [vmem:[%s11 + $0x34] sm:$0xf]
      %v1357 = vld [vmem:[%s11 + $0x38] sm:$0xf]
      %v1358 = vld [vmem:[%s11 + $0x3c] sm:$0xf]
      %v1359 = vld [vmem:[%s12] sm:$0x1]
      %v1361 = vlaneseq
      %v1362 = vshrl.u32 %v1361, 7
      %v1363 = vsub.s32 0, %v1362
      %v1364 = vrot.slane %v1359, %v1363
      %v1382 = vunpack.c.l.b16 %v1343
      %v1383 = vunpack.c.l.b16 %v1344
      %v1384 = vunpack.c.l.b16 %v1345
      %v1385 = vunpack.c.l.b16 %v1346
      %v1386 = vunpack.c.l.b16 %v1347
      %v1387 = vunpack.c.l.b16 %v1348
      %v1388 = vunpack.c.l.b16 %v1349
      %v1389 = vunpack.c.l.b16 %v1350
      %v1390 = vunpack.c.l.b16 %v1351
      %v1391 = vunpack.c.l.b16 %v1352
      %v1392 = vunpack.c.l.b16 %v1353
      %v1393 = vunpack.c.l.b16 %v1354
      %v1394 = vunpack.c.l.b16 %v1355
      %v1395 = vunpack.c.l.b16 %v1356
      %v1396 = vunpack.c.l.b16 %v1357
      %v1397 = vunpack.c.l.b16 %v1358
      %v1398 = vpack.c.b16 %v1383, %v1382
      %v1399 = vpack.c.b16 %v1385, %v1384
      %v1400 = vpack.c.b16 %v1387, %v1386
      %v1401 = vpack.c.b16 %v1389, %v1388
      %v1402 = vpack.c.b16 %v1391, %v1390
      %v1403 = vpack.c.b16 %v1393, %v1392
      %v1404 = vpack.c.b16 %v1395, %v1394
      %v1405 = vpack.c.b16 %v1397, %v1396
      %1414 = vmatprep.subr.bf16.mxu0 0
      %1415 = vmatpush1.bf16.msra.mxu0 %v1405
      %1416 = vmatprep.subr.bf16.mxu0 0
      %1417 = vmatpush1.bf16.msra.mxu0 %v1404
      %1418 = vmatprep.subr.bf16.mxu0 0
      %1419 = vmatpush1.bf16.msra.mxu0 %v1403
      %1420 = vmatprep.subr.bf16.mxu0 0
      %1421 = vmatpush1.bf16.msra.mxu0 %v1402
      %1422 = vmatprep.subr.bf16.mxu0 0
      %1423 = vmatpush1.bf16.msra.mxu0 %v1401
      %1424 = vmatprep.subr.bf16.mxu0 0
      %1425 = vmatpush1.bf16.msra.mxu0 %v1400
      %1426 = vmatprep.subr.bf16.mxu0 0
      %1427 = vmatpush1.bf16.msra.mxu0 %v1399
      %1428 = vmatprep.subr.bf16.mxu0 0
      %1429 = vmatpush1.bf16.msra.mxu0 %v1398
      %1430 = vmatprep.subr.bf16.mxu0 0
      %1431 = vmatpush2.bf16.msra.mxu0 0
      %1432 = vmatprep.subr.bf16.mxu0 0
      %1433 = vmatpush2.bf16.msra.mxu0 0
      %1434 = vmatprep.subr.bf16.mxu0 0
      %1435 = vmatpush2.bf16.msra.mxu0 0
      %1436 = vmatprep.subr.bf16.mxu0 0
      %1437 = vmatpush2.bf16.msra.mxu0 0
      %1438 = vmatprep.subr.bf16.mxu0 0
      %1439 = vmatpush2.bf16.msra.mxu0 0
      %1440 = vmatprep.subr.bf16.mxu0 0
      %1441 = vmatpush2.bf16.msra.mxu0 0
      %1442 = vmatprep.subr.bf16.mxu0 0
      %1443 = vmatpush2.bf16.msra.mxu0 0
      %1444 = vmatprep.subr.bf16.mxu0 0
      %1445 = vmatpush2.bf16.msra.mxu0 0
      %1446 = vmatprep.mubr.bf16.mxu0 0
      %1447 = vmatmul.mubr.bf16.gmra.mxu0 %v1342
      %v1448 = vpop.f32.mrf.mxu0
      %v1449 = vadd.f32 %v1364, %v1448
      %v1450 = vpop.f32.mrf.mxu0
      %v1451 = vpop.f32.mrf.mxu0
      %v1452 = vadd.f32 %v1364, %v1451
      %v1453 = vpop.f32.mrf.mxu0
      %1454 = vdwg.mxu0
      %v1455 = vadd.f32 %v1209, %v1449
      %v1456 = vadd.f32 %v1210, %v1452
      %v1457 = vpack.c.bf16 %v1456, %v1455
      %v1459 = vunpack.c.l.b16 %v1457
      %v1460 = vunpack.c.h.b16 %v1457
      %v1461 = vpack.c.b16 %v1459, %v1459
      %v1462 = vpack.c.b16 %v1460, %v1460
      %vm1465 = vcmask 257024
      %1466 = vst.msk [vmem:[%s462] sm:$0xf] %vm1465, %v1461
      %1467 = vst.msk [vmem:[%s462 + $0x4] sm:$0xf] %vm1465, %v1462
      %s1468 = smul.u32 2, %s29
      %p1469 = scmp.lt.s32.totalorder %s28, 1
      %s1470 = scalar_select %p1469, %s28, 1
      %p1471 = scmp.lt.s32.totalorder %s1468, 1
      %s1472 = scalar_select %p1471, %s1468, 1
      %s1473 = smul.addr %s1470, 2
      %s1474 = sadd.s32 %s1472, %s1473
      %s1475 = smul.addr %s1474, 4
      %s1476 = scalar_lea.vmem %s13, %s1475
      // Predicated region
      $region77: #{maxvit2_forward.5} parent=71 // pred_check
        %p1477 = pneg %p334
      $region78: #{maxvit2_forward.5} parent=71 // pred_check_branch
        %1479 = sbr.rel (%p1477) target = $region80
      $region79: #{maxvit2_forward.5} parent=71 // pred_region
        %s1480 = smul.u32 2, %s29
      $region80: #{maxvit2_forward.5} parent=71 // pred_fallthru
        _
    $region72: #{maxvit2_forward.5} parent=5 // pred_fallthru
      _
    %p1481 = scmp.le.s32.totalorder 2, %s19
    // Predicated region
    $region81: #{maxvit2_forward.5} parent=5 // pred_check
      %p1482 = pneg %p1481
    $region82: #{maxvit2_forward.5} parent=5 // pred_check_branch
      %1484 = sbr.rel (%p1482) target = $region84
    $region83: #{maxvit2_forward.5} parent=5 // pred_region
      %s1485 = ssub.s32 %s19, 2
      // Predicated region
      $region85: #{maxvit2_forward.5} parent=83 // pred_check
        %p1486 = pneg %p340
      $region86: #{maxvit2_forward.5} parent=83 // pred_check_branch
        %1488 = sbr.rel (%p1486) target = $region88
      $region87: #{maxvit2_forward.5} parent=83 // pred_region
        %s1489 = smul.u32 2, %s31
        %p1490 = scmp.lt.s32.totalorder %s30, 1
        %s1491 = scalar_select %p1490, %s30, 1
        %p1492 = scmp.lt.s32.totalorder %s1489, 1
        %s1493 = scalar_select %p1492, %s1489, 1
        %s1494 = smul.addr %s1491, 2
        %s1495 = sadd.s32 %s1493, %s1494
        %s1496 = smul.addr %s1495, 4
        %s1497 = scalar_lea.vmem %s13, %s1496
      $region88: #{maxvit2_forward.5} parent=83 // pred_fallthru
        _
    $region84: #{maxvit2_forward.5} parent=5 // pred_fallthru
      _
  $region6: #{maxvit2_forward.5} parent=0 // loop_footer
    %s23 = sadd.s32 1, %s19
  $region7: #{maxvit2_forward.5} parent=0 // loop_footer_branch
    %18 = sbr.rel target = $region3
  $region8: #{maxvit2_forward.5} parent=0 // loop_exit
    _

// kernel: maxvit2_forward.7
$region0: #{maxvit2_forward.7}
  #allocation0 [shape = 'u32[]', space=smem, size = 0x4, offset = 0x4, fixed_abs, tag = 'smem constant byte address 0x4 - core index']
  #allocation1 [shape = 'u32[144,128]{1,0:T(1,128)}', space=vmem, size = 0x12000, scoped, tag = 'internal scratch']
  %s0 = inlined_call_operand.vmem [shape: bf16[32,32], index: 0, kind: input, shape index: {}]
  %s1 = inlined_call_operand.vmem [shape: f32[1,32], index: 1, kind: input, shape index: {}]
  %s2 = inlined_call_operand.vmem [shape: f32[1,32], index: 2, kind: input, shape index: {}]
  %s3 = inlined_call_operand.vmem [shape: bf16[32,192], index: 3, kind: input, shape index: {}]
  %s4 = inlined_call_operand.vmem [shape: f32[1,192], index: 4, kind: input, shape index: {}]
  %s5 = inlined_call_operand.vmem [shape: f32[32,192], index: 5, kind: output, shape index: {}]
  %s6 = sld [smem:[#allocation0]]
  $region30: #{maxvit2_forward.7} parent=0
    _
  %s8 = ssub.s32 1, %s6
  %s9 = scalar_select 0, %s8, %s6
  // Predicated region
  $region2: #{maxvit2_forward.7} parent=0 // pred_check
    _
  $region3: #{maxvit2_forward.7} parent=0 // pred_check_branch
    %11 = sbr.rel (0) target = $region5
  $region4: #{maxvit2_forward.7} parent=0 // pred_region
    _
  $region5: #{maxvit2_forward.7} parent=0 // pred_fallthru
    _
  // Predicated region
  $region6: #{maxvit2_forward.7} parent=0 // pred_check
    _
  $region7: #{maxvit2_forward.7} parent=0 // pred_check_branch
    %13 = sbr.rel (0) target = $region9
  $region8: #{maxvit2_forward.7} parent=0 // pred_region
    _
  $region9: #{maxvit2_forward.7} parent=0 // pred_fallthru
    _
  // Predicated region
  $region10: #{maxvit2_forward.7} parent=0 // pred_check
    _
  $region11: #{maxvit2_forward.7} parent=0 // pred_check_branch
    %15 = sbr.rel (0) target = $region13
  $region12: #{maxvit2_forward.7} parent=0 // pred_region
    _
  $region13: #{maxvit2_forward.7} parent=0 // pred_fallthru
    _
  // Predicated region
  $region14: #{maxvit2_forward.7} parent=0 // pred_check
    _
  $region15: #{maxvit2_forward.7} parent=0 // pred_check_branch
    %17 = sbr.rel (0) target = $region17
  $region16: #{maxvit2_forward.7} parent=0 // pred_region
    _
  $region17: #{maxvit2_forward.7} parent=0 // pred_fallthru
    _
  // Predicated region
  $region18: #{maxvit2_forward.7} parent=0 // pred_check
    _
  $region19: #{maxvit2_forward.7} parent=0 // pred_check_branch
    %19 = sbr.rel (0) target = $region21
  $region20: #{maxvit2_forward.7} parent=0 // pred_region
    _
  $region21: #{maxvit2_forward.7} parent=0 // pred_fallthru
    _
  %v21 = vld [vmem:[%s0] sm:$0xf]
  %v22 = vld [vmem:[%s0 + $0x4] sm:$0xf]
  %v23 = vld [vmem:[%s0 + $0x8] sm:$0xf]
  %v24 = vld [vmem:[%s0 + $0xc] sm:$0xf]
  %v25 = vunpack.c.l.bf16 %v21
  %v26 = vunpack.c.l.bf16 %v22
  %v27 = vunpack.c.l.bf16 %v23
  %v28 = vunpack.c.l.bf16 %v24
  %v29 = vld [vmem:[%s1] sm:$0x1]
  %v30 = vld [vmem:[%s2] sm:$0x1]
  %vm31 = vcmask 261120
  %v32 = vsel %vm31, %v25, 0.0
  %33 = vadd.xlane.f32.xlu0 %v32
  %v34 = vpop.xlane.xlu0 %33
  %v35 = vsel %vm31, %v26, 0.0
  %36 = vadd.xlane.f32.xlu0 %v35
  %v37 = vpop.xlane.xlu0 %36
  %v38 = vsel %vm31, %v27, 0.0
  %39 = vadd.xlane.f32.xlu0 %v38
  %v40 = vpop.xlane.xlu0 %39
  %v41 = vsel %vm31, %v28, 0.0
  %42 = vadd.xlane.f32.xlu0 %v41
  %v43 = vpop.xlane.xlu0 %42
  %v44 = vrcp.pop 32.0
  %v45 = vmul.f32 %v34, %v44
  %v46 = vmul.f32 %v37, %v44
  %v47 = vmul.f32 %v40, %v44
  %v48 = vmul.f32 %v43, %v44
  %v49 = vsub.f32 %v25, %v45
  %v50 = vsub.f32 %v26, %v46
  %v51 = vsub.f32 %v27, %v47
  %v52 = vsub.f32 %v28, %v48
  %v53 = vmul.f32 %v49, %v49
  %v54 = vmul.f32 %v50, %v50
  %v55 = vmul.f32 %v51, %v51
  %v56 = vmul.f32 %v52, %v52
  %v57 = vsel %vm31, %v53, 0.0
  %58 = vadd.xlane.f32.xlu0 %v57
  %v59 = vpop.xlane.xlu0 %58
  %v60 = vsel %vm31, %v54, 0.0
  %61 = vadd.xlane.f32.xlu0 %v60
  %v62 = vpop.xlane.xlu0 %61
  %v63 = vsel %vm31, %v55, 0.0
  %64 = vadd.xlane.f32.xlu0 %v63
  %v65 = vpop.xlane.xlu0 %64
  %v66 = vsel %vm31, %v56, 0.0
  %67 = vadd.xlane.f32.xlu0 %v66
  %v68 = vpop.xlane.xlu0 %67
  %v69 = vmul.f32 %v59, %v44
  %v70 = vmul.f32 %v62, %v44
  %v71 = vmul.f32 %v65, %v44
  %v72 = vmul.f32 %v68, %v44
  %v73 = vadd.f32 %v69, 1e-05
  %v74 = vadd.f32 %v70, 1e-05
  %v75 = vadd.f32 %v71, 1e-05
  %v76 = vadd.f32 %v72, 1e-05
  %v77 = vrsqrt.pop %v73
  %v78 = vrsqrt.pop %v74
  %v79 = vrsqrt.pop %v75
  %v80 = vrsqrt.pop %v76
  %v81 = vmul.f32 %v49, %v77
  %v82 = vmul.f32 %v50, %v78
  %v83 = vmul.f32 %v51, %v79
  %v84 = vmul.f32 %v52, %v80
  %v86 = vlaneseq
  %v87 = vshrl.u32 %v86, 7
  %v88 = vsub.s32 0, %v87
  %v89 = vrot.slane %v29, %v88
  %v91 = vmul.f32 %v81, %v89
  %v92 = vmul.f32 %v82, %v89
  %v93 = vmul.f32 %v83, %v89
  %v94 = vmul.f32 %v84, %v89
  %v96 = vlaneseq
  %v97 = vshrl.u32 %v96, 7
  %v98 = vsub.s32 0, %v97
  %v99 = vrot.slane %v30, %v98
  %v101 = vadd.f32 %v91, %v99
  %v102 = vadd.f32 %v92, %v99
  %v103 = vadd.f32 %v93, %v99
  %v104 = vadd.f32 %v94, %v99
  %v105 = vpack.c.bf16 %v102, %v101
  %v106 = vpack.c.bf16 %v104, %v103
  %v107 = vld [vmem:[%s3] sm:$0xff]
  %v108 = vld [vmem:[%s3 + $0x8] sm:$0xff]
  %v109 = vld [vmem:[%s3 + $0x10] sm:$0xff]
  %v110 = vld [vmem:[%s3 + $0x18] sm:$0xff]
  %v111 = vld [vmem:[%s4] sm:$0x3]
  %v113 = vlaneseq
  %v114 = vshrl.u32 %v113, 7
  %v115 = vsub.s32 0, %v114
  %v116 = vrot.slane %v111, %v115
  %v117 = vlaneseq
  %v118 = vshrl.u32 %v117, 7
  %v119 = vsub.s32 1, %v118
  %v120 = vrot.slane %v111, %v119
  %v127 = vunpack.c.l.b16 %v107
  %v128 = vunpack.c.h.b16 %v107
  %v129 = vunpack.c.l.b16 %v108
  %v130 = vunpack.c.h.b16 %v108
  %v131 = vunpack.c.l.b16 %v109
  %v132 = vunpack.c.h.b16 %v109
  %v133 = vunpack.c.l.b16 %v110
  %v134 = vunpack.c.h.b16 %v110
  %v135 = vpack.c.b16 %v129, %v127
  %v136 = vpack.c.b16 %v130, %v128
  %v137 = vpack.c.b16 %v133, %v131
  %v138 = vpack.c.b16 %v134, %v132
  %v144 = vsel %vm31, %v105, 0
  %v147 = vsel %vm31, %v106, 0
  %149 = vmatprep.subr.bf16.mxu0 0
  %150 = vmatpush1.bf16.msra.mxu0 0
  %151 = vmatprep.subr.bf16.mxu0 0
  %152 = vmatpush1.bf16.msra.mxu0 0
  %153 = vmatprep.subr.bf16.mxu0 0
  %154 = vmatpush1.bf16.msra.mxu0 0
  %155 = vmatprep.subr.bf16.mxu0 0
  %156 = vmatpush1.bf16.msra.mxu0 0
  %157 = vmatprep.subr.bf16.mxu0 0
  %158 = vmatpush1.bf16.msra.mxu0 0
  %159 = vmatprep.subr.bf16.mxu0 0
  %160 = vmatpush1.bf16.msra.mxu0 0
  %161 = vmatprep.subr.bf16.mxu0 %v138
  %162 = vmatpush1.bf16.msra.mxu0 %v137
  %163 = vmatprep.subr.bf16.mxu0 %v136
  %164 = vmatpush1.bf16.msra.mxu0 %v135
  %165 = vmatprep.subr.bf16.mxu0 0
  %166 = vmatpush2.bf16.msra.mxu0 0
  %167 = vmatprep.subr.bf16.mxu0 0
  %168 = vmatpush2.bf16.msra.mxu0 0
  %169 = vmatprep.subr.bf16.mxu0 0
  %170 = vmatpush2.bf16.msra.mxu0 0
  %171 = vmatprep.subr.bf16.mxu0 0
  %172 = vmatpush2.bf16.msra.mxu0 0
  %173 = vmatprep.subr.bf16.mxu0 0
  %174 = vmatpush2.bf16.msra.mxu0 0
  %175 = vmatprep.subr.bf16.mxu0 0
  %176 = vmatpush2.bf16.msra.mxu0 0
  %177 = vmatprep.subr.bf16.mxu0 0
  %178 = vmatpush2.bf16.msra.mxu0 0
  %179 = vmatprep.subr.bf16.mxu0 0
  %180 = vmatpush2.bf16.msra.mxu0 0
  %181 = vmatprep.mubr.bf16.mxu0 0
  %182 = vmatmul.mubr.bf16.gmra.mxu0 %v144
  %v183 = vpop.f32.mrf.mxu0
  %v184 = vadd.f32 %v116, %v183
  %v185 = vpop.f32.mrf.mxu0
  %v186 = vadd.f32 %v120, %v185
  %v187 = vpop.f32.mrf.mxu0
  %v188 = vadd.f32 %v116, %v187
  %v189 = vpop.f32.mrf.mxu0
  %v190 = vadd.f32 %v120, %v189
  %191 = vmatprep.mubr.bf16.mxu0 0
  %192 = vmatmul.mubr.bf16.gmra.mxu0 %v147
  %v193 = vpop.f32.mrf.mxu0
  %v194 = vadd.f32 %v116, %v193
  %v195 = vpop.f32.mrf.mxu0
  %v196 = vadd.f32 %v120, %v195
  %v197 = vpop.f32.mrf.mxu0
  %v198 = vadd.f32 %v116, %v197
  %v199 = vpop.f32.mrf.mxu0
  %v200 = vadd.f32 %v120, %v199
  %201 = vdwg.mxu0
  %v202 = vxor.u32 %v184, 2147483648
  %v203 = vxor.u32 %v186, 2147483648
  %v204 = vxor.u32 %v188, 2147483648
  %v205 = vxor.u32 %v190, 2147483648
  %v206 = vxor.u32 %v194, 2147483648
  %v207 = vxor.u32 %v196, 2147483648
  %v208 = vxor.u32 %v198, 2147483648
  %v209 = vxor.u32 %v200, 2147483648
  %v210 = vmul.f32 %v202, 1.442695
  %v211 = vpow.pop %v210
  %v212 = vmul.f32 %v203, 1.442695
  %v213 = vpow.pop %v212
  %v214 = vmul.f32 %v204, 1.442695
  %v215 = vpow.pop %v214
  %v216 = vmul.f32 %v205, 1.442695
  %v217 = vpow.pop %v216
  %v218 = vmul.f32 %v206, 1.442695
  %v219 = vpow.pop %v218
  %v220 = vmul.f32 %v207, 1.442695
  %v221 = vpow.pop %v220
  %v222 = vmul.f32 %v208, 1.442695
  %v223 = vpow.pop %v222
  %v224 = vmul.f32 %v209, 1.442695
  %v225 = vpow.pop %v224
  %v226 = vadd.f32 %v211, 1.0
  %v227 = vadd.f32 %v213, 1.0
  %v228 = vadd.f32 %v215, 1.0
  %v229 = vadd.f32 %v217, 1.0
  %v230 = vadd.f32 %v219, 1.0
  %v231 = vadd.f32 %v221, 1.0
  %v232 = vadd.f32 %v223, 1.0
  %v233 = vadd.f32 %v225, 1.0
  %v234 = vrcp.pop %v226
  %v235 = vmul.f32 1.0, %v234
  %v236 = vrcp.pop %v227
  %v237 = vmul.f32 1.0, %v236
  %v238 = vrcp.pop %v228
  %v239 = vmul.f32 1.0, %v238
  %v240 = vrcp.pop %v229
  %v241 = vmul.f32 1.0, %v240
  %v242 = vrcp.pop %v230
  %v243 = vmul.f32 1.0, %v242
  %v244 = vrcp.pop %v231
  %v245 = vmul.f32 1.0, %v244
  %v246 = vrcp.pop %v232
  %v247 = vmul.f32 1.0, %v246
  %v248 = vrcp.pop %v233
  %v249 = vmul.f32 1.0, %v248
  %250 = vst [vmem:[%s5] sm:$0xff] %v235
  %vm251 = vcmask 523264
  %252 = vst.msk [vmem:[%s5 + $0x8] sm:$0xff] %vm251, %v237
  %253 = vst [vmem:[%s5 + $0x10] sm:$0xff] %v239
  %254 = vst.msk [vmem:[%s5 + $0x18] sm:$0xff] %vm251, %v241
  %255 = vst [vmem:[%s5 + $0x20] sm:$0xff] %v243
  %256 = vst.msk [vmem:[%s5 + $0x28] sm:$0xff] %vm251, %v245
  %257 = vst [vmem:[%s5 + $0x30] sm:$0xff] %v247
  %258 = vst.msk [vmem:[%s5 + $0x38] sm:$0xff] %vm251, %v249
  // Predicated region
  $region22: #{maxvit2_forward.7} parent=0 // pred_check
    _
  $region23: #{maxvit2_forward.7} parent=0 // pred_check_branch
    %260 = sbr.rel (0) target = $region25
  $region24: #{maxvit2_forward.7} parent=0 // pred_region
    _
  $region25: #{maxvit2_forward.7} parent=0 // pred_fallthru
    _
  // Predicated region
  $region26: #{maxvit2_forward.7} parent=0 // pred_check
    _
  $region27: #{maxvit2_forward.7} parent=0 // pred_check_branch
    %262 = sbr.rel (0) target = $region29
  $region28: #{maxvit2_forward.7} parent=0 // pred_region
    _
  $region29: #{maxvit2_forward.7} parent=0 // pred_fallthru
    _

</llo_original>
